<compile_context>
chip_gen: v7x
topology: tpu7x:2x2x1
jax: 0.10.0
libtpu: 0.0.40
codegen_flags: <defaults>
</compile_context>

<pallas_src>
import jax
import jax.numpy as jnp
from jax.experimental import pallas as pl
from jax.experimental.pallas import tpu as pltpu


_LANE = 128  # pad every GEMM output/channel dim to this for lane-dense stores


def _round_up(x, m):
    return (x + m - 1) // m * m


# ----------------------------------------------------------------------------
# Pallas kernels
# ----------------------------------------------------------------------------
def _conv_relu_pool_kernel(p_ref, w_ref, b_ref, o_ref):
    """Fused conv (one GEMM over all 4 pool offsets) + 2x2 max-pool + bias + ReLU.

      p_ref: (4*Np, K)  bf16 im2col patches, rows grouped by pool offset
      w_ref: (K, 128)   bf16 conv weight as a GEMM matrix (Cout zero-padded)
      b_ref: (1, 128)   f32 bias (zero-padded)
      o_ref: (Np, 128)  f32 pooled activation
    """
    y = jnp.dot(p_ref[...], w_ref[...], preferred_element_type=jnp.float32)
    n = o_ref.shape[0]  # rows per pool-offset group (multiple of 8 -> aligned)
    m = jnp.maximum(jnp.maximum(y[:n], y[n:2 * n]),
                    jnp.maximum(y[2 * n:3 * n], y[3 * n:]))
    # bias-add + ReLU commute with the max (identical bias for all 4 candidates)
    o_ref[...] = jnp.maximum(m + b_ref[...], 0.0)


def _conv_relu_pool_fc_kernel(p_ref, w_ref, b_ref, wfc_ref, bfc_ref, o_ref):
    """Third conv block with the final Linear fused in.

      p_ref:   (4*Np, K)      bf16 patches, row order (pool_offset, pos, batch)
      w_ref:   (K, 128)       bf16 conv weight
      b_ref:   (1, 128)       f32 conv bias
      wfc_ref: (9, 128, 128)  f32 FC weight [pos, cin, cout] (flatten folded in)
      bfc_ref: (1, 128)       f32 FC bias
      o_ref:   (B, 128)       f32 logits (cout zero-padded)
    """
    y = jnp.dot(p_ref[...], w_ref[...], preferred_element_type=jnp.float32)
    n = p_ref.shape[0] // 4
    m = jnp.maximum(jnp.maximum(y[:n], y[n:2 * n]),
                    jnp.maximum(y[2 * n:3 * n], y[3 * n:]))
    act = jnp.maximum(m + b_ref[...], 0.0)          # (Np, 128), row = pos*B + b
    bsz = o_ref.shape[0]
    acc = jnp.zeros((bsz, o_ref.shape[1]), jnp.float32)
    for p in range(wfc_ref.shape[0]):               # 9 pooled positions, unrolled
        acc = acc + jnp.dot(act[p * bsz:(p + 1) * bsz, :], wfc_ref[p],
                            preferred_element_type=jnp.float32)
    o_ref[...] = acc + bfc_ref[...]


# ----------------------------------------------------------------------------
# JAX glue (pure layout plumbing; all compute lives in the kernels)
# ----------------------------------------------------------------------------
def _pool_patches(x_nhwc, *, batch_minor=False):
    """im2col for a 5x5 / stride-1 / pad-2 conv, rows grouped by 2x2 pool offset.

    Returns (patches, n_valid, n_padded):
      patches: (4*Np, 25*Cin) bf16; group q = 2*ph + pw occupies rows
               [q*Np, q*Np + n_valid).  Row order inside a group is
               (b, oh, ow), or (oh, ow, b) if batch_minor (used by the fused FC).
    """
    x = x_nhwc.astype(jnp.bfloat16)
    B, H, W, C = x.shape
    Ho, Wo = H // 2, W // 2                       # MaxPool2d(2) floor behavior
    K = 25 * C
    # Single fused gather; output feature dim ordered (cin major, kh, kw minor).
    pat = jax.lax.conv_general_dilated_patches(
        x, filter_shape=(5, 5), window_strides=(1, 1),
        padding=((2, 2), (2, 2)),
        dimension_numbers=("NHWC", "HWIO", "NHWC"))     # (B, H, W, K)
    pat = pat[:, :2 * Ho, :2 * Wo, :]                   # drop odd tail (floor pool)
    pat = pat.reshape(B, Ho, 2, Wo, 2, K)
    if batch_minor:
        pat = pat.transpose(2, 4, 1, 3, 0, 5)           # (ph, pw, oh, ow, b, K)
    else:
        pat = pat.transpose(2, 4, 0, 1, 3, 5)           # (ph, pw, b, oh, ow, K)
    n = B * Ho * Wo
    pat = pat.reshape(4, n, K)
    n_pad = _round_up(n, 8)                             # aligned sublane groups
    if n_pad != n:
        pat = jnp.pad(pat, ((0, 0), (0, n_pad - n), (0, 0)))
    return pat.reshape(4 * n_pad, K), n, n_pad


def _conv_gemm_weights(w_oihw, bias):
    """(Cout, Cin, 5, 5) -> ((25*Cin, 128) bf16, (1, 128) f32), row order
    (cin, kh, kw) to match conv_general_dilated_patches' feature ordering."""
    Cout, Cin, KH, KW = w_oihw.shape
    wm = jnp.transpose(w_oihw, (1, 2, 3, 0)).reshape(Cin * KH * KW, Cout)
    wm = jnp.pad(wm, ((0, 0), (0, _LANE - Cout))).astype(jnp.bfloat16)
    b2 = jnp.pad(bias, (0, _LANE - Cout)).reshape(1, _LANE).astype(jnp.float32)
    return wm, b2


def _vmem_specs(n):
    return [pl.BlockSpec(memory_space=pltpu.MemorySpace.VMEM)] * n


def _conv_block(x_nhwc, w_oihw, bias):
    """nn.Sequential(Conv2d(k=5,s=1,p=2), ReLU, MaxPool2d(2)) as one pallas_call."""
    B = x_nhwc.shape[0]
    Cout = w_oihw.shape[0]
    Ho, Wo = x_nhwc.shape[1] // 2, x_nhwc.shape[2] // 2
    pat, n, n_pad = _pool_patches(x_nhwc)
    wm, b2 = _conv_gemm_weights(w_oihw, bias)
    out = pl.pallas_call(
        _conv_relu_pool_kernel,
        out_shape=jax.ShapeDtypeStruct((n_pad, _LANE), jnp.float32),
        in_specs=_vmem_specs(3),
        out_specs=pl.BlockSpec(memory_space=pltpu.MemorySpace.VMEM),
    )(pat, wm, b2)
    return out[:n, :Cout].reshape(B, Ho, Wo, Cout)


def _conv_block_fc(x_nhwc, w_oihw, bias, wfc, bfc):
    """Third conv block + the nn.Linear, fused into one pallas_call."""
    B = x_nhwc.shape[0]
    Cout = w_oihw.shape[0]                               # 32
    Ho, Wo = x_nhwc.shape[1] // 2, x_nhwc.shape[2] // 2  # 3, 3
    n_out = wfc.shape[0]                                 # 10
    pat, _, _ = _pool_patches(x_nhwc, batch_minor=True)
    wm, b2 = _conv_gemm_weights(w_oihw, bias)
    # Fold torch's NCHW flatten (flat idx = c*9 + h*3 + w) into the FC weight:
    #   wfc3[p, c, o] = wfc[o, c*9 + p],  p = h*3 + w
    wfc3 = jnp.transpose(wfc.reshape(n_out, Cout, Ho * Wo), (2, 1, 0))
    wfc3 = jnp.pad(wfc3, ((0, 0), (0, _LANE - Cout), (0, _LANE - n_out)))
    wfc3 = wfc3.astype(jnp.float32)
    bfc2 = jnp.pad(bfc, (0, _LANE - n_out)).reshape(1, _LANE).astype(jnp.float32)
    logits = pl.pallas_call(
        _conv_relu_pool_fc_kernel,
        out_shape=jax.ShapeDtypeStruct((B, _LANE), jnp.float32),
        in_specs=_vmem_specs(5),
        out_specs=pl.BlockSpec(memory_space=pltpu.MemorySpace.VMEM),
    )(pat, wm, b2, wfc3, bfc2)
    return logits[:, :n_out]


def cnn2_forward(x_nchw, params):
    (w1, b1), (w2, b2), (w3, b3), (wfc, bfc) = params
    x = jnp.transpose(x_nchw, (0, 2, 3, 1))          # NCHW -> NHWC (layout only)
    x = _conv_block(x, w1, b1)                       # (B, 14, 14, 6)
    x = _conv_block(x, w2, b2)                       # (B, 7, 7, 32)
    return _conv_block_fc(x, w3, b3, wfc, bfc)       # (B, 10)


# ----------------------------------------------------------------------------
# Pure-JAX reference (correctness check only)
# ----------------------------------------------------------------------------
def reference_forward(x_nchw, params):
    (w1, b1), (w2, b2), (w3, b3), (wfc, bfc) = params

    def block(x, w, b):
        y = jax.lax.conv_general_dilated(
            x, w, (1, 1), ((2, 2), (2, 2)),
            dimension_numbers=("NCHW", "OIHW", "NCHW"))
        y = jnp.maximum(y + b[None, :, None, None], 0.0)
        return jax.lax.reduce_window(
            y, -jnp.inf, jax.lax.max, (1, 1, 2, 2), (1, 1, 2, 2), "VALID")

    y = block(x_nchw, w1, b1)
    y = block(y, w2, b2)
    y = block(y, w3, b3)
    flat = y.reshape(y.shape[0], -1)
    return flat @ wfc.T + bfc


# ----------------------------------------------------------------------------
if __name__ == "__main__":
    key = jax.random.PRNGKey(0)
    ks = jax.random.split(key, 9)
    # Deterministic synthetic parameters (shapes from CNN2.__init__).
    w1 = 0.1 * jax.random.normal(ks[0], (6, 1, 5, 5), jnp.float32)
    b1 = 0.1 * jax.random.normal(ks[1], (6,), jnp.float32)
    w2 = 0.1 * jax.random.normal(ks[2], (32, 6, 5, 5), jnp.float32)
    b2 = 0.1 * jax.random.normal(ks[3], (32,), jnp.float32)
    w3 = 0.1 * jax.random.normal(ks[4], (32, 32, 5, 5), jnp.float32)
    b3 = 0.1 * jax.random.normal(ks[5], (32,), jnp.float32)
    wfc = 0.1 * jax.random.normal(ks[6], (10, 32 * 3 * 3), jnp.float32)
    bfc = 0.1 * jax.random.normal(ks[7], (10,), jnp.float32)
    params = ((w1, b1), (w2, b2), (w3, b3), (wfc, bfc))

    # The fc layer (32*3*3 inputs) forces 1x28x28 images; batch kept small.
    x = jax.random.normal(ks[8], (2, 1, 28, 28), jnp.float32)

    out = jax.jit(cnn2_forward)(x, params)
    out = jax.block_until_ready(out)

    ref = reference_forward(x, params)
    assert out.shape == (2, 10), out.shape
    # Tolerance widened for the bf16 MXU-operand cast (f32 accumulation).
    assert jnp.allclose(out, ref, rtol=5e-2, atol=5e-2), (out, ref)
    print("KERNEL_OK")
</pallas_src>

<mosaic_0001>
module attributes {stable_mosaic.version = 11 : i64} {
  func.func @_conv_relu_pool_kernel(%arg0: memref<1568x25xbf16, #tpu.memory_space<vmem>>, %arg1: memref<25x128xbf16, #tpu.memory_space<vmem>>, %arg2: memref<1x128xf32, #tpu.memory_space<vmem>>, %arg3: memref<392x128xf32, #tpu.memory_space<vmem>>) attributes {dimension_semantics = [], scalar_prefetch = 0 : i64, scratch_operands = 0 : i64, tpu.core_type = #tpu.core_type<tc>} {
    %c0 = arith.constant 0 : index
    %c0_0 = arith.constant 0 : index
    %0 = vector.load %arg0[%c0, %c0_0] : memref<1568x25xbf16, #tpu.memory_space<vmem>>, vector<1568x25xbf16>
    %c0_1 = arith.constant 0 : index
    %c0_2 = arith.constant 0 : index
    %1 = vector.load %arg1[%c0_1, %c0_2] : memref<25x128xbf16, #tpu.memory_space<vmem>>, vector<25x128xbf16>
    %cst = arith.constant dense<0.000000e+00> : vector<1568x128xf32>
    %2 = tpu.matmul %0, %1, %cst {dimension_numbers = #tpu.dot_dimension_numbers<[1], [0], [0], [1], [0, 0, 1, 1], [], []>} : vector<1568x25xbf16>, vector<25x128xbf16>, vector<1568x128xf32> -> vector<1568x128xf32>
    %3 = vector.extract_strided_slice %2 {offsets = [0, 0], sizes = [392, 128], strides = [1, 1]} : vector<1568x128xf32> to vector<392x128xf32>
    %4 = vector.extract_strided_slice %2 {offsets = [392, 0], sizes = [392, 128], strides = [1, 1]} : vector<1568x128xf32> to vector<392x128xf32>
    %5 = arith.maximumf %3, %4 : vector<392x128xf32>
    %6 = vector.extract_strided_slice %2 {offsets = [784, 0], sizes = [392, 128], strides = [1, 1]} : vector<1568x128xf32> to vector<392x128xf32>
    %7 = vector.extract_strided_slice %2 {offsets = [1176, 0], sizes = [392, 128], strides = [1, 1]} : vector<1568x128xf32> to vector<392x128xf32>
    %8 = arith.maximumf %6, %7 : vector<392x128xf32>
    %9 = arith.maximumf %5, %8 : vector<392x128xf32>
    %c0_3 = arith.constant 0 : index
    %c0_4 = arith.constant 0 : index
    %10 = vector.load %arg2[%c0_3, %c0_4] : memref<1x128xf32, #tpu.memory_space<vmem>>, vector<1x128xf32>
    %11 = vector.broadcast %10 : vector<1x128xf32> to vector<392x128xf32>
    %12 = arith.addf %9, %11 : vector<392x128xf32>
    %cst_5 = arith.constant 0.000000e+00 : f32
    %13 = vector.broadcast %cst_5 : f32 to vector<392x128xf32>
    %14 = arith.maximumf %12, %13 : vector<392x128xf32>
    %c0_6 = arith.constant 0 : index
    %c0_7 = arith.constant 0 : index
    %15 = vector.load %arg3[%c0_6, %c0_7] : memref<392x128xf32, #tpu.memory_space<vmem>>, vector<392x128xf32>
    tpu.vector_store %arg3[%c0_6, %c0_7], %14 {strides = array<i32>} : memref<392x128xf32, #tpu.memory_space<vmem>>, vector<392x128xf32>,
    return
  }
}

module attributes {stable_mosaic.version = 11 : i64} {
  func.func @_conv_relu_pool_kernel(%arg0: memref<416x150xbf16, #tpu.memory_space<vmem>>, %arg1: memref<150x128xbf16, #tpu.memory_space<vmem>>, %arg2: memref<1x128xf32, #tpu.memory_space<vmem>>, %arg3: memref<104x128xf32, #tpu.memory_space<vmem>>) attributes {dimension_semantics = [], scalar_prefetch = 0 : i64, scratch_operands = 0 : i64, tpu.core_type = #tpu.core_type<tc>} {
    %c0 = arith.constant 0 : index
    %c0_0 = arith.constant 0 : index
    %0 = vector.load %arg0[%c0, %c0_0] : memref<416x150xbf16, #tpu.memory_space<vmem>>, vector<416x150xbf16>
    %c0_1 = arith.constant 0 : index
    %c0_2 = arith.constant 0 : index
    %1 = vector.load %arg1[%c0_1, %c0_2] : memref<150x128xbf16, #tpu.memory_space<vmem>>, vector<150x128xbf16>
    %cst = arith.constant dense<0.000000e+00> : vector<416x128xf32>
    %2 = tpu.matmul %0, %1, %cst {dimension_numbers = #tpu.dot_dimension_numbers<[1], [0], [0], [1], [0, 0, 1, 1], [], []>} : vector<416x150xbf16>, vector<150x128xbf16>, vector<416x128xf32> -> vector<416x128xf32>
    %3 = vector.extract_strided_slice %2 {offsets = [0, 0], sizes = [104, 128], strides = [1, 1]} : vector<416x128xf32> to vector<104x128xf32>
    %4 = vector.extract_strided_slice %2 {offsets = [104, 0], sizes = [104, 128], strides = [1, 1]} : vector<416x128xf32> to vector<104x128xf32>
    %5 = arith.maximumf %3, %4 : vector<104x128xf32>
    %6 = vector.extract_strided_slice %2 {offsets = [208, 0], sizes = [104, 128], strides = [1, 1]} : vector<416x128xf32> to vector<104x128xf32>
    %7 = vector.extract_strided_slice %2 {offsets = [312, 0], sizes = [104, 128], strides = [1, 1]} : vector<416x128xf32> to vector<104x128xf32>
    %8 = arith.maximumf %6, %7 : vector<104x128xf32>
    %9 = arith.maximumf %5, %8 : vector<104x128xf32>
    %c0_3 = arith.constant 0 : index
    %c0_4 = arith.constant 0 : index
    %10 = vector.load %arg2[%c0_3, %c0_4] : memref<1x128xf32, #tpu.memory_space<vmem>>, vector<1x128xf32>
    %11 = vector.broadcast %10 : vector<1x128xf32> to vector<104x128xf32>
    %12 = arith.addf %9, %11 : vector<104x128xf32>
    %cst_5 = arith.constant 0.000000e+00 : f32
    %13 = vector.broadcast %cst_5 : f32 to vector<104x128xf32>
    %14 = arith.maximumf %12, %13 : vector<104x128xf32>
    %c0_6 = arith.constant 0 : index
    %c0_7 = arith.constant 0 : index
    %15 = vector.load %arg3[%c0_6, %c0_7] : memref<104x128xf32, #tpu.memory_space<vmem>>, vector<104x128xf32>
    tpu.vector_store %arg3[%c0_6, %c0_7], %14 {strides = array<i32>} : memref<104x128xf32, #tpu.memory_space<vmem>>, vector<104x128xf32>,
    return
  }
}

module attributes {stable_mosaic.version = 11 : i64} {
  func.func @_conv_relu_pool_fc_kernel(%arg0: memref<96x800xbf16, #tpu.memory_space<vmem>>, %arg1: memref<800x128xbf16, #tpu.memory_space<vmem>>, %arg2: memref<1x128xf32, #tpu.memory_space<vmem>>, %arg3: memref<9x128x128xf32, #tpu.memory_space<vmem>>, %arg4: memref<1x128xf32, #tpu.memory_space<vmem>>, %arg5: memref<2x128xf32, #tpu.memory_space<vmem>>) attributes {dimension_semantics = [], scalar_prefetch = 0 : i64, scratch_operands = 0 : i64, tpu.core_type = #tpu.core_type<tc>} {
    %c0 = arith.constant 0 : index
    %c0_0 = arith.constant 0 : index
    %0 = vector.load %arg0[%c0, %c0_0] : memref<96x800xbf16, #tpu.memory_space<vmem>>, vector<96x800xbf16>
    %c0_1 = arith.constant 0 : index
    %c0_2 = arith.constant 0 : index
    %1 = vector.load %arg1[%c0_1, %c0_2] : memref<800x128xbf16, #tpu.memory_space<vmem>>, vector<800x128xbf16>
    %cst = arith.constant dense<0.000000e+00> : vector<96x128xf32>
    %2 = tpu.matmul %0, %1, %cst {dimension_numbers = #tpu.dot_dimension_numbers<[1], [0], [0], [1], [0, 0, 1, 1], [], []>} : vector<96x800xbf16>, vector<800x128xbf16>, vector<96x128xf32> -> vector<96x128xf32>
    %3 = vector.extract_strided_slice %2 {offsets = [0, 0], sizes = [24, 128], strides = [1, 1]} : vector<96x128xf32> to vector<24x128xf32>
    %4 = vector.extract_strided_slice %2 {offsets = [24, 0], sizes = [24, 128], strides = [1, 1]} : vector<96x128xf32> to vector<24x128xf32>
    %5 = arith.maximumf %3, %4 : vector<24x128xf32>
    %6 = vector.extract_strided_slice %2 {offsets = [48, 0], sizes = [24, 128], strides = [1, 1]} : vector<96x128xf32> to vector<24x128xf32>
    %7 = vector.extract_strided_slice %2 {offsets = [72, 0], sizes = [24, 128], strides = [1, 1]} : vector<96x128xf32> to vector<24x128xf32>
    %8 = arith.maximumf %6, %7 : vector<24x128xf32>
    %9 = arith.maximumf %5, %8 : vector<24x128xf32>
    %c0_3 = arith.constant 0 : index
    %c0_4 = arith.constant 0 : index
    %10 = vector.load %arg2[%c0_3, %c0_4] : memref<1x128xf32, #tpu.memory_space<vmem>>, vector<1x128xf32>
    %11 = vector.broadcast %10 : vector<1x128xf32> to vector<24x128xf32>
    %12 = arith.addf %9, %11 : vector<24x128xf32>
    %cst_5 = arith.constant 0.000000e+00 : f32
    %13 = vector.broadcast %cst_5 : f32 to vector<24x128xf32>
    %14 = arith.maximumf %12, %13 : vector<24x128xf32>
    %cst_6 = arith.constant 0.000000e+00 : f32
    %15 = vector.broadcast %cst_6 : f32 to vector<2x128xf32>
    %16 = vector.extract_strided_slice %14 {offsets = [0, 0], sizes = [2, 128], strides = [1, 1]} : vector<24x128xf32> to vector<2x128xf32>
    %c0_7 = arith.constant 0 : index
    %c0_8 = arith.constant 0 : index
    %c0_9 = arith.constant 0 : index
    %17 = vector.load %arg3[%c0_7, %c0_8, %c0_9] : memref<9x128x128xf32, #tpu.memory_space<vmem>>, vector<1x128x128xf32>
    %18 = vector.shape_cast %17 : vector<1x128x128xf32> to vector<128x128xf32>
    %cst_10 = arith.constant dense<0.000000e+00> : vector<2x128xf32>
    %19 = tpu.matmul %16, %18, %cst_10 {dimension_numbers = #tpu.dot_dimension_numbers<[1], [0], [0], [1], [0, 0, 1, 1], [], []>} : vector<2x128xf32>, vector<128x128xf32>, vector<2x128xf32> -> vector<2x128xf32>
    %20 = arith.addf %15, %19 : vector<2x128xf32>
    %21 = vector.extract_strided_slice %14 {offsets = [2, 0], sizes = [2, 128], strides = [1, 1]} : vector<24x128xf32> to vector<2x128xf32>
    %c1 = arith.constant 1 : index
    %c0_11 = arith.constant 0 : index
    %c0_12 = arith.constant 0 : index
    %22 = vector.load %arg3[%c1, %c0_11, %c0_12] : memref<9x128x128xf32, #tpu.memory_space<vmem>>, vector<1x128x128xf32>
    %23 = vector.shape_cast %22 : vector<1x128x128xf32> to vector<128x128xf32>
    %cst_13 = arith.constant dense<0.000000e+00> : vector<2x128xf32>
    %24 = tpu.matmul %21, %23, %cst_13 {dimension_numbers = #tpu.dot_dimension_numbers<[1], [0], [0], [1], [0, 0, 1, 1], [], []>} : vector<2x128xf32>, vector<128x128xf32>, vector<2x128xf32> -> vector<2x128xf32>
    %25 = arith.addf %20, %24 : vector<2x128xf32>
    %26 = vector.extract_strided_slice %14 {offsets = [4, 0], sizes = [2, 128], strides = [1, 1]} : vector<24x128xf32> to vector<2x128xf32>
    %c2 = arith.constant 2 : index
    %c0_14 = arith.constant 0 : index
    %c0_15 = arith.constant 0 : index
    %27 = vector.load %arg3[%c2, %c0_14, %c0_15] : memref<9x128x128xf32, #tpu.memory_space<vmem>>, vector<1x128x128xf32>
    %28 = vector.shape_cast %27 : vector<1x128x128xf32> to vector<128x128xf32>
    %cst_16 = arith.constant dense<0.000000e+00> : vector<2x128xf32>
    %29 = tpu.matmul %26, %28, %cst_16 {dimension_numbers = #tpu.dot_dimension_numbers<[1], [0], [0], [1], [0, 0, 1, 1], [], []>} : vector<2x128xf32>, vector<128x128xf32>, vector<2x128xf32> -> vector<2x128xf32>
    %30 = arith.addf %25, %29 : vector<2x128xf32>
    %31 = vector.extract_strided_slice %14 {offsets = [6, 0], sizes = [2, 128], strides = [1, 1]} : vector<24x128xf32> to vector<2x128xf32>
    %c3 = arith.constant 3 : index
    %c0_17 = arith.constant 0 : index
    %c0_18 = arith.constant 0 : index
    %32 = vector.load %arg3[%c3, %c0_17, %c0_18] : memref<9x128x128xf32, #tpu.memory_space<vmem>>, vector<1x128x128xf32>
    %33 = vector.shape_cast %32 : vector<1x128x128xf32> to vector<128x128xf32>
    %cst_19 = arith.constant dense<0.000000e+00> : vector<2x128xf32>
    %34 = tpu.matmul %31, %33, %cst_19 {dimension_numbers = #tpu.dot_dimension_numbers<[1], [0], [0], [1], [0, 0, 1, 1], [], []>} : vector<2x128xf32>, vector<128x128xf32>, vector<2x128xf32> -> vector<2x128xf32>
    %35 = arith.addf %30, %34 : vector<2x128xf32>
    %36 = vector.extract_strided_slice %14 {offsets = [8, 0], sizes = [2, 128], strides = [1, 1]} : vector<24x128xf32> to vector<2x128xf32>
    %c4 = arith.constant 4 : index
    %c0_20 = arith.constant 0 : index
    %c0_21 = arith.constant 0 : index
    %37 = vector.load %arg3[%c4, %c0_20, %c0_21] : memref<9x128x128xf32, #tpu.memory_space<vmem>>, vector<1x128x128xf32>
    %38 = vector.shape_cast %37 : vector<1x128x128xf32> to vector<128x128xf32>
    %cst_22 = arith.constant dense<0.000000e+00> : vector<2x128xf32>
    %39 = tpu.matmul %36, %38, %cst_22 {dimension_numbers = #tpu.dot_dimension_numbers<[1], [0], [0], [1], [0, 0, 1, 1], [], []>} : vector<2x128xf32>, vector<128x128xf32>, vector<2x128xf32> -> vector<2x128xf32>
    %40 = arith.addf %35, %39 : vector<2x128xf32>
    %41 = vector.extract_strided_slice %14 {offsets = [10, 0], sizes = [2, 128], strides = [1, 1]} : vector<24x128xf32> to vector<2x128xf32>
    %c5 = arith.constant 5 : index
    %c0_23 = arith.constant 0 : index
    %c0_24 = arith.constant 0 : index
    %42 = vector.load %arg3[%c5, %c0_23, %c0_24] : memref<9x128x128xf32, #tpu.memory_space<vmem>>, vector<1x128x128xf32>
    %43 = vector.shape_cast %42 : vector<1x128x128xf32> to vector<128x128xf32>
    %cst_25 = arith.constant dense<0.000000e+00> : vector<2x128xf32>
    %44 = tpu.matmul %41, %43, %cst_25 {dimension_numbers = #tpu.dot_dimension_numbers<[1], [0], [0], [1], [0, 0, 1, 1], [], []>} : vector<2x128xf32>, vector<128x128xf32>, vector<2x128xf32> -> vector<2x128xf32>
    %45 = arith.addf %40, %44 : vector<2x128xf32>
    %46 = vector.extract_strided_slice %14 {offsets = [12, 0], sizes = [2, 128], strides = [1, 1]} : vector<24x128xf32> to vector<2x128xf32>
    %c6 = arith.constant 6 : index
    %c0_26 = arith.constant 0 : index
    %c0_27 = arith.constant 0 : index
    %47 = vector.load %arg3[%c6, %c0_26, %c0_27] : memref<9x128x128xf32, #tpu.memory_space<vmem>>, vector<1x128x128xf32>
    %48 = vector.shape_cast %47 : vector<1x128x128xf32> to vector<128x128xf32>
    %cst_28 = arith.constant dense<0.000000e+00> : vector<2x128xf32>
    %49 = tpu.matmul %46, %48, %cst_28 {dimension_numbers = #tpu.dot_dimension_numbers<[1], [0], [0], [1], [0, 0, 1, 1], [], []>} : vector<2x128xf32>, vector<128x128xf32>, vector<2x128xf32> -> vector<2x128xf32>
    %50 = arith.addf %45, %49 : vector<2x128xf32>
    %51 = vector.extract_strided_slice %14 {offsets = [14, 0], sizes = [2, 128], strides = [1, 1]} : vector<24x128xf32> to vector<2x128xf32>
    %c7 = arith.constant 7 : index
    %c0_29 = arith.constant 0 : index
    %c0_30 = arith.constant 0 : index
    %52 = vector.load %arg3[%c7, %c0_29, %c0_30] : memref<9x128x128xf32, #tpu.memory_space<vmem>>, vector<1x128x128xf32>
    %53 = vector.shape_cast %52 : vector<1x128x128xf32> to vector<128x128xf32>
    %cst_31 = arith.constant dense<0.000000e+00> : vector<2x128xf32>
    %54 = tpu.matmul %51, %53, %cst_31 {dimension_numbers = #tpu.dot_dimension_numbers<[1], [0], [0], [1], [0, 0, 1, 1], [], []>} : vector<2x128xf32>, vector<128x128xf32>, vector<2x128xf32> -> vector<2x128xf32>
    %55 = arith.addf %50, %54 : vector<2x128xf32>
    %56 = vector.extract_strided_slice %14 {offsets = [16, 0], sizes = [2, 128], strides = [1, 1]} : vector<24x128xf32> to vector<2x128xf32>
    %c8 = arith.constant 8 : index
    %c0_32 = arith.constant 0 : index
    %c0_33 = arith.constant 0 : index
    %57 = vector.load %arg3[%c8, %c0_32, %c0_33] : memref<9x128x128xf32, #tpu.memory_space<vmem>>, vector<1x128x128xf32>
    %58 = vector.shape_cast %57 : vector<1x128x128xf32> to vector<128x128xf32>
    %cst_34 = arith.constant dense<0.000000e+00> : vector<2x128xf32>
    %59 = tpu.matmul %56, %58, %cst_34 {dimension_numbers = #tpu.dot_dimension_numbers<[1], [0], [0], [1], [0, 0, 1, 1], [], []>} : vector<2x128xf32>, vector<128x128xf32>, vector<2x128xf32> -> vector<2x128xf32>
    %60 = arith.addf %55, %59 : vector<2x128xf32>
    %c0_35 = arith.constant 0 : index
    %c0_36 = arith.constant 0 : index
    %61 = vector.load %arg4[%c0_35, %c0_36] : memref<1x128xf32, #tpu.memory_space<vmem>>, vector<1x128xf32>
    %62 = vector.broadcast %61 : vector<1x128xf32> to vector<2x128xf32>
    %63 = arith.addf %60, %62 : vector<2x128xf32>
    %c0_37 = arith.constant 0 : index
    %c0_38 = arith.constant 0 : index
    %64 = vector.load %arg5[%c0_37, %c0_38] : memref<2x128xf32, #tpu.memory_space<vmem>>, vector<2x128xf32>
    tpu.vector_store %arg5[%c0_37, %c0_38], %63 {strides = array<i32>} : memref<2x128xf32, #tpu.memory_space<vmem>>, vector<2x128xf32>,
    return
  }
}

</mosaic_0001>

<llo_original>
// kernel: cnn2_forward.3
$region0: #{cnn2_forward.3}
  #allocation0 [shape = 'u32[]', space=smem, size = 0x4, offset = 0x4, fixed_abs, tag = 'smem constant byte address 0x4 - core index']
  #allocation1 [shape = 'u32[144,128]{1,0:T(1,128)}', space=vmem, size = 0x12000, scoped, tag = 'internal scratch']
  %s0 = inlined_call_operand.vmem [shape: bf16[1568,25], index: 0, kind: input, shape index: {}]
  %s1 = inlined_call_operand.vmem [shape: bf16[25,128], index: 1, kind: input, shape index: {}]
  %s2 = inlined_call_operand.vmem [shape: f32[1,128], index: 2, kind: input, shape index: {}]
  %s3 = inlined_call_operand.vmem [shape: f32[392,128], index: 3, kind: output, shape index: {}]
  %s4 = sld [smem:[#allocation0]]
  $region22: #{cnn2_forward.3} parent=0
    _
  %s6 = ssub.s32 1, %s4
  %s7 = scalar_select 0, %s6, %s4
  // Predicated region
  $region2: #{cnn2_forward.3} parent=0 // pred_check
    _
  $region3: #{cnn2_forward.3} parent=0 // pred_check_branch
    %9 = sbr.rel (0) target = $region5
  $region4: #{cnn2_forward.3} parent=0 // pred_region
    _
  $region5: #{cnn2_forward.3} parent=0 // pred_fallthru
    _
  // Predicated region
  $region6: #{cnn2_forward.3} parent=0 // pred_check
    _
  $region7: #{cnn2_forward.3} parent=0 // pred_check_branch
    %11 = sbr.rel (0) target = $region9
  $region8: #{cnn2_forward.3} parent=0 // pred_region
    _
  $region9: #{cnn2_forward.3} parent=0 // pred_fallthru
    _
  // Predicated region
  $region10: #{cnn2_forward.3} parent=0 // pred_check
    _
  $region11: #{cnn2_forward.3} parent=0 // pred_check_branch
    %13 = sbr.rel (0) target = $region13
  $region12: #{cnn2_forward.3} parent=0 // pred_region
    _
  $region13: #{cnn2_forward.3} parent=0 // pred_fallthru
    _
  %v15 = vld [vmem:[%s0] sm:$0xf]
  %v16 = vld [vmem:[%s0 + $0x4] sm:$0xf]
  %v17 = vld [vmem:[%s0 + $0x8] sm:$0xf]
  %v18 = vld [vmem:[%s0 + $0xc] sm:$0xf]
  %v19 = vld [vmem:[%s0 + $0x10] sm:$0xf]
  %v20 = vld [vmem:[%s0 + $0x14] sm:$0xf]
  %v21 = vld [vmem:[%s0 + $0x18] sm:$0xf]
  %v22 = vld [vmem:[%s0 + $0x1c] sm:$0xf]
  %v23 = vld [vmem:[%s0 + $0x20] sm:$0xf]
  %v24 = vld [vmem:[%s0 + $0x24] sm:$0xf]
  %v25 = vld [vmem:[%s0 + $0x28] sm:$0xf]
  %v26 = vld [vmem:[%s0 + $0x2c] sm:$0xf]
  %v27 = vld [vmem:[%s0 + $0x30] sm:$0xf]
  %v28 = vld [vmem:[%s0 + $0x34] sm:$0xf]
  %v29 = vld [vmem:[%s0 + $0x38] sm:$0xf]
  %v30 = vld [vmem:[%s0 + $0x3c] sm:$0xf]
  %v31 = vld [vmem:[%s0 + $0x40] sm:$0xf]
  %v32 = vld [vmem:[%s0 + $0x44] sm:$0xf]
  %v33 = vld [vmem:[%s0 + $0x48] sm:$0xf]
  %v34 = vld [vmem:[%s0 + $0x4c] sm:$0xf]
  %v35 = vld [vmem:[%s0 + $0x50] sm:$0xf]
  %v36 = vld [vmem:[%s0 + $0x54] sm:$0xf]
  %v37 = vld [vmem:[%s0 + $0x58] sm:$0xf]
  %v38 = vld [vmem:[%s0 + $0x5c] sm:$0xf]
  %v39 = vld [vmem:[%s0 + $0x60] sm:$0xf]
  %v40 = vld [vmem:[%s0 + $0x64] sm:$0xf]
  %v41 = vld [vmem:[%s0 + $0x68] sm:$0xf]
  %v42 = vld [vmem:[%s0 + $0x6c] sm:$0xf]
  %v43 = vld [vmem:[%s0 + $0x70] sm:$0xf]
  %v44 = vld [vmem:[%s0 + $0x74] sm:$0xf]
  %v45 = vld [vmem:[%s0 + $0x78] sm:$0xf]
  %v46 = vld [vmem:[%s0 + $0x7c] sm:$0xf]
  %v47 = vld [vmem:[%s0 + $0x80] sm:$0xf]
  %v48 = vld [vmem:[%s0 + $0x84] sm:$0xf]
  %v49 = vld [vmem:[%s0 + $0x88] sm:$0xf]
  %v50 = vld [vmem:[%s0 + $0x8c] sm:$0xf]
  %v51 = vld [vmem:[%s0 + $0x90] sm:$0xf]
  %v52 = vld [vmem:[%s0 + $0x94] sm:$0xf]
  %v53 = vld [vmem:[%s0 + $0x98] sm:$0xf]
  %v54 = vld [vmem:[%s0 + $0x9c] sm:$0xf]
  %v55 = vld [vmem:[%s0 + $0xa0] sm:$0xf]
  %v56 = vld [vmem:[%s0 + $0xa4] sm:$0xf]
  %v57 = vld [vmem:[%s0 + $0xa8] sm:$0xf]
  %v58 = vld [vmem:[%s0 + $0xac] sm:$0xf]
  %v59 = vld [vmem:[%s0 + $0xb0] sm:$0xf]
  %v60 = vld [vmem:[%s0 + $0xb4] sm:$0xf]
  %v61 = vld [vmem:[%s0 + $0xb8] sm:$0xf]
  %v62 = vld [vmem:[%s0 + $0xbc] sm:$0xf]
  %v63 = vld [vmem:[%s0 + $0xc0] sm:$0xf]
  %v64 = vld [vmem:[%s0 + $0xc4] sm:$0xf]
  %v65 = vld [vmem:[%s0 + $0xc8] sm:$0xf]
  %v66 = vld [vmem:[%s0 + $0xcc] sm:$0xf]
  %v67 = vld [vmem:[%s0 + $0xd0] sm:$0xf]
  %v68 = vld [vmem:[%s0 + $0xd4] sm:$0xf]
  %v69 = vld [vmem:[%s0 + $0xd8] sm:$0xf]
  %v70 = vld [vmem:[%s0 + $0xdc] sm:$0xf]
  %v71 = vld [vmem:[%s0 + $0xe0] sm:$0xf]
  %v72 = vld [vmem:[%s0 + $0xe4] sm:$0xf]
  %v73 = vld [vmem:[%s0 + $0xe8] sm:$0xf]
  %v74 = vld [vmem:[%s0 + $0xec] sm:$0xf]
  %v75 = vld [vmem:[%s0 + $0xf0] sm:$0xf]
  %v76 = vld [vmem:[%s0 + $0xf4] sm:$0xf]
  %v77 = vld [vmem:[%s0 + $0xf8] sm:$0xf]
  %v78 = vld [vmem:[%s0 + $0xfc] sm:$0xf]
  %v79 = vld [vmem:[%s0 + $0x100] sm:$0xf]
  %v80 = vld [vmem:[%s0 + $0x104] sm:$0xf]
  %v81 = vld [vmem:[%s0 + $0x108] sm:$0xf]
  %v82 = vld [vmem:[%s0 + $0x10c] sm:$0xf]
  %v83 = vld [vmem:[%s0 + $0x110] sm:$0xf]
  %v84 = vld [vmem:[%s0 + $0x114] sm:$0xf]
  %v85 = vld [vmem:[%s0 + $0x118] sm:$0xf]
  %v86 = vld [vmem:[%s0 + $0x11c] sm:$0xf]
  %v87 = vld [vmem:[%s0 + $0x120] sm:$0xf]
  %v88 = vld [vmem:[%s0 + $0x124] sm:$0xf]
  %v89 = vld [vmem:[%s0 + $0x128] sm:$0xf]
  %v90 = vld [vmem:[%s0 + $0x12c] sm:$0xf]
  %v91 = vld [vmem:[%s0 + $0x130] sm:$0xf]
  %v92 = vld [vmem:[%s0 + $0x134] sm:$0xf]
  %v93 = vld [vmem:[%s0 + $0x138] sm:$0xf]
  %v94 = vld [vmem:[%s0 + $0x13c] sm:$0xf]
  %v95 = vld [vmem:[%s0 + $0x140] sm:$0xf]
  %v96 = vld [vmem:[%s0 + $0x144] sm:$0xf]
  %v97 = vld [vmem:[%s0 + $0x148] sm:$0xf]
  %v98 = vld [vmem:[%s0 + $0x14c] sm:$0xf]
  %v99 = vld [vmem:[%s0 + $0x150] sm:$0xf]
  %v100 = vld [vmem:[%s0 + $0x154] sm:$0xf]
  %v101 = vld [vmem:[%s0 + $0x158] sm:$0xf]
  %v102 = vld [vmem:[%s0 + $0x15c] sm:$0xf]
  %v103 = vld [vmem:[%s0 + $0x160] sm:$0xf]
  %v104 = vld [vmem:[%s0 + $0x164] sm:$0xf]
  %v105 = vld [vmem:[%s0 + $0x168] sm:$0xf]
  %v106 = vld [vmem:[%s0 + $0x16c] sm:$0xf]
  %v107 = vld [vmem:[%s0 + $0x170] sm:$0xf]
  %v108 = vld [vmem:[%s0 + $0x174] sm:$0xf]
  %v109 = vld [vmem:[%s0 + $0x178] sm:$0xf]
  %v110 = vld [vmem:[%s0 + $0x17c] sm:$0xf]
  %v111 = vld [vmem:[%s0 + $0x180] sm:$0xf]
  %v112 = vld [vmem:[%s0 + $0x184] sm:$0xf]
  %v113 = vld [vmem:[%s0 + $0x188] sm:$0xf]
  %v114 = vld [vmem:[%s0 + $0x18c] sm:$0xf]
  %v115 = vld [vmem:[%s0 + $0x190] sm:$0xf]
  %v116 = vld [vmem:[%s0 + $0x194] sm:$0xf]
  %v117 = vld [vmem:[%s0 + $0x198] sm:$0xf]
  %v118 = vld [vmem:[%s0 + $0x19c] sm:$0xf]
  %v119 = vld [vmem:[%s0 + $0x1a0] sm:$0xf]
  %v120 = vld [vmem:[%s0 + $0x1a4] sm:$0xf]
  %v121 = vld [vmem:[%s0 + $0x1a8] sm:$0xf]
  %v122 = vld [vmem:[%s0 + $0x1ac] sm:$0xf]
  %v123 = vld [vmem:[%s0 + $0x1b0] sm:$0xf]
  %v124 = vld [vmem:[%s0 + $0x1b4] sm:$0xf]
  %v125 = vld [vmem:[%s0 + $0x1b8] sm:$0xf]
  %v126 = vld [vmem:[%s0 + $0x1bc] sm:$0xf]
  %v127 = vld [vmem:[%s0 + $0x1c0] sm:$0xf]
  %v128 = vld [vmem:[%s0 + $0x1c4] sm:$0xf]
  %v129 = vld [vmem:[%s0 + $0x1c8] sm:$0xf]
  %v130 = vld [vmem:[%s0 + $0x1cc] sm:$0xf]
  %v131 = vld [vmem:[%s0 + $0x1d0] sm:$0xf]
  %v132 = vld [vmem:[%s0 + $0x1d4] sm:$0xf]
  %v133 = vld [vmem:[%s0 + $0x1d8] sm:$0xf]
  %v134 = vld [vmem:[%s0 + $0x1dc] sm:$0xf]
  %v135 = vld [vmem:[%s0 + $0x1e0] sm:$0xf]
  %v136 = vld [vmem:[%s0 + $0x1e4] sm:$0xf]
  %v137 = vld [vmem:[%s0 + $0x1e8] sm:$0xf]
  %v138 = vld [vmem:[%s0 + $0x1ec] sm:$0xf]
  %v139 = vld [vmem:[%s0 + $0x1f0] sm:$0xf]
  %v140 = vld [vmem:[%s0 + $0x1f4] sm:$0xf]
  %v141 = vld [vmem:[%s0 + $0x1f8] sm:$0xf]
  %v142 = vld [vmem:[%s0 + $0x1fc] sm:$0xf]
  %v143 = vld [vmem:[%s0 + $0x200] sm:$0xf]
  %v144 = vld [vmem:[%s0 + $0x204] sm:$0xf]
  %v145 = vld [vmem:[%s0 + $0x208] sm:$0xf]
  %v146 = vld [vmem:[%s0 + $0x20c] sm:$0xf]
  %v147 = vld [vmem:[%s0 + $0x210] sm:$0xf]
  %v148 = vld [vmem:[%s0 + $0x214] sm:$0xf]
  %v149 = vld [vmem:[%s0 + $0x218] sm:$0xf]
  %v150 = vld [vmem:[%s0 + $0x21c] sm:$0xf]
  %v151 = vld [vmem:[%s0 + $0x220] sm:$0xf]
  %v152 = vld [vmem:[%s0 + $0x224] sm:$0xf]
  %v153 = vld [vmem:[%s0 + $0x228] sm:$0xf]
  %v154 = vld [vmem:[%s0 + $0x22c] sm:$0xf]
  %v155 = vld [vmem:[%s0 + $0x230] sm:$0xf]
  %v156 = vld [vmem:[%s0 + $0x234] sm:$0xf]
  %v157 = vld [vmem:[%s0 + $0x238] sm:$0xf]
  %v158 = vld [vmem:[%s0 + $0x23c] sm:$0xf]
  %v159 = vld [vmem:[%s0 + $0x240] sm:$0xf]
  %v160 = vld [vmem:[%s0 + $0x244] sm:$0xf]
  %v161 = vld [vmem:[%s0 + $0x248] sm:$0xf]
  %v162 = vld [vmem:[%s0 + $0x24c] sm:$0xf]
  %v163 = vld [vmem:[%s0 + $0x250] sm:$0xf]
  %v164 = vld [vmem:[%s0 + $0x254] sm:$0xf]
  %v165 = vld [vmem:[%s0 + $0x258] sm:$0xf]
  %v166 = vld [vmem:[%s0 + $0x25c] sm:$0xf]
  %v167 = vld [vmem:[%s0 + $0x260] sm:$0xf]
  %v168 = vld [vmem:[%s0 + $0x264] sm:$0xf]
  %v169 = vld [vmem:[%s0 + $0x268] sm:$0xf]
  %v170 = vld [vmem:[%s0 + $0x26c] sm:$0xf]
  %v171 = vld [vmem:[%s0 + $0x270] sm:$0xf]
  %v172 = vld [vmem:[%s0 + $0x274] sm:$0xf]
  %v173 = vld [vmem:[%s0 + $0x278] sm:$0xf]
  %v174 = vld [vmem:[%s0 + $0x27c] sm:$0xf]
  %v175 = vld [vmem:[%s0 + $0x280] sm:$0xf]
  %v176 = vld [vmem:[%s0 + $0x284] sm:$0xf]
  %v177 = vld [vmem:[%s0 + $0x288] sm:$0xf]
  %v178 = vld [vmem:[%s0 + $0x28c] sm:$0xf]
  %v179 = vld [vmem:[%s0 + $0x290] sm:$0xf]
  %v180 = vld [vmem:[%s0 + $0x294] sm:$0xf]
  %v181 = vld [vmem:[%s0 + $0x298] sm:$0xf]
  %v182 = vld [vmem:[%s0 + $0x29c] sm:$0xf]
  %v183 = vld [vmem:[%s0 + $0x2a0] sm:$0xf]
  %v184 = vld [vmem:[%s0 + $0x2a4] sm:$0xf]
  %v185 = vld [vmem:[%s0 + $0x2a8] sm:$0xf]
  %v186 = vld [vmem:[%s0 + $0x2ac] sm:$0xf]
  %v187 = vld [vmem:[%s0 + $0x2b0] sm:$0xf]
  %v188 = vld [vmem:[%s0 + $0x2b4] sm:$0xf]
  %v189 = vld [vmem:[%s0 + $0x2b8] sm:$0xf]
  %v190 = vld [vmem:[%s0 + $0x2bc] sm:$0xf]
  %v191 = vld [vmem:[%s0 + $0x2c0] sm:$0xf]
  %v192 = vld [vmem:[%s0 + $0x2c4] sm:$0xf]
  %v193 = vld [vmem:[%s0 + $0x2c8] sm:$0xf]
  %v194 = vld [vmem:[%s0 + $0x2cc] sm:$0xf]
  %v195 = vld [vmem:[%s0 + $0x2d0] sm:$0xf]
  %v196 = vld [vmem:[%s0 + $0x2d4] sm:$0xf]
  %v197 = vld [vmem:[%s0 + $0x2d8] sm:$0xf]
  %v198 = vld [vmem:[%s0 + $0x2dc] sm:$0xf]
  %v199 = vld [vmem:[%s0 + $0x2e0] sm:$0xf]
  %v200 = vld [vmem:[%s0 + $0x2e4] sm:$0xf]
  %v201 = vld [vmem:[%s0 + $0x2e8] sm:$0xf]
  %v202 = vld [vmem:[%s0 + $0x2ec] sm:$0xf]
  %v203 = vld [vmem:[%s0 + $0x2f0] sm:$0xf]
  %v204 = vld [vmem:[%s0 + $0x2f4] sm:$0xf]
  %v205 = vld [vmem:[%s0 + $0x2f8] sm:$0xf]
  %v206 = vld [vmem:[%s0 + $0x2fc] sm:$0xf]
  %v207 = vld [vmem:[%s0 + $0x300] sm:$0xf]
  %v208 = vld [vmem:[%s0 + $0x304] sm:$0xf]
  %v209 = vld [vmem:[%s0 + $0x308] sm:$0xf]
  %v210 = vld [vmem:[%s0 + $0x30c] sm:$0xf]
  %v211 = vld [vmem:[%s1] sm:$0xf]
  %v212 = vld [vmem:[%s1 + $0x4] sm:$0xf]
  %v213 = vld [vmem:[%s1 + $0x8] sm:$0xf]
  %v214 = vld [vmem:[%s1 + $0xc] sm:$0x1]
  %v411 = vunpack.c.l.b16 %v15
  %v412 = vunpack.c.l.b16 %v16
  %v413 = vunpack.c.l.b16 %v17
  %v414 = vunpack.c.l.b16 %v18
  %v415 = vunpack.c.l.b16 %v19
  %v416 = vunpack.c.l.b16 %v20
  %v417 = vunpack.c.l.b16 %v21
  %v418 = vunpack.c.l.b16 %v22
  %v419 = vunpack.c.l.b16 %v23
  %v420 = vunpack.c.l.b16 %v24
  %v421 = vunpack.c.l.b16 %v25
  %v422 = vunpack.c.l.b16 %v26
  %v423 = vunpack.c.l.b16 %v27
  %v424 = vunpack.c.l.b16 %v28
  %v425 = vunpack.c.l.b16 %v29
  %v426 = vunpack.c.l.b16 %v30
  %v427 = vunpack.c.l.b16 %v31
  %v428 = vunpack.c.l.b16 %v32
  %v429 = vunpack.c.l.b16 %v33
  %v430 = vunpack.c.l.b16 %v34
  %v431 = vunpack.c.l.b16 %v35
  %v432 = vunpack.c.l.b16 %v36
  %v433 = vunpack.c.l.b16 %v37
  %v434 = vunpack.c.l.b16 %v38
  %v435 = vunpack.c.l.b16 %v39
  %v436 = vunpack.c.l.b16 %v40
  %v437 = vunpack.c.l.b16 %v41
  %v438 = vunpack.c.l.b16 %v42
  %v439 = vunpack.c.l.b16 %v43
  %v440 = vunpack.c.l.b16 %v44
  %v441 = vunpack.c.l.b16 %v45
  %v442 = vunpack.c.l.b16 %v46
  %v443 = vunpack.c.l.b16 %v47
  %v444 = vunpack.c.l.b16 %v48
  %v445 = vunpack.c.l.b16 %v49
  %v446 = vunpack.c.l.b16 %v50
  %v447 = vunpack.c.l.b16 %v51
  %v448 = vunpack.c.l.b16 %v52
  %v449 = vunpack.c.l.b16 %v53
  %v450 = vunpack.c.l.b16 %v54
  %v451 = vunpack.c.l.b16 %v55
  %v452 = vunpack.c.l.b16 %v56
  %v453 = vunpack.c.l.b16 %v57
  %v454 = vunpack.c.l.b16 %v58
  %v455 = vunpack.c.l.b16 %v59
  %v456 = vunpack.c.l.b16 %v60
  %v457 = vunpack.c.l.b16 %v61
  %v458 = vunpack.c.l.b16 %v62
  %v459 = vunpack.c.l.b16 %v63
  %v460 = vunpack.c.l.b16 %v64
  %v461 = vunpack.c.l.b16 %v65
  %v462 = vunpack.c.l.b16 %v66
  %v463 = vunpack.c.l.b16 %v67
  %v464 = vunpack.c.l.b16 %v68
  %v465 = vunpack.c.l.b16 %v69
  %v466 = vunpack.c.l.b16 %v70
  %v467 = vunpack.c.l.b16 %v71
  %v468 = vunpack.c.l.b16 %v72
  %v469 = vunpack.c.l.b16 %v73
  %v470 = vunpack.c.l.b16 %v74
  %v471 = vunpack.c.l.b16 %v75
  %v472 = vunpack.c.l.b16 %v76
  %v473 = vunpack.c.l.b16 %v77
  %v474 = vunpack.c.l.b16 %v78
  %v475 = vunpack.c.l.b16 %v79
  %v476 = vunpack.c.l.b16 %v80
  %v477 = vunpack.c.l.b16 %v81
  %v478 = vunpack.c.l.b16 %v82
  %v479 = vunpack.c.l.b16 %v83
  %v480 = vunpack.c.l.b16 %v84
  %v481 = vunpack.c.l.b16 %v85
  %v482 = vunpack.c.l.b16 %v86
  %v483 = vunpack.c.l.b16 %v87
  %v484 = vunpack.c.l.b16 %v88
  %v485 = vunpack.c.l.b16 %v89
  %v486 = vunpack.c.l.b16 %v90
  %v487 = vunpack.c.l.b16 %v91
  %v488 = vunpack.c.l.b16 %v92
  %v489 = vunpack.c.l.b16 %v93
  %v490 = vunpack.c.l.b16 %v94
  %v491 = vunpack.c.l.b16 %v95
  %v492 = vunpack.c.l.b16 %v96
  %v493 = vunpack.c.l.b16 %v97
  %v494 = vunpack.c.l.b16 %v98
  %v495 = vunpack.c.l.b16 %v99
  %v496 = vunpack.c.l.b16 %v100
  %v497 = vunpack.c.l.b16 %v101
  %v498 = vunpack.c.l.b16 %v102
  %v499 = vunpack.c.l.b16 %v103
  %v500 = vunpack.c.l.b16 %v104
  %v501 = vunpack.c.l.b16 %v105
  %v502 = vunpack.c.l.b16 %v106
  %v503 = vunpack.c.l.b16 %v107
  %v504 = vunpack.c.l.b16 %v108
  %v505 = vunpack.c.l.b16 %v109
  %v506 = vunpack.c.l.b16 %v110
  %v507 = vunpack.c.l.b16 %v111
  %v508 = vunpack.c.l.b16 %v112
  %v509 = vunpack.c.l.b16 %v113
  %v510 = vunpack.c.l.b16 %v114
  %v511 = vunpack.c.l.b16 %v115
  %v512 = vunpack.c.l.b16 %v116
  %v513 = vunpack.c.l.b16 %v117
  %v514 = vunpack.c.l.b16 %v118
  %v515 = vunpack.c.l.b16 %v119
  %v516 = vunpack.c.l.b16 %v120
  %v517 = vunpack.c.l.b16 %v121
  %v518 = vunpack.c.l.b16 %v122
  %v519 = vunpack.c.l.b16 %v123
  %v520 = vunpack.c.l.b16 %v124
  %v521 = vunpack.c.l.b16 %v125
  %v522 = vunpack.c.l.b16 %v126
  %v523 = vunpack.c.l.b16 %v127
  %v524 = vunpack.c.l.b16 %v128
  %v525 = vunpack.c.l.b16 %v129
  %v526 = vunpack.c.l.b16 %v130
  %v527 = vunpack.c.l.b16 %v131
  %v528 = vunpack.c.l.b16 %v132
  %v529 = vunpack.c.l.b16 %v133
  %v530 = vunpack.c.l.b16 %v134
  %v531 = vunpack.c.l.b16 %v135
  %v532 = vunpack.c.l.b16 %v136
  %v533 = vunpack.c.l.b16 %v137
  %v534 = vunpack.c.l.b16 %v138
  %v535 = vunpack.c.l.b16 %v139
  %v536 = vunpack.c.l.b16 %v140
  %v537 = vunpack.c.l.b16 %v141
  %v538 = vunpack.c.l.b16 %v142
  %v539 = vunpack.c.l.b16 %v143
  %v540 = vunpack.c.l.b16 %v144
  %v541 = vunpack.c.l.b16 %v145
  %v542 = vunpack.c.l.b16 %v146
  %v543 = vunpack.c.l.b16 %v147
  %v544 = vunpack.c.l.b16 %v148
  %v545 = vunpack.c.l.b16 %v149
  %v546 = vunpack.c.l.b16 %v150
  %v547 = vunpack.c.l.b16 %v151
  %v548 = vunpack.c.l.b16 %v152
  %v549 = vunpack.c.l.b16 %v153
  %v550 = vunpack.c.l.b16 %v154
  %v551 = vunpack.c.l.b16 %v155
  %v552 = vunpack.c.l.b16 %v156
  %v553 = vunpack.c.l.b16 %v157
  %v554 = vunpack.c.l.b16 %v158
  %v555 = vunpack.c.l.b16 %v159
  %v556 = vunpack.c.l.b16 %v160
  %v557 = vunpack.c.l.b16 %v161
  %v558 = vunpack.c.l.b16 %v162
  %v559 = vunpack.c.l.b16 %v163
  %v560 = vunpack.c.l.b16 %v164
  %v561 = vunpack.c.l.b16 %v165
  %v562 = vunpack.c.l.b16 %v166
  %v563 = vunpack.c.l.b16 %v167
  %v564 = vunpack.c.l.b16 %v168
  %v565 = vunpack.c.l.b16 %v169
  %v566 = vunpack.c.l.b16 %v170
  %v567 = vunpack.c.l.b16 %v171
  %v568 = vunpack.c.l.b16 %v172
  %v569 = vunpack.c.l.b16 %v173
  %v570 = vunpack.c.l.b16 %v174
  %v571 = vunpack.c.l.b16 %v175
  %v572 = vunpack.c.l.b16 %v176
  %v573 = vunpack.c.l.b16 %v177
  %v574 = vunpack.c.l.b16 %v178
  %v575 = vunpack.c.l.b16 %v179
  %v576 = vunpack.c.l.b16 %v180
  %v577 = vunpack.c.l.b16 %v181
  %v578 = vunpack.c.l.b16 %v182
  %v579 = vunpack.c.l.b16 %v183
  %v580 = vunpack.c.l.b16 %v184
  %v581 = vunpack.c.l.b16 %v185
  %v582 = vunpack.c.l.b16 %v186
  %v583 = vunpack.c.l.b16 %v187
  %v584 = vunpack.c.l.b16 %v188
  %v585 = vunpack.c.l.b16 %v189
  %v586 = vunpack.c.l.b16 %v190
  %v587 = vunpack.c.l.b16 %v191
  %v588 = vunpack.c.l.b16 %v192
  %v589 = vunpack.c.l.b16 %v193
  %v590 = vunpack.c.l.b16 %v194
  %v591 = vunpack.c.l.b16 %v195
  %v592 = vunpack.c.l.b16 %v196
  %v593 = vunpack.c.l.b16 %v197
  %v594 = vunpack.c.l.b16 %v198
  %v595 = vunpack.c.l.b16 %v199
  %v596 = vunpack.c.l.b16 %v200
  %v597 = vunpack.c.l.b16 %v201
  %v598 = vunpack.c.l.b16 %v202
  %v599 = vunpack.c.l.b16 %v203
  %v600 = vunpack.c.l.b16 %v204
  %v601 = vunpack.c.l.b16 %v205
  %v602 = vunpack.c.l.b16 %v206
  %v603 = vunpack.c.l.b16 %v207
  %v604 = vunpack.c.l.b16 %v208
  %v605 = vunpack.c.l.b16 %v209
  %v606 = vunpack.c.l.b16 %v210
  %v607 = vpack.c.b16 %v412, %v411
  %v608 = vpack.c.b16 %v414, %v413
  %v609 = vpack.c.b16 %v416, %v415
  %v610 = vpack.c.b16 %v418, %v417
  %v611 = vpack.c.b16 %v420, %v419
  %v612 = vpack.c.b16 %v422, %v421
  %v613 = vpack.c.b16 %v424, %v423
  %v614 = vpack.c.b16 %v426, %v425
  %v615 = vpack.c.b16 %v428, %v427
  %v616 = vpack.c.b16 %v430, %v429
  %v617 = vpack.c.b16 %v432, %v431
  %v618 = vpack.c.b16 %v434, %v433
  %v619 = vpack.c.b16 %v436, %v435
  %v620 = vpack.c.b16 %v438, %v437
  %v621 = vpack.c.b16 %v440, %v439
  %v622 = vpack.c.b16 %v442, %v441
  %v623 = vpack.c.b16 %v444, %v443
  %v624 = vpack.c.b16 %v446, %v445
  %v625 = vpack.c.b16 %v448, %v447
  %v626 = vpack.c.b16 %v450, %v449
  %v627 = vpack.c.b16 %v452, %v451
  %v628 = vpack.c.b16 %v454, %v453
  %v629 = vpack.c.b16 %v456, %v455
  %v630 = vpack.c.b16 %v458, %v457
  %v631 = vpack.c.b16 %v460, %v459
  %v632 = vpack.c.b16 %v462, %v461
  %v633 = vpack.c.b16 %v464, %v463
  %v634 = vpack.c.b16 %v466, %v465
  %v635 = vpack.c.b16 %v468, %v467
  %v636 = vpack.c.b16 %v470, %v469
  %v637 = vpack.c.b16 %v472, %v471
  %v638 = vpack.c.b16 %v474, %v473
  %v639 = vpack.c.b16 %v476, %v475
  %v640 = vpack.c.b16 %v478, %v477
  %v641 = vpack.c.b16 %v480, %v479
  %v642 = vpack.c.b16 %v482, %v481
  %v643 = vpack.c.b16 %v484, %v483
  %v644 = vpack.c.b16 %v486, %v485
  %v645 = vpack.c.b16 %v488, %v487
  %v646 = vpack.c.b16 %v490, %v489
  %v647 = vpack.c.b16 %v492, %v491
  %v648 = vpack.c.b16 %v494, %v493
  %v649 = vpack.c.b16 %v496, %v495
  %v650 = vpack.c.b16 %v498, %v497
  %v651 = vpack.c.b16 %v500, %v499
  %v652 = vpack.c.b16 %v502, %v501
  %v653 = vpack.c.b16 %v504, %v503
  %v654 = vpack.c.b16 %v506, %v505
  %v655 = vpack.c.b16 %v508, %v507
  %v656 = vpack.c.b16 %v510, %v509
  %v657 = vpack.c.b16 %v512, %v511
  %v658 = vpack.c.b16 %v514, %v513
  %v659 = vpack.c.b16 %v516, %v515
  %v660 = vpack.c.b16 %v518, %v517
  %v661 = vpack.c.b16 %v520, %v519
  %v662 = vpack.c.b16 %v522, %v521
  %v663 = vpack.c.b16 %v524, %v523
  %v664 = vpack.c.b16 %v526, %v525
  %v665 = vpack.c.b16 %v528, %v527
  %v666 = vpack.c.b16 %v530, %v529
  %v667 = vpack.c.b16 %v532, %v531
  %v668 = vpack.c.b16 %v534, %v533
  %v669 = vpack.c.b16 %v536, %v535
  %v670 = vpack.c.b16 %v538, %v537
  %v671 = vpack.c.b16 %v540, %v539
  %v672 = vpack.c.b16 %v542, %v541
  %v673 = vpack.c.b16 %v544, %v543
  %v674 = vpack.c.b16 %v546, %v545
  %v675 = vpack.c.b16 %v548, %v547
  %v676 = vpack.c.b16 %v550, %v549
  %v677 = vpack.c.b16 %v552, %v551
  %v678 = vpack.c.b16 %v554, %v553
  %v679 = vpack.c.b16 %v556, %v555
  %v680 = vpack.c.b16 %v558, %v557
  %v681 = vpack.c.b16 %v560, %v559
  %v682 = vpack.c.b16 %v562, %v561
  %v683 = vpack.c.b16 %v564, %v563
  %v684 = vpack.c.b16 %v566, %v565
  %v685 = vpack.c.b16 %v568, %v567
  %v686 = vpack.c.b16 %v570, %v569
  %v687 = vpack.c.b16 %v572, %v571
  %v688 = vpack.c.b16 %v574, %v573
  %v689 = vpack.c.b16 %v576, %v575
  %v690 = vpack.c.b16 %v578, %v577
  %v691 = vpack.c.b16 %v580, %v579
  %v692 = vpack.c.b16 %v582, %v581
  %v693 = vpack.c.b16 %v584, %v583
  %v694 = vpack.c.b16 %v586, %v585
  %v695 = vpack.c.b16 %v588, %v587
  %v696 = vpack.c.b16 %v590, %v589
  %v697 = vpack.c.b16 %v592, %v591
  %v698 = vpack.c.b16 %v594, %v593
  %v699 = vpack.c.b16 %v596, %v595
  %v700 = vpack.c.b16 %v598, %v597
  %v701 = vpack.c.b16 %v600, %v599
  %v702 = vpack.c.b16 %v602, %v601
  %v703 = vpack.c.b16 %v604, %v603
  %v704 = vpack.c.b16 %v606, %v605
  %v709 = vunpack.c.l.b16 %v211
  %v710 = vunpack.c.l.b16 %v212
  %v711 = vunpack.c.l.b16 %v213
  %v712 = vunpack.c.l.b16 %v214
  %v713 = vpack.c.b16 %v710, %v709
  %v714 = vpack.c.b16 %v712, %v711
  %vm716 = vcmask 203776
  %v718 = vsel %vm716, %v607, 0
  %v721 = vsel %vm716, %v608, 0
  %v724 = vsel %vm716, %v609, 0
  %v727 = vsel %vm716, %v610, 0
  %v730 = vsel %vm716, %v611, 0
  %v733 = vsel %vm716, %v612, 0
  %v736 = vsel %vm716, %v613, 0
  %v739 = vsel %vm716, %v614, 0
  %v742 = vsel %vm716, %v615, 0
  %v745 = vsel %vm716, %v616, 0
  %v748 = vsel %vm716, %v617, 0
  %v751 = vsel %vm716, %v618, 0
  %v754 = vsel %vm716, %v619, 0
  %v757 = vsel %vm716, %v620, 0
  %v760 = vsel %vm716, %v621, 0
  %v763 = vsel %vm716, %v622, 0
  %v766 = vsel %vm716, %v623, 0
  %v769 = vsel %vm716, %v624, 0
  %v772 = vsel %vm716, %v625, 0
  %v775 = vsel %vm716, %v626, 0
  %v778 = vsel %vm716, %v627, 0
  %v781 = vsel %vm716, %v628, 0
  %v784 = vsel %vm716, %v629, 0
  %v787 = vsel %vm716, %v630, 0
  %v790 = vsel %vm716, %v631, 0
  %v793 = vsel %vm716, %v632, 0
  %v796 = vsel %vm716, %v633, 0
  %v799 = vsel %vm716, %v634, 0
  %v802 = vsel %vm716, %v635, 0
  %v805 = vsel %vm716, %v636, 0
  %v808 = vsel %vm716, %v637, 0
  %v811 = vsel %vm716, %v638, 0
  %v814 = vsel %vm716, %v639, 0
  %v817 = vsel %vm716, %v640, 0
  %v820 = vsel %vm716, %v641, 0
  %v823 = vsel %vm716, %v642, 0
  %v826 = vsel %vm716, %v643, 0
  %v829 = vsel %vm716, %v644, 0
  %v832 = vsel %vm716, %v645, 0
  %v835 = vsel %vm716, %v646, 0
  %v838 = vsel %vm716, %v647, 0
  %v841 = vsel %vm716, %v648, 0
  %v844 = vsel %vm716, %v649, 0
  %v847 = vsel %vm716, %v650, 0
  %v850 = vsel %vm716, %v651, 0
  %v853 = vsel %vm716, %v652, 0
  %v856 = vsel %vm716, %v653, 0
  %v859 = vsel %vm716, %v654, 0
  %v862 = vsel %vm716, %v655, 0
  %v865 = vsel %vm716, %v656, 0
  %v868 = vsel %vm716, %v657, 0
  %v871 = vsel %vm716, %v658, 0
  %v874 = vsel %vm716, %v659, 0
  %v877 = vsel %vm716, %v660, 0
  %v880 = vsel %vm716, %v661, 0
  %v883 = vsel %vm716, %v662, 0
  %v886 = vsel %vm716, %v663, 0
  %v889 = vsel %vm716, %v664, 0
  %v892 = vsel %vm716, %v665, 0
  %v895 = vsel %vm716, %v666, 0
  %v898 = vsel %vm716, %v667, 0
  %v901 = vsel %vm716, %v668, 0
  %v904 = vsel %vm716, %v669, 0
  %v907 = vsel %vm716, %v670, 0
  %v910 = vsel %vm716, %v671, 0
  %v913 = vsel %vm716, %v672, 0
  %v916 = vsel %vm716, %v673, 0
  %v919 = vsel %vm716, %v674, 0
  %v922 = vsel %vm716, %v675, 0
  %v925 = vsel %vm716, %v676, 0
  %v928 = vsel %vm716, %v677, 0
  %v931 = vsel %vm716, %v678, 0
  %v934 = vsel %vm716, %v679, 0
  %v937 = vsel %vm716, %v680, 0
  %v940 = vsel %vm716, %v681, 0
  %v943 = vsel %vm716, %v682, 0
  %v946 = vsel %vm716, %v683, 0
  %v949 = vsel %vm716, %v684, 0
  %v952 = vsel %vm716, %v685, 0
  %v955 = vsel %vm716, %v686, 0
  %v958 = vsel %vm716, %v687, 0
  %v961 = vsel %vm716, %v688, 0
  %v964 = vsel %vm716, %v689, 0
  %v967 = vsel %vm716, %v690, 0
  %v970 = vsel %vm716, %v691, 0
  %v973 = vsel %vm716, %v692, 0
  %v976 = vsel %vm716, %v693, 0
  %v979 = vsel %vm716, %v694, 0
  %v982 = vsel %vm716, %v695, 0
  %v985 = vsel %vm716, %v696, 0
  %v988 = vsel %vm716, %v697, 0
  %v991 = vsel %vm716, %v698, 0
  %v994 = vsel %vm716, %v699, 0
  %v997 = vsel %vm716, %v700, 0
  %v1000 = vsel %vm716, %v701, 0
  %v1003 = vsel %vm716, %v702, 0
  %v1006 = vsel %vm716, %v703, 0
  %v1009 = vsel %vm716, %v704, 0
  %vm1011 = vcmask 1043456
  %vm1012 = vcmask 1044480
  %v1013 = vsel %vm1011, 4294967295, 65535
  %v1014 = vsel %vm1012, %v1013, 0
  %v1016 = vand.u32 %v714, %v1014
  %1018 = vmatprep.subr.bf16.mxu0 0
  %1019 = vmatpush1.bf16.msra.mxu0 %v713
  %1020 = vmatprep.subr.bf16.mxu0 0
  %1021 = vmatpush1.bf16.msra.mxu0 %v1016
  %1022 = vmatprep.subr.bf16.mxu0 0
  %1023 = vmatpush1.bf16.msra.mxu0 0
  %1024 = vmatprep.subr.bf16.mxu0 0
  %1025 = vmatpush1.bf16.msra.mxu0 0
  %1026 = vmatprep.subr.bf16.mxu0 0
  %1027 = vmatpush1.bf16.msra.mxu0 0
  %1028 = vmatprep.subr.bf16.mxu0 0
  %1029 = vmatpush1.bf16.msra.mxu0 0
  %1030 = vmatprep.subr.bf16.mxu0 0
  %1031 = vmatpush1.bf16.msra.mxu0 0
  %1032 = vmatprep.subr.bf16.mxu0 0
  %1033 = vmatpush1.bf16.msra.mxu0 0
  %1034 = vmatprep.subr.bf16.mxu0 0
  %1035 = vmatpush1.bf16.msra.mxu0 0
  %1036 = vmatprep.subr.bf16.mxu0 0
  %1037 = vmatpush1.bf16.msra.mxu0 0
  %1038 = vmatprep.subr.bf16.mxu0 0
  %1039 = vmatpush1.bf16.msra.mxu0 0
  %1040 = vmatprep.subr.bf16.mxu0 0
  %1041 = vmatpush1.bf16.msra.mxu0 0
  %1042 = vmatprep.subr.bf16.mxu0 0
  %1043 = vmatpush1.bf16.msra.mxu0 0
  %1044 = vmatprep.subr.bf16.mxu0 0
  %1045 = vmatpush1.bf16.msra.mxu0 0
  %1046 = vmatprep.subr.bf16.mxu0 0
  %1047 = vmatpush1.bf16.msra.mxu0 0
  %1048 = vmatprep.subr.bf16.mxu0 0
  %1049 = vmatpush1.bf16.msra.mxu0 0
  %1050 = vmatprep.mubr.bf16.mxu0 0
  %1051 = vmatmul.mubr.bf16.gmra.mrb[0].mxu0 %v718
  %v1052 = vpop.f32.mrb[0].mxu0
  %v1053 = vadd.f32 0.0, %v1052
  %v1054 = vpop.f32.mrb[0].mxu0
  %v1055 = vpop.f32.mrb[0].mxu0
  %v1056 = vadd.f32 0.0, %v1055
  %v1057 = vpop.f32.mrb[0].mxu0
  %1058 = vmatprep.mubr.bf16.mxu0 0
  %1059 = vmatmul.mubr.bf16.gmra.mrb[0].mxu0 %v721
  %v1060 = vpop.f32.mrb[0].mxu0
  %v1061 = vadd.f32 0.0, %v1060
  %v1062 = vpop.f32.mrb[0].mxu0
  %v1063 = vpop.f32.mrb[0].mxu0
  %v1064 = vadd.f32 0.0, %v1063
  %v1065 = vpop.f32.mrb[0].mxu0
  %1066 = vmatprep.mubr.bf16.mxu0 0
  %1067 = vmatmul.mubr.bf16.gmra.mrb[0].mxu0 %v724
  %v1068 = vpop.f32.mrb[0].mxu0
  %v1069 = vadd.f32 0.0, %v1068
  %v1070 = vpop.f32.mrb[0].mxu0
  %v1071 = vpop.f32.mrb[0].mxu0
  %v1072 = vadd.f32 0.0, %v1071
  %v1073 = vpop.f32.mrb[0].mxu0
  %1074 = vmatprep.mubr.bf16.mxu0 0
  %1075 = vmatmul.mubr.bf16.gmra.mrb[0].mxu0 %v727
  %v1076 = vpop.f32.mrb[0].mxu0
  %v1077 = vadd.f32 0.0, %v1076
  %v1078 = vpop.f32.mrb[0].mxu0
  %v1079 = vpop.f32.mrb[0].mxu0
  %v1080 = vadd.f32 0.0, %v1079
  %v1081 = vpop.f32.mrb[0].mxu0
  %1082 = vmatprep.mubr.bf16.mxu0 0
  %1083 = vmatmul.mubr.bf16.gmra.mrb[0].mxu0 %v730
  %v1084 = vpop.f32.mrb[0].mxu0
  %v1085 = vadd.f32 0.0, %v1084
  %v1086 = vpop.f32.mrb[0].mxu0
  %v1087 = vpop.f32.mrb[0].mxu0
  %v1088 = vadd.f32 0.0, %v1087
  %v1089 = vpop.f32.mrb[0].mxu0
  %1090 = vmatprep.mubr.bf16.mxu0 0
  %1091 = vmatmul.mubr.bf16.gmra.mrb[0].mxu0 %v733
  %v1092 = vpop.f32.mrb[0].mxu0
  %v1093 = vadd.f32 0.0, %v1092
  %v1094 = vpop.f32.mrb[0].mxu0
  %v1095 = vpop.f32.mrb[0].mxu0
  %v1096 = vadd.f32 0.0, %v1095
  %v1097 = vpop.f32.mrb[0].mxu0
  %1098 = vmatprep.mubr.bf16.mxu0 0
  %1099 = vmatmul.mubr.bf16.gmra.mrb[0].mxu0 %v736
  %v1100 = vpop.f32.mrb[0].mxu0
  %v1101 = vadd.f32 0.0, %v1100
  %v1102 = vpop.f32.mrb[0].mxu0
  %v1103 = vpop.f32.mrb[0].mxu0
  %v1104 = vadd.f32 0.0, %v1103
  %v1105 = vpop.f32.mrb[0].mxu0
  %1106 = vmatprep.mubr.bf16.mxu0 0
  %1107 = vmatmul.mubr.bf16.gmra.mrb[0].mxu0 %v739
  %v1108 = vpop.f32.mrb[0].mxu0
  %v1109 = vadd.f32 0.0, %v1108
  %v1110 = vpop.f32.mrb[0].mxu0
  %v1111 = vpop.f32.mrb[0].mxu0
  %v1112 = vadd.f32 0.0, %v1111
  %v1113 = vpop.f32.mrb[0].mxu0
  %1114 = vmatprep.mubr.bf16.mxu0 0
  %1115 = vmatmul.mubr.bf16.gmra.mrb[0].mxu0 %v742
  %v1116 = vpop.f32.mrb[0].mxu0
  %v1117 = vadd.f32 0.0, %v1116
  %v1118 = vpop.f32.mrb[0].mxu0
  %v1119 = vpop.f32.mrb[0].mxu0
  %v1120 = vadd.f32 0.0, %v1119
  %v1121 = vpop.f32.mrb[0].mxu0
  %1122 = vmatprep.mubr.bf16.mxu0 0
  %1123 = vmatmul.mubr.bf16.gmra.mrb[0].mxu0 %v745
  %v1124 = vpop.f32.mrb[0].mxu0
  %v1125 = vadd.f32 0.0, %v1124
  %v1126 = vpop.f32.mrb[0].mxu0
  %v1127 = vpop.f32.mrb[0].mxu0
  %v1128 = vadd.f32 0.0, %v1127
  %v1129 = vpop.f32.mrb[0].mxu0
  %1130 = vmatprep.mubr.bf16.mxu0 0
  %1131 = vmatmul.mubr.bf16.gmra.mrb[0].mxu0 %v748
  %v1132 = vpop.f32.mrb[0].mxu0
  %v1133 = vadd.f32 0.0, %v1132
  %v1134 = vpop.f32.mrb[0].mxu0
  %v1135 = vpop.f32.mrb[0].mxu0
  %v1136 = vadd.f32 0.0, %v1135
  %v1137 = vpop.f32.mrb[0].mxu0
  %1138 = vmatprep.mubr.bf16.mxu0 0
  %1139 = vmatmul.mubr.bf16.gmra.mrb[0].mxu0 %v751
  %v1140 = vpop.f32.mrb[0].mxu0
  %v1141 = vadd.f32 0.0, %v1140
  %v1142 = vpop.f32.mrb[0].mxu0
  %v1143 = vpop.f32.mrb[0].mxu0
  %v1144 = vadd.f32 0.0, %v1143
  %v1145 = vpop.f32.mrb[0].mxu0
  %1146 = vmatprep.mubr.bf16.mxu0 0
  %1147 = vmatmul.mubr.bf16.gmra.mrb[0].mxu0 %v754
  %v1148 = vpop.f32.mrb[0].mxu0
  %v1149 = vadd.f32 0.0, %v1148
  %v1150 = vpop.f32.mrb[0].mxu0
  %v1151 = vpop.f32.mrb[0].mxu0
  %v1152 = vadd.f32 0.0, %v1151
  %v1153 = vpop.f32.mrb[0].mxu0
  %1154 = vmatprep.mubr.bf16.mxu0 0
  %1155 = vmatmul.mubr.bf16.gmra.mrb[0].mxu0 %v757
  %v1156 = vpop.f32.mrb[0].mxu0
  %v1157 = vadd.f32 0.0, %v1156
  %v1158 = vpop.f32.mrb[0].mxu0
  %v1159 = vpop.f32.mrb[0].mxu0
  %v1160 = vadd.f32 0.0, %v1159
  %v1161 = vpop.f32.mrb[0].mxu0
  %1162 = vmatprep.mubr.bf16.mxu0 0
  %1163 = vmatmul.mubr.bf16.gmra.mrb[0].mxu0 %v760
  %v1164 = vpop.f32.mrb[0].mxu0
  %v1165 = vadd.f32 0.0, %v1164
  %v1166 = vpop.f32.mrb[0].mxu0
  %v1167 = vpop.f32.mrb[0].mxu0
  %v1168 = vadd.f32 0.0, %v1167
  %v1169 = vpop.f32.mrb[0].mxu0
  %1170 = vmatprep.mubr.bf16.mxu0 0
  %1171 = vmatmul.mubr.bf16.gmra.mrb[0].mxu0 %v763
  %v1172 = vpop.f32.mrb[0].mxu0
  %v1173 = vadd.f32 0.0, %v1172
  %v1174 = vpop.f32.mrb[0].mxu0
  %v1175 = vpop.f32.mrb[0].mxu0
  %v1176 = vadd.f32 0.0, %v1175
  %v1177 = vpop.f32.mrb[0].mxu0
  %1178 = vmatprep.mubr.bf16.mxu0 0
  %1179 = vmatmul.mubr.bf16.gmra.mrb[0].mxu0 %v766
  %v1180 = vpop.f32.mrb[0].mxu0
  %v1181 = vadd.f32 0.0, %v1180
  %v1182 = vpop.f32.mrb[0].mxu0
  %v1183 = vpop.f32.mrb[0].mxu0
  %v1184 = vadd.f32 0.0, %v1183
  %v1185 = vpop.f32.mrb[0].mxu0
  %1186 = vmatprep.mubr.bf16.mxu0 0
  %1187 = vmatmul.mubr.bf16.gmra.mrb[0].mxu0 %v769
  %v1188 = vpop.f32.mrb[0].mxu0
  %v1189 = vadd.f32 0.0, %v1188
  %v1190 = vpop.f32.mrb[0].mxu0
  %v1191 = vpop.f32.mrb[0].mxu0
  %v1192 = vadd.f32 0.0, %v1191
  %v1193 = vpop.f32.mrb[0].mxu0
  %1194 = vmatprep.mubr.bf16.mxu0 0
  %1195 = vmatmul.mubr.bf16.gmra.mrb[0].mxu0 %v772
  %v1196 = vpop.f32.mrb[0].mxu0
  %v1197 = vadd.f32 0.0, %v1196
  %v1198 = vpop.f32.mrb[0].mxu0
  %v1199 = vpop.f32.mrb[0].mxu0
  %v1200 = vadd.f32 0.0, %v1199
  %v1201 = vpop.f32.mrb[0].mxu0
  %1202 = vmatprep.mubr.bf16.mxu0 0
  %1203 = vmatmul.mubr.bf16.gmra.mrb[0].mxu0 %v775
  %v1204 = vpop.f32.mrb[0].mxu0
  %v1205 = vadd.f32 0.0, %v1204
  %v1206 = vpop.f32.mrb[0].mxu0
  %v1207 = vpop.f32.mrb[0].mxu0
  %v1208 = vadd.f32 0.0, %v1207
  %v1209 = vpop.f32.mrb[0].mxu0
  %1210 = vmatprep.mubr.bf16.mxu0 0
  %1211 = vmatmul.mubr.bf16.gmra.mrb[0].mxu0 %v778
  %v1212 = vpop.f32.mrb[0].mxu0
  %v1213 = vadd.f32 0.0, %v1212
  %v1214 = vpop.f32.mrb[0].mxu0
  %v1215 = vpop.f32.mrb[0].mxu0
  %v1216 = vadd.f32 0.0, %v1215
  %v1217 = vpop.f32.mrb[0].mxu0
  %1218 = vmatprep.mubr.bf16.mxu0 0
  %1219 = vmatmul.mubr.bf16.gmra.mrb[0].mxu0 %v781
  %v1220 = vpop.f32.mrb[0].mxu0
  %v1221 = vadd.f32 0.0, %v1220
  %v1222 = vpop.f32.mrb[0].mxu0
  %v1223 = vpop.f32.mrb[0].mxu0
  %v1224 = vadd.f32 0.0, %v1223
  %v1225 = vpop.f32.mrb[0].mxu0
  %1226 = vmatprep.mubr.bf16.mxu0 0
  %1227 = vmatmul.mubr.bf16.gmra.mrb[0].mxu0 %v784
  %v1228 = vpop.f32.mrb[0].mxu0
  %v1229 = vadd.f32 0.0, %v1228
  %v1230 = vpop.f32.mrb[0].mxu0
  %v1231 = vpop.f32.mrb[0].mxu0
  %v1232 = vadd.f32 0.0, %v1231
  %v1233 = vpop.f32.mrb[0].mxu0
  %1234 = vmatprep.mubr.bf16.mxu0 0
  %1235 = vmatmul.mubr.bf16.gmra.mrb[0].mxu0 %v787
  %v1236 = vpop.f32.mrb[0].mxu0
  %v1237 = vadd.f32 0.0, %v1236
  %v1238 = vpop.f32.mrb[0].mxu0
  %v1239 = vpop.f32.mrb[0].mxu0
  %v1240 = vadd.f32 0.0, %v1239
  %v1241 = vpop.f32.mrb[0].mxu0
  %1242 = vmatprep.mubr.bf16.mxu0 0
  %1243 = vmatmul.mubr.bf16.gmra.mrb[0].mxu0 %v790
  %v1244 = vpop.f32.mrb[0].mxu0
  %v1245 = vadd.f32 0.0, %v1244
  %v1246 = vpop.f32.mrb[0].mxu0
  %v1247 = vpop.f32.mrb[0].mxu0
  %v1248 = vadd.f32 0.0, %v1247
  %v1249 = vpop.f32.mrb[0].mxu0
  %1250 = vmatprep.mubr.bf16.mxu0 0
  %1251 = vmatmul.mubr.bf16.gmra.mrb[0].mxu0 %v793
  %v1252 = vpop.f32.mrb[0].mxu0
  %v1253 = vadd.f32 0.0, %v1252
  %v1254 = vpop.f32.mrb[0].mxu0
  %v1255 = vpop.f32.mrb[0].mxu0
  %v1256 = vadd.f32 0.0, %v1255
  %v1257 = vpop.f32.mrb[0].mxu0
  %1258 = vmatprep.mubr.bf16.mxu0 0
  %1259 = vmatmul.mubr.bf16.gmra.mrb[0].mxu0 %v796
  %v1260 = vpop.f32.mrb[0].mxu0
  %v1261 = vadd.f32 0.0, %v1260
  %v1262 = vpop.f32.mrb[0].mxu0
  %v1263 = vpop.f32.mrb[0].mxu0
  %v1264 = vadd.f32 0.0, %v1263
  %v1265 = vpop.f32.mrb[0].mxu0
  %1266 = vmatprep.mubr.bf16.mxu0 0
  %1267 = vmatmul.mubr.bf16.gmra.mrb[0].mxu0 %v799
  %v1268 = vpop.f32.mrb[0].mxu0
  %v1269 = vadd.f32 0.0, %v1268
  %v1270 = vpop.f32.mrb[0].mxu0
  %v1271 = vpop.f32.mrb[0].mxu0
  %v1272 = vadd.f32 0.0, %v1271
  %v1273 = vpop.f32.mrb[0].mxu0
  %1274 = vmatprep.mubr.bf16.mxu0 0
  %1275 = vmatmul.mubr.bf16.gmra.mrb[0].mxu0 %v802
  %v1276 = vpop.f32.mrb[0].mxu0
  %v1277 = vadd.f32 0.0, %v1276
  %v1278 = vpop.f32.mrb[0].mxu0
  %v1279 = vpop.f32.mrb[0].mxu0
  %v1280 = vadd.f32 0.0, %v1279
  %v1281 = vpop.f32.mrb[0].mxu0
  %1282 = vmatprep.mubr.bf16.mxu0 0
  %1283 = vmatmul.mubr.bf16.gmra.mrb[0].mxu0 %v805
  %v1284 = vpop.f32.mrb[0].mxu0
  %v1285 = vadd.f32 0.0, %v1284
  %v1286 = vpop.f32.mrb[0].mxu0
  %v1287 = vpop.f32.mrb[0].mxu0
  %v1288 = vadd.f32 0.0, %v1287
  %v1289 = vpop.f32.mrb[0].mxu0
  %1290 = vmatprep.mubr.bf16.mxu0 0
  %1291 = vmatmul.mubr.bf16.gmra.mrb[0].mxu0 %v808
  %v1292 = vpop.f32.mrb[0].mxu0
  %v1293 = vadd.f32 0.0, %v1292
  %v1294 = vpop.f32.mrb[0].mxu0
  %v1295 = vpop.f32.mrb[0].mxu0
  %v1296 = vadd.f32 0.0, %v1295
  %v1297 = vpop.f32.mrb[0].mxu0
  %1298 = vmatprep.mubr.bf16.mxu0 0
  %1299 = vmatmul.mubr.bf16.gmra.mrb[0].mxu0 %v811
  %v1300 = vpop.f32.mrb[0].mxu0
  %v1301 = vadd.f32 0.0, %v1300
  %v1302 = vpop.f32.mrb[0].mxu0
  %v1303 = vpop.f32.mrb[0].mxu0
  %v1304 = vadd.f32 0.0, %v1303
  %v1305 = vpop.f32.mrb[0].mxu0
  %1306 = vmatprep.mubr.bf16.mxu0 0
  %1307 = vmatmul.mubr.bf16.gmra.mrb[0].mxu0 %v814
  %v1308 = vpop.f32.mrb[0].mxu0
  %v1309 = vadd.f32 0.0, %v1308
  %v1310 = vpop.f32.mrb[0].mxu0
  %v1311 = vpop.f32.mrb[0].mxu0
  %v1312 = vadd.f32 0.0, %v1311
  %v1313 = vpop.f32.mrb[0].mxu0
  %1314 = vmatprep.mubr.bf16.mxu0 0
  %1315 = vmatmul.mubr.bf16.gmra.mrb[0].mxu0 %v817
  %v1316 = vpop.f32.mrb[0].mxu0
  %v1317 = vadd.f32 0.0, %v1316
  %v1318 = vpop.f32.mrb[0].mxu0
  %v1319 = vpop.f32.mrb[0].mxu0
  %v1320 = vadd.f32 0.0, %v1319
  %v1321 = vpop.f32.mrb[0].mxu0
  %1322 = vmatprep.mubr.bf16.mxu0 0
  %1323 = vmatmul.mubr.bf16.gmra.mrb[0].mxu0 %v820
  %v1324 = vpop.f32.mrb[0].mxu0
  %v1325 = vadd.f32 0.0, %v1324
  %v1326 = vpop.f32.mrb[0].mxu0
  %v1327 = vpop.f32.mrb[0].mxu0
  %v1328 = vadd.f32 0.0, %v1327
  %v1329 = vpop.f32.mrb[0].mxu0
  %1330 = vmatprep.mubr.bf16.mxu0 0
  %1331 = vmatmul.mubr.bf16.gmra.mrb[0].mxu0 %v823
  %v1332 = vpop.f32.mrb[0].mxu0
  %v1333 = vadd.f32 0.0, %v1332
  %v1334 = vpop.f32.mrb[0].mxu0
  %v1335 = vpop.f32.mrb[0].mxu0
  %v1336 = vadd.f32 0.0, %v1335
  %v1337 = vpop.f32.mrb[0].mxu0
  %1338 = vmatprep.mubr.bf16.mxu0 0
  %1339 = vmatmul.mubr.bf16.gmra.mrb[0].mxu0 %v826
  %v1340 = vpop.f32.mrb[0].mxu0
  %v1341 = vadd.f32 0.0, %v1340
  %v1342 = vpop.f32.mrb[0].mxu0
  %v1343 = vpop.f32.mrb[0].mxu0
  %v1344 = vadd.f32 0.0, %v1343
  %v1345 = vpop.f32.mrb[0].mxu0
  %1346 = vmatprep.mubr.bf16.mxu0 0
  %1347 = vmatmul.mubr.bf16.gmra.mrb[0].mxu0 %v829
  %v1348 = vpop.f32.mrb[0].mxu0
  %v1349 = vadd.f32 0.0, %v1348
  %v1350 = vpop.f32.mrb[0].mxu0
  %v1351 = vpop.f32.mrb[0].mxu0
  %v1352 = vadd.f32 0.0, %v1351
  %v1353 = vpop.f32.mrb[0].mxu0
  %1354 = vmatprep.mubr.bf16.mxu0 0
  %1355 = vmatmul.mubr.bf16.gmra.mrb[0].mxu0 %v832
  %v1356 = vpop.f32.mrb[0].mxu0
  %v1357 = vadd.f32 0.0, %v1356
  %v1358 = vpop.f32.mrb[0].mxu0
  %v1359 = vpop.f32.mrb[0].mxu0
  %v1360 = vadd.f32 0.0, %v1359
  %v1361 = vpop.f32.mrb[0].mxu0
  %1362 = vmatprep.mubr.bf16.mxu0 0
  %1363 = vmatmul.mubr.bf16.gmra.mrb[0].mxu0 %v835
  %v1364 = vpop.f32.mrb[0].mxu0
  %v1365 = vadd.f32 0.0, %v1364
  %v1366 = vpop.f32.mrb[0].mxu0
  %v1367 = vpop.f32.mrb[0].mxu0
  %v1368 = vadd.f32 0.0, %v1367
  %v1369 = vpop.f32.mrb[0].mxu0
  %1370 = vmatprep.mubr.bf16.mxu0 0
  %1371 = vmatmul.mubr.bf16.gmra.mrb[0].mxu0 %v838
  %v1372 = vpop.f32.mrb[0].mxu0
  %v1373 = vadd.f32 0.0, %v1372
  %v1374 = vpop.f32.mrb[0].mxu0
  %v1375 = vpop.f32.mrb[0].mxu0
  %v1376 = vadd.f32 0.0, %v1375
  %v1377 = vpop.f32.mrb[0].mxu0
  %1378 = vmatprep.mubr.bf16.mxu0 0
  %1379 = vmatmul.mubr.bf16.gmra.mrb[0].mxu0 %v841
  %v1380 = vpop.f32.mrb[0].mxu0
  %v1381 = vadd.f32 0.0, %v1380
  %v1382 = vpop.f32.mrb[0].mxu0
  %v1383 = vpop.f32.mrb[0].mxu0
  %v1384 = vadd.f32 0.0, %v1383
  %v1385 = vpop.f32.mrb[0].mxu0
  %1386 = vmatprep.mubr.bf16.mxu0 0
  %1387 = vmatmul.mubr.bf16.gmra.mrb[0].mxu0 %v844
  %v1388 = vpop.f32.mrb[0].mxu0
  %v1389 = vadd.f32 0.0, %v1388
  %v1390 = vpop.f32.mrb[0].mxu0
  %v1391 = vpop.f32.mrb[0].mxu0
  %v1392 = vadd.f32 0.0, %v1391
  %v1393 = vpop.f32.mrb[0].mxu0
  %1394 = vmatprep.mubr.bf16.mxu0 0
  %1395 = vmatmul.mubr.bf16.gmra.mrb[0].mxu0 %v847
  %v1396 = vpop.f32.mrb[0].mxu0
  %v1397 = vadd.f32 0.0, %v1396
  %v1398 = vpop.f32.mrb[0].mxu0
  %v1399 = vpop.f32.mrb[0].mxu0
  %v1400 = vadd.f32 0.0, %v1399
  %v1401 = vpop.f32.mrb[0].mxu0
  %1402 = vmatprep.mubr.bf16.mxu0 0
  %1403 = vmatmul.mubr.bf16.gmra.mrb[0].mxu0 %v850
  %v1404 = vpop.f32.mrb[0].mxu0
  %v1405 = vadd.f32 0.0, %v1404
  %v1406 = vpop.f32.mrb[0].mxu0
  %v1407 = vpop.f32.mrb[0].mxu0
  %v1408 = vadd.f32 0.0, %v1407
  %v1409 = vpop.f32.mrb[0].mxu0
  %1410 = vmatprep.mubr.bf16.mxu0 0
  %1411 = vmatmul.mubr.bf16.gmra.mrb[0].mxu0 %v853
  %v1412 = vpop.f32.mrb[0].mxu0
  %v1413 = vadd.f32 0.0, %v1412
  %v1414 = vpop.f32.mrb[0].mxu0
  %v1415 = vpop.f32.mrb[0].mxu0
  %v1416 = vadd.f32 0.0, %v1415
  %v1417 = vpop.f32.mrb[0].mxu0
  %1418 = vmatprep.mubr.bf16.mxu0 0
  %1419 = vmatmul.mubr.bf16.gmra.mrb[0].mxu0 %v856
  %v1420 = vpop.f32.mrb[0].mxu0
  %v1421 = vadd.f32 0.0, %v1420
  %v1422 = vpop.f32.mrb[0].mxu0
  %v1423 = vpop.f32.mrb[0].mxu0
  %v1424 = vadd.f32 0.0, %v1423
  %v1425 = vpop.f32.mrb[0].mxu0
  %1426 = vmatprep.mubr.bf16.mxu0 0
  %1427 = vmatmul.mubr.bf16.gmra.mrb[0].mxu0 %v859
  %v1428 = vpop.f32.mrb[0].mxu0
  %v1429 = vadd.f32 0.0, %v1428
  %v1430 = vpop.f32.mrb[0].mxu0
  %v1431 = vpop.f32.mrb[0].mxu0
  %v1432 = vadd.f32 0.0, %v1431
  %v1433 = vpop.f32.mrb[0].mxu0
  %1434 = vmatprep.mubr.bf16.mxu0 0
  %1435 = vmatmul.mubr.bf16.gmra.mrb[0].mxu0 %v862
  %v1436 = vpop.f32.mrb[0].mxu0
  %v1437 = vadd.f32 0.0, %v1436
  %v1438 = vpop.f32.mrb[0].mxu0
  %v1439 = vpop.f32.mrb[0].mxu0
  %v1440 = vadd.f32 0.0, %v1439
  %v1441 = vpop.f32.mrb[0].mxu0
  %1442 = vmatprep.mubr.bf16.mxu0 0
  %1443 = vmatmul.mubr.bf16.gmra.mrb[0].mxu0 %v865
  %v1444 = vpop.f32.mrb[0].mxu0
  %v1445 = vadd.f32 0.0, %v1444
  %v1446 = vpop.f32.mrb[0].mxu0
  %v1447 = vpop.f32.mrb[0].mxu0
  %v1448 = vadd.f32 0.0, %v1447
  %v1449 = vpop.f32.mrb[0].mxu0
  %1450 = vmatprep.mubr.bf16.mxu0 0
  %1451 = vmatmul.mubr.bf16.gmra.mrb[0].mxu0 %v868
  %v1452 = vpop.f32.mrb[0].mxu0
  %v1453 = vadd.f32 0.0, %v1452
  %v1454 = vpop.f32.mrb[0].mxu0
  %v1455 = vpop.f32.mrb[0].mxu0
  %v1456 = vadd.f32 0.0, %v1455
  %v1457 = vpop.f32.mrb[0].mxu0
  %1458 = vmatprep.mubr.bf16.mxu0 0
  %1459 = vmatmul.mubr.bf16.gmra.mrb[0].mxu0 %v871
  %v1460 = vpop.f32.mrb[0].mxu0
  %v1461 = vadd.f32 0.0, %v1460
  %v1462 = vpop.f32.mrb[0].mxu0
  %v1463 = vpop.f32.mrb[0].mxu0
  %v1464 = vadd.f32 0.0, %v1463
  %v1465 = vpop.f32.mrb[0].mxu0
  %1466 = vmatprep.mubr.bf16.mxu0 0
  %1467 = vmatmul.mubr.bf16.gmra.mrb[0].mxu0 %v874
  %v1468 = vpop.f32.mrb[0].mxu0
  %v1469 = vadd.f32 0.0, %v1468
  %v1470 = vpop.f32.mrb[0].mxu0
  %v1471 = vpop.f32.mrb[0].mxu0
  %v1472 = vadd.f32 0.0, %v1471
  %v1473 = vpop.f32.mrb[0].mxu0
  %1474 = vmatprep.mubr.bf16.mxu0 0
  %1475 = vmatmul.mubr.bf16.gmra.mrb[0].mxu0 %v877
  %v1476 = vpop.f32.mrb[0].mxu0
  %v1477 = vadd.f32 0.0, %v1476
  %v1478 = vpop.f32.mrb[0].mxu0
  %v1479 = vpop.f32.mrb[0].mxu0
  %v1480 = vadd.f32 0.0, %v1479
  %v1481 = vpop.f32.mrb[0].mxu0
  %1482 = vmatprep.mubr.bf16.mxu0 0
  %1483 = vmatmul.mubr.bf16.gmra.mrb[0].mxu0 %v880
  %v1484 = vpop.f32.mrb[0].mxu0
  %v1485 = vadd.f32 0.0, %v1484
  %v1486 = vpop.f32.mrb[0].mxu0
  %v1487 = vpop.f32.mrb[0].mxu0
  %v1488 = vadd.f32 0.0, %v1487
  %v1489 = vpop.f32.mrb[0].mxu0
  %1490 = vmatprep.mubr.bf16.mxu0 0
  %1491 = vmatmul.mubr.bf16.gmra.mrb[0].mxu0 %v883
  %v1492 = vpop.f32.mrb[0].mxu0
  %v1493 = vadd.f32 0.0, %v1492
  %v1494 = vpop.f32.mrb[0].mxu0
  %v1495 = vpop.f32.mrb[0].mxu0
  %v1496 = vadd.f32 0.0, %v1495
  %v1497 = vpop.f32.mrb[0].mxu0
  %1498 = vmatprep.mubr.bf16.mxu0 0
  %1499 = vmatmul.mubr.bf16.gmra.mrb[0].mxu0 %v886
  %v1500 = vpop.f32.mrb[0].mxu0
  %v1501 = vadd.f32 0.0, %v1500
  %v1502 = vpop.f32.mrb[0].mxu0
  %v1503 = vpop.f32.mrb[0].mxu0
  %v1504 = vadd.f32 0.0, %v1503
  %v1505 = vpop.f32.mrb[0].mxu0
  %1506 = vmatprep.mubr.bf16.mxu0 0
  %1507 = vmatmul.mubr.bf16.gmra.mrb[0].mxu0 %v889
  %v1508 = vpop.f32.mrb[0].mxu0
  %v1509 = vadd.f32 0.0, %v1508
  %v1510 = vpop.f32.mrb[0].mxu0
  %v1511 = vpop.f32.mrb[0].mxu0
  %v1512 = vadd.f32 0.0, %v1511
  %v1513 = vpop.f32.mrb[0].mxu0
  %1514 = vmatprep.mubr.bf16.mxu0 0
  %1515 = vmatmul.mubr.bf16.gmra.mrb[0].mxu0 %v892
  %v1516 = vpop.f32.mrb[0].mxu0
  %v1517 = vadd.f32 0.0, %v1516
  %v1518 = vpop.f32.mrb[0].mxu0
  %v1519 = vpop.f32.mrb[0].mxu0
  %v1520 = vadd.f32 0.0, %v1519
  %v1521 = vpop.f32.mrb[0].mxu0
  %1522 = vmatprep.mubr.bf16.mxu0 0
  %1523 = vmatmul.mubr.bf16.gmra.mrb[0].mxu0 %v895
  %v1524 = vpop.f32.mrb[0].mxu0
  %v1525 = vadd.f32 0.0, %v1524
  %v1526 = vpop.f32.mrb[0].mxu0
  %v1527 = vpop.f32.mrb[0].mxu0
  %v1528 = vadd.f32 0.0, %v1527
  %v1529 = vpop.f32.mrb[0].mxu0
  %1530 = vmatprep.mubr.bf16.mxu0 0
  %1531 = vmatmul.mubr.bf16.gmra.mrb[0].mxu0 %v898
  %v1532 = vpop.f32.mrb[0].mxu0
  %v1533 = vadd.f32 0.0, %v1532
  %v1534 = vpop.f32.mrb[0].mxu0
  %v1535 = vpop.f32.mrb[0].mxu0
  %v1536 = vadd.f32 0.0, %v1535
  %v1537 = vpop.f32.mrb[0].mxu0
  %1538 = vmatprep.mubr.bf16.mxu0 0
  %1539 = vmatmul.mubr.bf16.gmra.mrb[0].mxu0 %v901
  %v1540 = vpop.f32.mrb[0].mxu0
  %v1541 = vadd.f32 0.0, %v1540
  %v1542 = vpop.f32.mrb[0].mxu0
  %v1543 = vpop.f32.mrb[0].mxu0
  %v1544 = vadd.f32 0.0, %v1543
  %v1545 = vpop.f32.mrb[0].mxu0
  %1546 = vmatprep.mubr.bf16.mxu0 0
  %1547 = vmatmul.mubr.bf16.gmra.mrb[0].mxu0 %v904
  %v1548 = vpop.f32.mrb[0].mxu0
  %v1549 = vadd.f32 0.0, %v1548
  %v1550 = vpop.f32.mrb[0].mxu0
  %v1551 = vpop.f32.mrb[0].mxu0
  %v1552 = vadd.f32 0.0, %v1551
  %v1553 = vpop.f32.mrb[0].mxu0
  %1554 = vmatprep.mubr.bf16.mxu0 0
  %1555 = vmatmul.mubr.bf16.gmra.mrb[0].mxu0 %v907
  %v1556 = vpop.f32.mrb[0].mxu0
  %v1557 = vadd.f32 0.0, %v1556
  %v1558 = vpop.f32.mrb[0].mxu0
  %v1559 = vpop.f32.mrb[0].mxu0
  %v1560 = vadd.f32 0.0, %v1559
  %v1561 = vpop.f32.mrb[0].mxu0
  %1562 = vmatprep.mubr.bf16.mxu0 0
  %1563 = vmatmul.mubr.bf16.gmra.mrb[0].mxu0 %v910
  %v1564 = vpop.f32.mrb[0].mxu0
  %v1565 = vadd.f32 0.0, %v1564
  %v1566 = vpop.f32.mrb[0].mxu0
  %v1567 = vpop.f32.mrb[0].mxu0
  %v1568 = vadd.f32 0.0, %v1567
  %v1569 = vpop.f32.mrb[0].mxu0
  %1570 = vmatprep.mubr.bf16.mxu0 0
  %1571 = vmatmul.mubr.bf16.gmra.mrb[0].mxu0 %v913
  %v1572 = vpop.f32.mrb[0].mxu0
  %v1573 = vadd.f32 0.0, %v1572
  %v1574 = vpop.f32.mrb[0].mxu0
  %v1575 = vpop.f32.mrb[0].mxu0
  %v1576 = vadd.f32 0.0, %v1575
  %v1577 = vpop.f32.mrb[0].mxu0
  %1578 = vmatprep.mubr.bf16.mxu0 0
  %1579 = vmatmul.mubr.bf16.gmra.mrb[0].mxu0 %v916
  %v1580 = vpop.f32.mrb[0].mxu0
  %v1581 = vadd.f32 0.0, %v1580
  %v1582 = vpop.f32.mrb[0].mxu0
  %v1583 = vpop.f32.mrb[0].mxu0
  %v1584 = vadd.f32 0.0, %v1583
  %v1585 = vpop.f32.mrb[0].mxu0
  %1586 = vmatprep.mubr.bf16.mxu0 0
  %1587 = vmatmul.mubr.bf16.gmra.mrb[0].mxu0 %v919
  %v1588 = vpop.f32.mrb[0].mxu0
  %v1589 = vadd.f32 0.0, %v1588
  %v1590 = vpop.f32.mrb[0].mxu0
  %v1591 = vpop.f32.mrb[0].mxu0
  %v1592 = vadd.f32 0.0, %v1591
  %v1593 = vpop.f32.mrb[0].mxu0
  %1594 = vmatprep.mubr.bf16.mxu0 0
  %1595 = vmatmul.mubr.bf16.gmra.mrb[0].mxu0 %v922
  %v1596 = vpop.f32.mrb[0].mxu0
  %v1597 = vadd.f32 0.0, %v1596
  %v1598 = vpop.f32.mrb[0].mxu0
  %v1599 = vpop.f32.mrb[0].mxu0
  %v1600 = vadd.f32 0.0, %v1599
  %v1601 = vpop.f32.mrb[0].mxu0
  %1602 = vmatprep.mubr.bf16.mxu0 0
  %1603 = vmatmul.mubr.bf16.gmra.mrb[0].mxu0 %v925
  %v1604 = vpop.f32.mrb[0].mxu0
  %v1605 = vadd.f32 0.0, %v1604
  %v1606 = vpop.f32.mrb[0].mxu0
  %v1607 = vpop.f32.mrb[0].mxu0
  %v1608 = vadd.f32 0.0, %v1607
  %v1609 = vpop.f32.mrb[0].mxu0
  %1610 = vmatprep.mubr.bf16.mxu0 0
  %1611 = vmatmul.mubr.bf16.gmra.mrb[0].mxu0 %v928
  %v1612 = vpop.f32.mrb[0].mxu0
  %v1613 = vadd.f32 0.0, %v1612
  %v1614 = vpop.f32.mrb[0].mxu0
  %v1615 = vpop.f32.mrb[0].mxu0
  %v1616 = vadd.f32 0.0, %v1615
  %v1617 = vpop.f32.mrb[0].mxu0
  %1618 = vmatprep.mubr.bf16.mxu0 0
  %1619 = vmatmul.mubr.bf16.gmra.mrb[0].mxu0 %v931
  %v1620 = vpop.f32.mrb[0].mxu0
  %v1621 = vadd.f32 0.0, %v1620
  %v1622 = vpop.f32.mrb[0].mxu0
  %v1623 = vpop.f32.mrb[0].mxu0
  %v1624 = vadd.f32 0.0, %v1623
  %v1625 = vpop.f32.mrb[0].mxu0
  %1626 = vmatprep.mubr.bf16.mxu0 0
  %1627 = vmatmul.mubr.bf16.gmra.mrb[0].mxu0 %v934
  %v1628 = vpop.f32.mrb[0].mxu0
  %v1629 = vadd.f32 0.0, %v1628
  %v1630 = vpop.f32.mrb[0].mxu0
  %v1631 = vpop.f32.mrb[0].mxu0
  %v1632 = vadd.f32 0.0, %v1631
  %v1633 = vpop.f32.mrb[0].mxu0
  %1634 = vmatprep.mubr.bf16.mxu0 0
  %1635 = vmatmul.mubr.bf16.gmra.mrb[0].mxu0 %v937
  %v1636 = vpop.f32.mrb[0].mxu0
  %v1637 = vadd.f32 0.0, %v1636
  %v1638 = vpop.f32.mrb[0].mxu0
  %v1639 = vpop.f32.mrb[0].mxu0
  %v1640 = vadd.f32 0.0, %v1639
  %v1641 = vpop.f32.mrb[0].mxu0
  %1642 = vmatprep.mubr.bf16.mxu0 0
  %1643 = vmatmul.mubr.bf16.gmra.mrb[0].mxu0 %v940
  %v1644 = vpop.f32.mrb[0].mxu0
  %v1645 = vadd.f32 0.0, %v1644
  %v1646 = vpop.f32.mrb[0].mxu0
  %v1647 = vpop.f32.mrb[0].mxu0
  %v1648 = vadd.f32 0.0, %v1647
  %v1649 = vpop.f32.mrb[0].mxu0
  %1650 = vmatprep.mubr.bf16.mxu0 0
  %1651 = vmatmul.mubr.bf16.gmra.mrb[0].mxu0 %v943
  %v1652 = vpop.f32.mrb[0].mxu0
  %v1653 = vadd.f32 0.0, %v1652
  %v1654 = vpop.f32.mrb[0].mxu0
  %v1655 = vpop.f32.mrb[0].mxu0
  %v1656 = vadd.f32 0.0, %v1655
  %v1657 = vpop.f32.mrb[0].mxu0
  %1658 = vmatprep.mubr.bf16.mxu0 0
  %1659 = vmatmul.mubr.bf16.gmra.mrb[0].mxu0 %v946
  %v1660 = vpop.f32.mrb[0].mxu0
  %v1661 = vadd.f32 0.0, %v1660
  %v1662 = vpop.f32.mrb[0].mxu0
  %v1663 = vpop.f32.mrb[0].mxu0
  %v1664 = vadd.f32 0.0, %v1663
  %v1665 = vpop.f32.mrb[0].mxu0
  %1666 = vmatprep.mubr.bf16.mxu0 0
  %1667 = vmatmul.mubr.bf16.gmra.mrb[0].mxu0 %v949
  %v1668 = vpop.f32.mrb[0].mxu0
  %v1669 = vadd.f32 0.0, %v1668
  %v1670 = vpop.f32.mrb[0].mxu0
  %v1671 = vpop.f32.mrb[0].mxu0
  %v1672 = vadd.f32 0.0, %v1671
  %v1673 = vpop.f32.mrb[0].mxu0
  %1674 = vmatprep.mubr.bf16.mxu0 0
  %1675 = vmatmul.mubr.bf16.gmra.mrb[0].mxu0 %v952
  %v1676 = vpop.f32.mrb[0].mxu0
  %v1677 = vadd.f32 0.0, %v1676
  %v1678 = vpop.f32.mrb[0].mxu0
  %v1679 = vpop.f32.mrb[0].mxu0
  %v1680 = vadd.f32 0.0, %v1679
  %v1681 = vpop.f32.mrb[0].mxu0
  %1682 = vmatprep.mubr.bf16.mxu0 0
  %1683 = vmatmul.mubr.bf16.gmra.mrb[0].mxu0 %v955
  %v1684 = vpop.f32.mrb[0].mxu0
  %v1685 = vadd.f32 0.0, %v1684
  %v1686 = vpop.f32.mrb[0].mxu0
  %v1687 = vpop.f32.mrb[0].mxu0
  %v1688 = vadd.f32 0.0, %v1687
  %v1689 = vpop.f32.mrb[0].mxu0
  %1690 = vmatprep.mubr.bf16.mxu0 0
  %1691 = vmatmul.mubr.bf16.gmra.mrb[0].mxu0 %v958
  %v1692 = vpop.f32.mrb[0].mxu0
  %v1693 = vadd.f32 0.0, %v1692
  %v1694 = vpop.f32.mrb[0].mxu0
  %v1695 = vpop.f32.mrb[0].mxu0
  %v1696 = vadd.f32 0.0, %v1695
  %v1697 = vpop.f32.mrb[0].mxu0
  %1698 = vmatprep.mubr.bf16.mxu0 0
  %1699 = vmatmul.mubr.bf16.gmra.mrb[0].mxu0 %v961
  %v1700 = vpop.f32.mrb[0].mxu0
  %v1701 = vadd.f32 0.0, %v1700
  %v1702 = vpop.f32.mrb[0].mxu0
  %v1703 = vpop.f32.mrb[0].mxu0
  %v1704 = vadd.f32 0.0, %v1703
  %v1705 = vpop.f32.mrb[0].mxu0
  %1706 = vmatprep.mubr.bf16.mxu0 0
  %1707 = vmatmul.mubr.bf16.gmra.mrb[0].mxu0 %v964
  %v1708 = vpop.f32.mrb[0].mxu0
  %v1709 = vadd.f32 0.0, %v1708
  %v1710 = vpop.f32.mrb[0].mxu0
  %v1711 = vpop.f32.mrb[0].mxu0
  %v1712 = vadd.f32 0.0, %v1711
  %v1713 = vpop.f32.mrb[0].mxu0
  %1714 = vmatprep.mubr.bf16.mxu0 0
  %1715 = vmatmul.mubr.bf16.gmra.mrb[0].mxu0 %v967
  %v1716 = vpop.f32.mrb[0].mxu0
  %v1717 = vadd.f32 0.0, %v1716
  %v1718 = vpop.f32.mrb[0].mxu0
  %v1719 = vpop.f32.mrb[0].mxu0
  %v1720 = vadd.f32 0.0, %v1719
  %v1721 = vpop.f32.mrb[0].mxu0
  %1722 = vmatprep.mubr.bf16.mxu0 0
  %1723 = vmatmul.mubr.bf16.gmra.mrb[0].mxu0 %v970
  %v1724 = vpop.f32.mrb[0].mxu0
  %v1725 = vadd.f32 0.0, %v1724
  %v1726 = vpop.f32.mrb[0].mxu0
  %v1727 = vpop.f32.mrb[0].mxu0
  %v1728 = vadd.f32 0.0, %v1727
  %v1729 = vpop.f32.mrb[0].mxu0
  %1730 = vmatprep.mubr.bf16.mxu0 0
  %1731 = vmatmul.mubr.bf16.gmra.mrb[0].mxu0 %v973
  %v1732 = vpop.f32.mrb[0].mxu0
  %v1733 = vadd.f32 0.0, %v1732
  %v1734 = vpop.f32.mrb[0].mxu0
  %v1735 = vpop.f32.mrb[0].mxu0
  %v1736 = vadd.f32 0.0, %v1735
  %v1737 = vpop.f32.mrb[0].mxu0
  %1738 = vmatprep.mubr.bf16.mxu0 0
  %1739 = vmatmul.mubr.bf16.gmra.mrb[0].mxu0 %v976
  %v1740 = vpop.f32.mrb[0].mxu0
  %v1741 = vadd.f32 0.0, %v1740
  %v1742 = vpop.f32.mrb[0].mxu0
  %v1743 = vpop.f32.mrb[0].mxu0
  %v1744 = vadd.f32 0.0, %v1743
  %v1745 = vpop.f32.mrb[0].mxu0
  %1746 = vmatprep.mubr.bf16.mxu0 0
  %1747 = vmatmul.mubr.bf16.gmra.mrb[0].mxu0 %v979
  %v1748 = vpop.f32.mrb[0].mxu0
  %v1749 = vadd.f32 0.0, %v1748
  %v1750 = vpop.f32.mrb[0].mxu0
  %v1751 = vpop.f32.mrb[0].mxu0
  %v1752 = vadd.f32 0.0, %v1751
  %v1753 = vpop.f32.mrb[0].mxu0
  %1754 = vmatprep.mubr.bf16.mxu0 0
  %1755 = vmatmul.mubr.bf16.gmra.mrb[0].mxu0 %v982
  %v1756 = vpop.f32.mrb[0].mxu0
  %v1757 = vadd.f32 0.0, %v1756
  %v1758 = vpop.f32.mrb[0].mxu0
  %v1759 = vpop.f32.mrb[0].mxu0
  %v1760 = vadd.f32 0.0, %v1759
  %v1761 = vpop.f32.mrb[0].mxu0
  %1762 = vmatprep.mubr.bf16.mxu0 0
  %1763 = vmatmul.mubr.bf16.gmra.mrb[0].mxu0 %v985
  %v1764 = vpop.f32.mrb[0].mxu0
  %v1765 = vadd.f32 0.0, %v1764
  %v1766 = vpop.f32.mrb[0].mxu0
  %v1767 = vpop.f32.mrb[0].mxu0
  %v1768 = vadd.f32 0.0, %v1767
  %v1769 = vpop.f32.mrb[0].mxu0
  %1770 = vmatprep.mubr.bf16.mxu0 0
  %1771 = vmatmul.mubr.bf16.gmra.mrb[0].mxu0 %v988
  %v1772 = vpop.f32.mrb[0].mxu0
  %v1773 = vadd.f32 0.0, %v1772
  %v1774 = vpop.f32.mrb[0].mxu0
  %v1775 = vpop.f32.mrb[0].mxu0
  %v1776 = vadd.f32 0.0, %v1775
  %v1777 = vpop.f32.mrb[0].mxu0
  %1778 = vmatprep.mubr.bf16.mxu0 0
  %1779 = vmatmul.mubr.bf16.gmra.mrb[0].mxu0 %v991
  %v1780 = vpop.f32.mrb[0].mxu0
  %v1781 = vadd.f32 0.0, %v1780
  %v1782 = vpop.f32.mrb[0].mxu0
  %v1783 = vpop.f32.mrb[0].mxu0
  %v1784 = vadd.f32 0.0, %v1783
  %v1785 = vpop.f32.mrb[0].mxu0
  %1786 = vmatprep.mubr.bf16.mxu0 0
  %1787 = vmatmul.mubr.bf16.gmra.mrb[0].mxu0 %v994
  %v1788 = vpop.f32.mrb[0].mxu0
  %v1789 = vadd.f32 0.0, %v1788
  %v1790 = vpop.f32.mrb[0].mxu0
  %v1791 = vpop.f32.mrb[0].mxu0
  %v1792 = vadd.f32 0.0, %v1791
  %v1793 = vpop.f32.mrb[0].mxu0
  %1794 = vmatprep.mubr.bf16.mxu0 0
  %1795 = vmatmul.mubr.bf16.gmra.mrb[0].mxu0 %v997
  %v1796 = vpop.f32.mrb[0].mxu0
  %v1797 = vadd.f32 0.0, %v1796
  %v1798 = vpop.f32.mrb[0].mxu0
  %v1799 = vpop.f32.mrb[0].mxu0
  %v1800 = vadd.f32 0.0, %v1799
  %v1801 = vpop.f32.mrb[0].mxu0
  %1802 = vmatprep.mubr.bf16.mxu0 0
  %1803 = vmatmul.mubr.bf16.gmra.mrb[0].mxu0 %v1000
  %v1804 = vpop.f32.mrb[0].mxu0
  %v1805 = vadd.f32 0.0, %v1804
  %v1806 = vpop.f32.mrb[0].mxu0
  %v1807 = vpop.f32.mrb[0].mxu0
  %v1808 = vadd.f32 0.0, %v1807
  %v1809 = vpop.f32.mrb[0].mxu0
  %1810 = vmatprep.mubr.bf16.mxu0 0
  %1811 = vmatmul.mubr.bf16.gmra.mrb[0].mxu0 %v1003
  %v1812 = vpop.f32.mrb[0].mxu0
  %v1813 = vadd.f32 0.0, %v1812
  %v1814 = vpop.f32.mrb[0].mxu0
  %v1815 = vpop.f32.mrb[0].mxu0
  %v1816 = vadd.f32 0.0, %v1815
  %v1817 = vpop.f32.mrb[0].mxu0
  %1818 = vmatprep.mubr.bf16.mxu0 0
  %1819 = vmatmul.mubr.bf16.gmra.mrb[0].mxu0 %v1006
  %v1820 = vpop.f32.mrb[0].mxu0
  %v1821 = vadd.f32 0.0, %v1820
  %v1822 = vpop.f32.mrb[0].mxu0
  %v1823 = vpop.f32.mrb[0].mxu0
  %v1824 = vadd.f32 0.0, %v1823
  %v1825 = vpop.f32.mrb[0].mxu0
  %1826 = vmatprep.mubr.bf16.mxu0 0
  %1827 = vmatmul.mubr.bf16.gmra.mrb[0].mxu0 %v1009
  %v1828 = vpop.f32.mrb[0].mxu0
  %v1829 = vadd.f32 0.0, %v1828
  %v1830 = vpop.f32.mrb[0].mxu0
  %v1831 = vpop.f32.mrb[0].mxu0
  %v1832 = vadd.f32 0.0, %v1831
  %v1833 = vpop.f32.mrb[0].mxu0
  %1834 = vdwg.mxu0
  %v1835 = vmax.f32 %v1053, %v1248
  %v1836 = vmax.f32 %v1056, %v1253
  %v1837 = vmax.f32 %v1061, %v1256
  %v1838 = vmax.f32 %v1064, %v1261
  %v1839 = vmax.f32 %v1069, %v1264
  %v1840 = vmax.f32 %v1072, %v1269
  %v1841 = vmax.f32 %v1077, %v1272
  %v1842 = vmax.f32 %v1080, %v1277
  %v1843 = vmax.f32 %v1085, %v1280
  %v1844 = vmax.f32 %v1088, %v1285
  %v1845 = vmax.f32 %v1093, %v1288
  %v1846 = vmax.f32 %v1096, %v1293
  %v1847 = vmax.f32 %v1101, %v1296
  %v1848 = vmax.f32 %v1104, %v1301
  %v1849 = vmax.f32 %v1109, %v1304
  %v1850 = vmax.f32 %v1112, %v1309
  %v1851 = vmax.f32 %v1117, %v1312
  %v1852 = vmax.f32 %v1120, %v1317
  %v1853 = vmax.f32 %v1125, %v1320
  %v1854 = vmax.f32 %v1128, %v1325
  %v1855 = vmax.f32 %v1133, %v1328
  %v1856 = vmax.f32 %v1136, %v1333
  %v1857 = vmax.f32 %v1141, %v1336
  %v1858 = vmax.f32 %v1144, %v1341
  %v1859 = vmax.f32 %v1149, %v1344
  %v1860 = vmax.f32 %v1152, %v1349
  %v1861 = vmax.f32 %v1157, %v1352
  %v1862 = vmax.f32 %v1160, %v1357
  %v1863 = vmax.f32 %v1165, %v1360
  %v1864 = vmax.f32 %v1168, %v1365
  %v1865 = vmax.f32 %v1173, %v1368
  %v1866 = vmax.f32 %v1176, %v1373
  %v1867 = vmax.f32 %v1181, %v1376
  %v1868 = vmax.f32 %v1184, %v1381
  %v1869 = vmax.f32 %v1189, %v1384
  %v1870 = vmax.f32 %v1192, %v1389
  %v1871 = vmax.f32 %v1197, %v1392
  %v1872 = vmax.f32 %v1200, %v1397
  %v1873 = vmax.f32 %v1205, %v1400
  %v1874 = vmax.f32 %v1208, %v1405
  %v1875 = vmax.f32 %v1213, %v1408
  %v1876 = vmax.f32 %v1216, %v1413
  %v1877 = vmax.f32 %v1221, %v1416
  %v1878 = vmax.f32 %v1224, %v1421
  %v1879 = vmax.f32 %v1229, %v1424
  %v1880 = vmax.f32 %v1232, %v1429
  %v1881 = vmax.f32 %v1237, %v1432
  %v1882 = vmax.f32 %v1240, %v1437
  %v1883 = vmax.f32 %v1245, %v1440
  %v1884 = vmax.f32 %v1445, %v1640
  %v1885 = vmax.f32 %v1448, %v1645
  %v1886 = vmax.f32 %v1453, %v1648
  %v1887 = vmax.f32 %v1456, %v1653
  %v1888 = vmax.f32 %v1461, %v1656
  %v1889 = vmax.f32 %v1464, %v1661
  %v1890 = vmax.f32 %v1469, %v1664
  %v1891 = vmax.f32 %v1472, %v1669
  %v1892 = vmax.f32 %v1477, %v1672
  %v1893 = vmax.f32 %v1480, %v1677
  %v1894 = vmax.f32 %v1485, %v1680
  %v1895 = vmax.f32 %v1488, %v1685
  %v1896 = vmax.f32 %v1493, %v1688
  %v1897 = vmax.f32 %v1496, %v1693
  %v1898 = vmax.f32 %v1501, %v1696
  %v1899 = vmax.f32 %v1504, %v1701
  %v1900 = vmax.f32 %v1509, %v1704
  %v1901 = vmax.f32 %v1512, %v1709
  %v1902 = vmax.f32 %v1517, %v1712
  %v1903 = vmax.f32 %v1520, %v1717
  %v1904 = vmax.f32 %v1525, %v1720
  %v1905 = vmax.f32 %v1528, %v1725
  %v1906 = vmax.f32 %v1533, %v1728
  %v1907 = vmax.f32 %v1536, %v1733
  %v1908 = vmax.f32 %v1541, %v1736
  %v1909 = vmax.f32 %v1544, %v1741
  %v1910 = vmax.f32 %v1549, %v1744
  %v1911 = vmax.f32 %v1552, %v1749
  %v1912 = vmax.f32 %v1557, %v1752
  %v1913 = vmax.f32 %v1560, %v1757
  %v1914 = vmax.f32 %v1565, %v1760
  %v1915 = vmax.f32 %v1568, %v1765
  %v1916 = vmax.f32 %v1573, %v1768
  %v1917 = vmax.f32 %v1576, %v1773
  %v1918 = vmax.f32 %v1581, %v1776
  %v1919 = vmax.f32 %v1584, %v1781
  %v1920 = vmax.f32 %v1589, %v1784
  %v1921 = vmax.f32 %v1592, %v1789
  %v1922 = vmax.f32 %v1597, %v1792
  %v1923 = vmax.f32 %v1600, %v1797
  %v1924 = vmax.f32 %v1605, %v1800
  %v1925 = vmax.f32 %v1608, %v1805
  %v1926 = vmax.f32 %v1613, %v1808
  %v1927 = vmax.f32 %v1616, %v1813
  %v1928 = vmax.f32 %v1621, %v1816
  %v1929 = vmax.f32 %v1624, %v1821
  %v1930 = vmax.f32 %v1629, %v1824
  %v1931 = vmax.f32 %v1632, %v1829
  %v1932 = vmax.f32 %v1637, %v1832
  %v1933 = vmax.f32 %v1835, %v1884
  %v1934 = vmax.f32 %v1836, %v1885
  %v1935 = vmax.f32 %v1837, %v1886
  %v1936 = vmax.f32 %v1838, %v1887
  %v1937 = vmax.f32 %v1839, %v1888
  %v1938 = vmax.f32 %v1840, %v1889
  %v1939 = vmax.f32 %v1841, %v1890
  %v1940 = vmax.f32 %v1842, %v1891
  %v1941 = vmax.f32 %v1843, %v1892
  %v1942 = vmax.f32 %v1844, %v1893
  %v1943 = vmax.f32 %v1845, %v1894
  %v1944 = vmax.f32 %v1846, %v1895
  %v1945 = vmax.f32 %v1847, %v1896
  %v1946 = vmax.f32 %v1848, %v1897
  %v1947 = vmax.f32 %v1849, %v1898
  %v1948 = vmax.f32 %v1850, %v1899
  %v1949 = vmax.f32 %v1851, %v1900
  %v1950 = vmax.f32 %v1852, %v1901
  %v1951 = vmax.f32 %v1853, %v1902
  %v1952 = vmax.f32 %v1854, %v1903
  %v1953 = vmax.f32 %v1855, %v1904
  %v1954 = vmax.f32 %v1856, %v1905
  %v1955 = vmax.f32 %v1857, %v1906
  %v1956 = vmax.f32 %v1858, %v1907
  %v1957 = vmax.f32 %v1859, %v1908
  %v1958 = vmax.f32 %v1860, %v1909
  %v1959 = vmax.f32 %v1861, %v1910
  %v1960 = vmax.f32 %v1862, %v1911
  %v1961 = vmax.f32 %v1863, %v1912
  %v1962 = vmax.f32 %v1864, %v1913
  %v1963 = vmax.f32 %v1865, %v1914
  %v1964 = vmax.f32 %v1866, %v1915
  %v1965 = vmax.f32 %v1867, %v1916
  %v1966 = vmax.f32 %v1868, %v1917
  %v1967 = vmax.f32 %v1869, %v1918
  %v1968 = vmax.f32 %v1870, %v1919
  %v1969 = vmax.f32 %v1871, %v1920
  %v1970 = vmax.f32 %v1872, %v1921
  %v1971 = vmax.f32 %v1873, %v1922
  %v1972 = vmax.f32 %v1874, %v1923
  %v1973 = vmax.f32 %v1875, %v1924
  %v1974 = vmax.f32 %v1876, %v1925
  %v1975 = vmax.f32 %v1877, %v1926
  %v1976 = vmax.f32 %v1878, %v1927
  %v1977 = vmax.f32 %v1879, %v1928
  %v1978 = vmax.f32 %v1880, %v1929
  %v1979 = vmax.f32 %v1881, %v1930
  %v1980 = vmax.f32 %v1882, %v1931
  %v1981 = vmax.f32 %v1883, %v1932
  %v1982 = vld [vmem:[%s2] sm:$0x1]
  %v1984 = vlaneseq
  %v1985 = vshrl.u32 %v1984, 7
  %v1986 = vsub.s32 0, %v1985
  %v1987 = vrot.slane %v1982, %v1986
  %v1989 = vadd.f32 %v1933, %v1987
  %v1990 = vadd.f32 %v1934, %v1987
  %v1991 = vadd.f32 %v1935, %v1987
  %v1992 = vadd.f32 %v1936, %v1987
  %v1993 = vadd.f32 %v1937, %v1987
  %v1994 = vadd.f32 %v1938, %v1987
  %v1995 = vadd.f32 %v1939, %v1987
  %v1996 = vadd.f32 %v1940, %v1987
  %v1997 = vadd.f32 %v1941, %v1987
  %v1998 = vadd.f32 %v1942, %v1987
  %v1999 = vadd.f32 %v1943, %v1987
  %v2000 = vadd.f32 %v1944, %v1987
  %v2001 = vadd.f32 %v1945, %v1987
  %v2002 = vadd.f32 %v1946, %v1987
  %v2003 = vadd.f32 %v1947, %v1987
  %v2004 = vadd.f32 %v1948, %v1987
  %v2005 = vadd.f32 %v1949, %v1987
  %v2006 = vadd.f32 %v1950, %v1987
  %v2007 = vadd.f32 %v1951, %v1987
  %v2008 = vadd.f32 %v1952, %v1987
  %v2009 = vadd.f32 %v1953, %v1987
  %v2010 = vadd.f32 %v1954, %v1987
  %v2011 = vadd.f32 %v1955, %v1987
  %v2012 = vadd.f32 %v1956, %v1987
  %v2013 = vadd.f32 %v1957, %v1987
  %v2014 = vadd.f32 %v1958, %v1987
  %v2015 = vadd.f32 %v1959, %v1987
  %v2016 = vadd.f32 %v1960, %v1987
  %v2017 = vadd.f32 %v1961, %v1987
  %v2018 = vadd.f32 %v1962, %v1987
  %v2019 = vadd.f32 %v1963, %v1987
  %v2020 = vadd.f32 %v1964, %v1987
  %v2021 = vadd.f32 %v1965, %v1987
  %v2022 = vadd.f32 %v1966, %v1987
  %v2023 = vadd.f32 %v1967, %v1987
  %v2024 = vadd.f32 %v1968, %v1987
  %v2025 = vadd.f32 %v1969, %v1987
  %v2026 = vadd.f32 %v1970, %v1987
  %v2027 = vadd.f32 %v1971, %v1987
  %v2028 = vadd.f32 %v1972, %v1987
  %v2029 = vadd.f32 %v1973, %v1987
  %v2030 = vadd.f32 %v1974, %v1987
  %v2031 = vadd.f32 %v1975, %v1987
  %v2032 = vadd.f32 %v1976, %v1987
  %v2033 = vadd.f32 %v1977, %v1987
  %v2034 = vadd.f32 %v1978, %v1987
  %v2035 = vadd.f32 %v1979, %v1987
  %v2036 = vadd.f32 %v1980, %v1987
  %v2037 = vadd.f32 %v1981, %v1987
  %v2038 = vmax.f32 %v1989, 0.0
  %v2039 = vmax.f32 %v1990, 0.0
  %v2040 = vmax.f32 %v1991, 0.0
  %v2041 = vmax.f32 %v1992, 0.0
  %v2042 = vmax.f32 %v1993, 0.0
  %v2043 = vmax.f32 %v1994, 0.0
  %v2044 = vmax.f32 %v1995, 0.0
  %v2045 = vmax.f32 %v1996, 0.0
  %v2046 = vmax.f32 %v1997, 0.0
  %v2047 = vmax.f32 %v1998, 0.0
  %v2048 = vmax.f32 %v1999, 0.0
  %v2049 = vmax.f32 %v2000, 0.0
  %v2050 = vmax.f32 %v2001, 0.0
  %v2051 = vmax.f32 %v2002, 0.0
  %v2052 = vmax.f32 %v2003, 0.0
  %v2053 = vmax.f32 %v2004, 0.0
  %v2054 = vmax.f32 %v2005, 0.0
  %v2055 = vmax.f32 %v2006, 0.0
  %v2056 = vmax.f32 %v2007, 0.0
  %v2057 = vmax.f32 %v2008, 0.0
  %v2058 = vmax.f32 %v2009, 0.0
  %v2059 = vmax.f32 %v2010, 0.0
  %v2060 = vmax.f32 %v2011, 0.0
  %v2061 = vmax.f32 %v2012, 0.0
  %v2062 = vmax.f32 %v2013, 0.0
  %v2063 = vmax.f32 %v2014, 0.0
  %v2064 = vmax.f32 %v2015, 0.0
  %v2065 = vmax.f32 %v2016, 0.0
  %v2066 = vmax.f32 %v2017, 0.0
  %v2067 = vmax.f32 %v2018, 0.0
  %v2068 = vmax.f32 %v2019, 0.0
  %v2069 = vmax.f32 %v2020, 0.0
  %v2070 = vmax.f32 %v2021, 0.0
  %v2071 = vmax.f32 %v2022, 0.0
  %v2072 = vmax.f32 %v2023, 0.0
  %v2073 = vmax.f32 %v2024, 0.0
  %v2074 = vmax.f32 %v2025, 0.0
  %v2075 = vmax.f32 %v2026, 0.0
  %v2076 = vmax.f32 %v2027, 0.0
  %v2077 = vmax.f32 %v2028, 0.0
  %v2078 = vmax.f32 %v2029, 0.0
  %v2079 = vmax.f32 %v2030, 0.0
  %v2080 = vmax.f32 %v2031, 0.0
  %v2081 = vmax.f32 %v2032, 0.0
  %v2082 = vmax.f32 %v2033, 0.0
  %v2083 = vmax.f32 %v2034, 0.0
  %v2084 = vmax.f32 %v2035, 0.0
  %v2085 = vmax.f32 %v2036, 0.0
  %v2086 = vmax.f32 %v2037, 0.0
  %2087 = vst [vmem:[%s3] sm:$0xff] %v2038
  %2088 = vst [vmem:[%s3 + $0x8] sm:$0xff] %v2039
  %2089 = vst [vmem:[%s3 + $0x10] sm:$0xff] %v2040
  %2090 = vst [vmem:[%s3 + $0x18] sm:$0xff] %v2041
  %2091 = vst [vmem:[%s3 + $0x20] sm:$0xff] %v2042
  %2092 = vst [vmem:[%s3 + $0x28] sm:$0xff] %v2043
  %2093 = vst [vmem:[%s3 + $0x30] sm:$0xff] %v2044
  %2094 = vst [vmem:[%s3 + $0x38] sm:$0xff] %v2045
  %2095 = vst [vmem:[%s3 + $0x40] sm:$0xff] %v2046
  %2096 = vst [vmem:[%s3 + $0x48] sm:$0xff] %v2047
  %2097 = vst [vmem:[%s3 + $0x50] sm:$0xff] %v2048
  %2098 = vst [vmem:[%s3 + $0x58] sm:$0xff] %v2049
  %2099 = vst [vmem:[%s3 + $0x60] sm:$0xff] %v2050
  %2100 = vst [vmem:[%s3 + $0x68] sm:$0xff] %v2051
  %2101 = vst [vmem:[%s3 + $0x70] sm:$0xff] %v2052
  %2102 = vst [vmem:[%s3 + $0x78] sm:$0xff] %v2053
  %2103 = vst [vmem:[%s3 + $0x80] sm:$0xff] %v2054
  %2104 = vst [vmem:[%s3 + $0x88] sm:$0xff] %v2055
  %2105 = vst [vmem:[%s3 + $0x90] sm:$0xff] %v2056
  %2106 = vst [vmem:[%s3 + $0x98] sm:$0xff] %v2057
  %2107 = vst [vmem:[%s3 + $0xa0] sm:$0xff] %v2058
  %2108 = vst [vmem:[%s3 + $0xa8] sm:$0xff] %v2059
  %2109 = vst [vmem:[%s3 + $0xb0] sm:$0xff] %v2060
  %2110 = vst [vmem:[%s3 + $0xb8] sm:$0xff] %v2061
  %2111 = vst [vmem:[%s3 + $0xc0] sm:$0xff] %v2062
  %2112 = vst [vmem:[%s3 + $0xc8] sm:$0xff] %v2063
  %2113 = vst [vmem:[%s3 + $0xd0] sm:$0xff] %v2064
  %2114 = vst [vmem:[%s3 + $0xd8] sm:$0xff] %v2065
  %2115 = vst [vmem:[%s3 + $0xe0] sm:$0xff] %v2066
  %2116 = vst [vmem:[%s3 + $0xe8] sm:$0xff] %v2067
  %2117 = vst [vmem:[%s3 + $0xf0] sm:$0xff] %v2068
  %2118 = vst [vmem:[%s3 + $0xf8] sm:$0xff] %v2069
  %2119 = vst [vmem:[%s3 + $0x100] sm:$0xff] %v2070
  %2120 = vst [vmem:[%s3 + $0x108] sm:$0xff] %v2071
  %2121 = vst [vmem:[%s3 + $0x110] sm:$0xff] %v2072
  %2122 = vst [vmem:[%s3 + $0x118] sm:$0xff] %v2073
  %2123 = vst [vmem:[%s3 + $0x120] sm:$0xff] %v2074
  %2124 = vst [vmem:[%s3 + $0x128] sm:$0xff] %v2075
  %2125 = vst [vmem:[%s3 + $0x130] sm:$0xff] %v2076
  %2126 = vst [vmem:[%s3 + $0x138] sm:$0xff] %v2077
  %2127 = vst [vmem:[%s3 + $0x140] sm:$0xff] %v2078
  %2128 = vst [vmem:[%s3 + $0x148] sm:$0xff] %v2079
  %2129 = vst [vmem:[%s3 + $0x150] sm:$0xff] %v2080
  %2130 = vst [vmem:[%s3 + $0x158] sm:$0xff] %v2081
  %2131 = vst [vmem:[%s3 + $0x160] sm:$0xff] %v2082
  %2132 = vst [vmem:[%s3 + $0x168] sm:$0xff] %v2083
  %2133 = vst [vmem:[%s3 + $0x170] sm:$0xff] %v2084
  %2134 = vst [vmem:[%s3 + $0x178] sm:$0xff] %v2085
  %2135 = vst [vmem:[%s3 + $0x180] sm:$0xff] %v2086
  // Predicated region
  $region14: #{cnn2_forward.3} parent=0 // pred_check
    _
  $region15: #{cnn2_forward.3} parent=0 // pred_check_branch
    %2137 = sbr.rel (0) target = $region17
  $region16: #{cnn2_forward.3} parent=0 // pred_region
    _
  $region17: #{cnn2_forward.3} parent=0 // pred_fallthru
    _
  // Predicated region
  $region18: #{cnn2_forward.3} parent=0 // pred_check
    _
  $region19: #{cnn2_forward.3} parent=0 // pred_check_branch
    %2139 = sbr.rel (0) target = $region21
  $region20: #{cnn2_forward.3} parent=0 // pred_region
    _
  $region21: #{cnn2_forward.3} parent=0 // pred_fallthru
    _

// kernel: cnn2_forward.4
$region0: #{cnn2_forward.4}
  #allocation0 [shape = 'u32[]', space=smem, size = 0x4, offset = 0x4, fixed_abs, tag = 'smem constant byte address 0x4 - core index']
  #allocation1 [shape = 'u32[144,128]{1,0:T(1,128)}', space=vmem, size = 0x12000, scoped, tag = 'internal scratch']
  %s0 = inlined_call_operand.vmem [shape: bf16[416,150], index: 0, kind: input, shape index: {}]
  %s1 = inlined_call_operand.vmem [shape: bf16[150,128], index: 1, kind: input, shape index: {}]
  %s2 = inlined_call_operand.vmem [shape: f32[1,128], index: 2, kind: input, shape index: {}]
  %s3 = inlined_call_operand.vmem [shape: f32[104,128], index: 3, kind: output, shape index: {}]
  %s4 = sld [smem:[#allocation0]]
  $region22: #{cnn2_forward.4} parent=0
    _
  %s6 = ssub.s32 1, %s4
  %s7 = scalar_select 0, %s6, %s4
  // Predicated region
  $region2: #{cnn2_forward.4} parent=0 // pred_check
    _
  $region3: #{cnn2_forward.4} parent=0 // pred_check_branch
    %9 = sbr.rel (0) target = $region5
  $region4: #{cnn2_forward.4} parent=0 // pred_region
    _
  $region5: #{cnn2_forward.4} parent=0 // pred_fallthru
    _
  // Predicated region
  $region6: #{cnn2_forward.4} parent=0 // pred_check
    _
  $region7: #{cnn2_forward.4} parent=0 // pred_check_branch
    %11 = sbr.rel (0) target = $region9
  $region8: #{cnn2_forward.4} parent=0 // pred_region
    _
  $region9: #{cnn2_forward.4} parent=0 // pred_fallthru
    _
  // Predicated region
  $region10: #{cnn2_forward.4} parent=0 // pred_check
    _
  $region11: #{cnn2_forward.4} parent=0 // pred_check_branch
    %13 = sbr.rel (0) target = $region13
  $region12: #{cnn2_forward.4} parent=0 // pred_region
    _
  $region13: #{cnn2_forward.4} parent=0 // pred_fallthru
    _
  %v15 = vld [vmem:[%s0] sm:$0xff]
  %v16 = vld [vmem:[%s0 + $0x8] sm:$0xff]
  %v17 = vld [vmem:[%s0 + $0x10] sm:$0xff]
  %v18 = vld [vmem:[%s0 + $0x18] sm:$0xff]
  %v19 = vld [vmem:[%s0 + $0x20] sm:$0xff]
  %v20 = vld [vmem:[%s0 + $0x28] sm:$0xff]
  %v21 = vld [vmem:[%s0 + $0x30] sm:$0xff]
  %v22 = vld [vmem:[%s0 + $0x38] sm:$0xff]
  %v23 = vld [vmem:[%s0 + $0x40] sm:$0xff]
  %v24 = vld [vmem:[%s0 + $0x48] sm:$0xff]
  %v25 = vld [vmem:[%s0 + $0x50] sm:$0xff]
  %v26 = vld [vmem:[%s0 + $0x58] sm:$0xff]
  %v27 = vld [vmem:[%s0 + $0x60] sm:$0xff]
  %v28 = vld [vmem:[%s0 + $0x68] sm:$0xff]
  %v29 = vld [vmem:[%s0 + $0x70] sm:$0xff]
  %v30 = vld [vmem:[%s0 + $0x78] sm:$0xff]
  %v31 = vld [vmem:[%s0 + $0x80] sm:$0xff]
  %v32 = vld [vmem:[%s0 + $0x88] sm:$0xff]
  %v33 = vld [vmem:[%s0 + $0x90] sm:$0xff]
  %v34 = vld [vmem:[%s0 + $0x98] sm:$0xff]
  %v35 = vld [vmem:[%s0 + $0xa0] sm:$0xff]
  %v36 = vld [vmem:[%s0 + $0xa8] sm:$0xff]
  %v37 = vld [vmem:[%s0 + $0xb0] sm:$0xff]
  %v38 = vld [vmem:[%s0 + $0xb8] sm:$0xff]
  %v39 = vld [vmem:[%s0 + $0xc0] sm:$0xff]
  %v40 = vld [vmem:[%s0 + $0xc8] sm:$0xff]
  %v41 = vld [vmem:[%s0 + $0xd0] sm:$0xff]
  %v42 = vld [vmem:[%s0 + $0xd8] sm:$0xff]
  %v43 = vld [vmem:[%s0 + $0xe0] sm:$0xff]
  %v44 = vld [vmem:[%s0 + $0xe8] sm:$0xff]
  %v45 = vld [vmem:[%s0 + $0xf0] sm:$0xff]
  %v46 = vld [vmem:[%s0 + $0xf8] sm:$0xff]
  %v47 = vld [vmem:[%s0 + $0x100] sm:$0xff]
  %v48 = vld [vmem:[%s0 + $0x108] sm:$0xff]
  %v49 = vld [vmem:[%s0 + $0x110] sm:$0xff]
  %v50 = vld [vmem:[%s0 + $0x118] sm:$0xff]
  %v51 = vld [vmem:[%s0 + $0x120] sm:$0xff]
  %v52 = vld [vmem:[%s0 + $0x128] sm:$0xff]
  %v53 = vld [vmem:[%s0 + $0x130] sm:$0xff]
  %v54 = vld [vmem:[%s0 + $0x138] sm:$0xff]
  %v55 = vld [vmem:[%s0 + $0x140] sm:$0xff]
  %v56 = vld [vmem:[%s0 + $0x148] sm:$0xff]
  %v57 = vld [vmem:[%s0 + $0x150] sm:$0xff]
  %v58 = vld [vmem:[%s0 + $0x158] sm:$0xff]
  %v59 = vld [vmem:[%s0 + $0x160] sm:$0xff]
  %v60 = vld [vmem:[%s0 + $0x168] sm:$0xff]
  %v61 = vld [vmem:[%s0 + $0x170] sm:$0xff]
  %v62 = vld [vmem:[%s0 + $0x178] sm:$0xff]
  %v63 = vld [vmem:[%s0 + $0x180] sm:$0xff]
  %v64 = vld [vmem:[%s0 + $0x188] sm:$0xff]
  %v65 = vld [vmem:[%s0 + $0x190] sm:$0xff]
  %v66 = vld [vmem:[%s0 + $0x198] sm:$0xff]
  %v67 = vld [vmem:[%s1] sm:$0xf]
  %v68 = vld [vmem:[%s1 + $0x4] sm:$0xf]
  %v69 = vld [vmem:[%s1 + $0x8] sm:$0xf]
  %v70 = vld [vmem:[%s1 + $0xc] sm:$0xf]
  %v71 = vld [vmem:[%s1 + $0x10] sm:$0xf]
  %v72 = vld [vmem:[%s1 + $0x14] sm:$0xf]
  %v73 = vld [vmem:[%s1 + $0x18] sm:$0xf]
  %v74 = vld [vmem:[%s1 + $0x1c] sm:$0xf]
  %v75 = vld [vmem:[%s1 + $0x20] sm:$0xf]
  %v76 = vld [vmem:[%s1 + $0x24] sm:$0xf]
  %v77 = vld [vmem:[%s1 + $0x28] sm:$0xf]
  %v78 = vld [vmem:[%s1 + $0x2c] sm:$0xf]
  %v79 = vld [vmem:[%s1 + $0x30] sm:$0xf]
  %v80 = vld [vmem:[%s1 + $0x34] sm:$0xf]
  %v81 = vld [vmem:[%s1 + $0x38] sm:$0xf]
  %v82 = vld [vmem:[%s1 + $0x3c] sm:$0xf]
  %v83 = vld [vmem:[%s1 + $0x40] sm:$0xf]
  %v84 = vld [vmem:[%s1 + $0x44] sm:$0xf]
  %v85 = vld [vmem:[%s1 + $0x48] sm:$0x7]
  %v138 = vunpack.c.l.b16 %v15
  %v139 = vunpack.c.h.b16 %v15
  %v140 = vunpack.c.l.b16 %v16
  %v141 = vunpack.c.h.b16 %v16
  %v142 = vunpack.c.l.b16 %v17
  %v143 = vunpack.c.h.b16 %v17
  %v144 = vunpack.c.l.b16 %v18
  %v145 = vunpack.c.h.b16 %v18
  %v146 = vunpack.c.l.b16 %v19
  %v147 = vunpack.c.h.b16 %v19
  %v148 = vunpack.c.l.b16 %v20
  %v149 = vunpack.c.h.b16 %v20
  %v150 = vunpack.c.l.b16 %v21
  %v151 = vunpack.c.h.b16 %v21
  %v152 = vunpack.c.l.b16 %v22
  %v153 = vunpack.c.h.b16 %v22
  %v154 = vunpack.c.l.b16 %v23
  %v155 = vunpack.c.h.b16 %v23
  %v156 = vunpack.c.l.b16 %v24
  %v157 = vunpack.c.h.b16 %v24
  %v158 = vunpack.c.l.b16 %v25
  %v159 = vunpack.c.h.b16 %v25
  %v160 = vunpack.c.l.b16 %v26
  %v161 = vunpack.c.h.b16 %v26
  %v162 = vunpack.c.l.b16 %v27
  %v163 = vunpack.c.h.b16 %v27
  %v164 = vunpack.c.l.b16 %v28
  %v165 = vunpack.c.h.b16 %v28
  %v166 = vunpack.c.l.b16 %v29
  %v167 = vunpack.c.h.b16 %v29
  %v168 = vunpack.c.l.b16 %v30
  %v169 = vunpack.c.h.b16 %v30
  %v170 = vunpack.c.l.b16 %v31
  %v171 = vunpack.c.h.b16 %v31
  %v172 = vunpack.c.l.b16 %v32
  %v173 = vunpack.c.h.b16 %v32
  %v174 = vunpack.c.l.b16 %v33
  %v175 = vunpack.c.h.b16 %v33
  %v176 = vunpack.c.l.b16 %v34
  %v177 = vunpack.c.h.b16 %v34
  %v178 = vunpack.c.l.b16 %v35
  %v179 = vunpack.c.h.b16 %v35
  %v180 = vunpack.c.l.b16 %v36
  %v181 = vunpack.c.h.b16 %v36
  %v182 = vunpack.c.l.b16 %v37
  %v183 = vunpack.c.h.b16 %v37
  %v184 = vunpack.c.l.b16 %v38
  %v185 = vunpack.c.h.b16 %v38
  %v186 = vunpack.c.l.b16 %v39
  %v187 = vunpack.c.h.b16 %v39
  %v188 = vunpack.c.l.b16 %v40
  %v189 = vunpack.c.h.b16 %v40
  %v190 = vunpack.c.l.b16 %v41
  %v191 = vunpack.c.h.b16 %v41
  %v192 = vunpack.c.l.b16 %v42
  %v193 = vunpack.c.h.b16 %v42
  %v194 = vunpack.c.l.b16 %v43
  %v195 = vunpack.c.h.b16 %v43
  %v196 = vunpack.c.l.b16 %v44
  %v197 = vunpack.c.h.b16 %v44
  %v198 = vunpack.c.l.b16 %v45
  %v199 = vunpack.c.h.b16 %v45
  %v200 = vunpack.c.l.b16 %v46
  %v201 = vunpack.c.h.b16 %v46
  %v202 = vunpack.c.l.b16 %v47
  %v203 = vunpack.c.h.b16 %v47
  %v204 = vunpack.c.l.b16 %v48
  %v205 = vunpack.c.h.b16 %v48
  %v206 = vunpack.c.l.b16 %v49
  %v207 = vunpack.c.h.b16 %v49
  %v208 = vunpack.c.l.b16 %v50
  %v209 = vunpack.c.h.b16 %v50
  %v210 = vunpack.c.l.b16 %v51
  %v211 = vunpack.c.h.b16 %v51
  %v212 = vunpack.c.l.b16 %v52
  %v213 = vunpack.c.h.b16 %v52
  %v214 = vunpack.c.l.b16 %v53
  %v215 = vunpack.c.h.b16 %v53
  %v216 = vunpack.c.l.b16 %v54
  %v217 = vunpack.c.h.b16 %v54
  %v218 = vunpack.c.l.b16 %v55
  %v219 = vunpack.c.h.b16 %v55
  %v220 = vunpack.c.l.b16 %v56
  %v221 = vunpack.c.h.b16 %v56
  %v222 = vunpack.c.l.b16 %v57
  %v223 = vunpack.c.h.b16 %v57
  %v224 = vunpack.c.l.b16 %v58
  %v225 = vunpack.c.h.b16 %v58
  %v226 = vunpack.c.l.b16 %v59
  %v227 = vunpack.c.h.b16 %v59
  %v228 = vunpack.c.l.b16 %v60
  %v229 = vunpack.c.h.b16 %v60
  %v230 = vunpack.c.l.b16 %v61
  %v231 = vunpack.c.h.b16 %v61
  %v232 = vunpack.c.l.b16 %v62
  %v233 = vunpack.c.h.b16 %v62
  %v234 = vunpack.c.l.b16 %v63
  %v235 = vunpack.c.h.b16 %v63
  %v236 = vunpack.c.l.b16 %v64
  %v237 = vunpack.c.h.b16 %v64
  %v238 = vunpack.c.l.b16 %v65
  %v239 = vunpack.c.h.b16 %v65
  %v240 = vunpack.c.l.b16 %v66
  %v241 = vunpack.c.h.b16 %v66
  %v242 = vpack.c.b16 %v140, %v138
  %v243 = vpack.c.b16 %v141, %v139
  %v244 = vpack.c.b16 %v144, %v142
  %v245 = vpack.c.b16 %v145, %v143
  %v246 = vpack.c.b16 %v148, %v146
  %v247 = vpack.c.b16 %v149, %v147
  %v248 = vpack.c.b16 %v152, %v150
  %v249 = vpack.c.b16 %v153, %v151
  %v250 = vpack.c.b16 %v156, %v154
  %v251 = vpack.c.b16 %v157, %v155
  %v252 = vpack.c.b16 %v160, %v158
  %v253 = vpack.c.b16 %v161, %v159
  %v254 = vpack.c.b16 %v164, %v162
  %v255 = vpack.c.b16 %v165, %v163
  %v256 = vpack.c.b16 %v168, %v166
  %v257 = vpack.c.b16 %v169, %v167
  %v258 = vpack.c.b16 %v172, %v170
  %v259 = vpack.c.b16 %v173, %v171
  %v260 = vpack.c.b16 %v176, %v174
  %v261 = vpack.c.b16 %v177, %v175
  %v262 = vpack.c.b16 %v180, %v178
  %v263 = vpack.c.b16 %v181, %v179
  %v264 = vpack.c.b16 %v184, %v182
  %v265 = vpack.c.b16 %v185, %v183
  %v266 = vpack.c.b16 %v188, %v186
  %v267 = vpack.c.b16 %v189, %v187
  %v268 = vpack.c.b16 %v192, %v190
  %v269 = vpack.c.b16 %v193, %v191
  %v270 = vpack.c.b16 %v196, %v194
  %v271 = vpack.c.b16 %v197, %v195
  %v272 = vpack.c.b16 %v200, %v198
  %v273 = vpack.c.b16 %v201, %v199
  %v274 = vpack.c.b16 %v204, %v202
  %v275 = vpack.c.b16 %v205, %v203
  %v276 = vpack.c.b16 %v208, %v206
  %v277 = vpack.c.b16 %v209, %v207
  %v278 = vpack.c.b16 %v212, %v210
  %v279 = vpack.c.b16 %v213, %v211
  %v280 = vpack.c.b16 %v216, %v214
  %v281 = vpack.c.b16 %v217, %v215
  %v282 = vpack.c.b16 %v220, %v218
  %v283 = vpack.c.b16 %v221, %v219
  %v284 = vpack.c.b16 %v224, %v222
  %v285 = vpack.c.b16 %v225, %v223
  %v286 = vpack.c.b16 %v228, %v226
  %v287 = vpack.c.b16 %v229, %v227
  %v288 = vpack.c.b16 %v232, %v230
  %v289 = vpack.c.b16 %v233, %v231
  %v290 = vpack.c.b16 %v236, %v234
  %v291 = vpack.c.b16 %v237, %v235
  %v292 = vpack.c.b16 %v240, %v238
  %v293 = vpack.c.b16 %v241, %v239
  %v339 = vunpack.c.l.b16 %v67
  %v340 = vunpack.c.l.b16 %v68
  %v341 = vunpack.c.l.b16 %v69
  %v342 = vunpack.c.l.b16 %v70
  %v343 = vunpack.c.l.b16 %v71
  %v344 = vunpack.c.l.b16 %v72
  %v345 = vunpack.c.l.b16 %v73
  %v346 = vunpack.c.l.b16 %v74
  %v347 = vunpack.c.l.b16 %v75
  %v348 = vunpack.c.l.b16 %v76
  %v349 = vunpack.c.l.b16 %v77
  %v350 = vunpack.c.l.b16 %v78
  %v351 = vunpack.c.l.b16 %v79
  %v352 = vunpack.c.l.b16 %v80
  %v353 = vunpack.c.l.b16 %v81
  %v354 = vunpack.c.l.b16 %v82
  %v355 = vunpack.c.l.b16 %v83
  %v356 = vunpack.c.l.b16 %v84
  %v357 = vunpack.c.l.b16 %v85
  %v358 = vpack.c.b16 %v340, %v339
  %v359 = vpack.c.b16 %v342, %v341
  %v360 = vpack.c.b16 %v344, %v343
  %v361 = vpack.c.b16 %v346, %v345
  %v362 = vpack.c.b16 %v348, %v347
  %v363 = vpack.c.b16 %v350, %v349
  %v364 = vpack.c.b16 %v352, %v351
  %v365 = vpack.c.b16 %v354, %v353
  %v366 = vpack.c.b16 %v356, %v355
  %v367 = vpack.c.b16 %v357, %v357
  %vm377 = vcmask 179200
  %v379 = vsel %vm377, %v243, 0
  %v382 = vsel %vm377, %v245, 0
  %v385 = vsel %vm377, %v247, 0
  %v388 = vsel %vm377, %v249, 0
  %v391 = vsel %vm377, %v251, 0
  %v394 = vsel %vm377, %v253, 0
  %v397 = vsel %vm377, %v255, 0
  %v400 = vsel %vm377, %v257, 0
  %v403 = vsel %vm377, %v259, 0
  %v406 = vsel %vm377, %v261, 0
  %v409 = vsel %vm377, %v263, 0
  %v412 = vsel %vm377, %v265, 0
  %v415 = vsel %vm377, %v267, 0
  %v418 = vsel %vm377, %v269, 0
  %v421 = vsel %vm377, %v271, 0
  %v424 = vsel %vm377, %v273, 0
  %v427 = vsel %vm377, %v275, 0
  %v430 = vsel %vm377, %v277, 0
  %v433 = vsel %vm377, %v279, 0
  %v436 = vsel %vm377, %v281, 0
  %v439 = vsel %vm377, %v283, 0
  %v442 = vsel %vm377, %v285, 0
  %v445 = vsel %vm377, %v287, 0
  %v448 = vsel %vm377, %v289, 0
  %v451 = vsel %vm377, %v291, 0
  %v454 = vsel %vm377, %v293, 0
  %vm456 = vcmask 1042432
  %v458 = vsel %vm456, %v367, 0
  %460 = vmatprep.subr.bf16.mxu0 0
  %461 = vmatpush1.bf16.msra.mxu0 %v358
  %462 = vmatprep.subr.bf16.mxu0 0
  %463 = vmatpush1.bf16.msra.mxu0 %v359
  %464 = vmatprep.subr.bf16.mxu0 0
  %465 = vmatpush1.bf16.msra.mxu0 %v360
  %466 = vmatprep.subr.bf16.mxu0 0
  %467 = vmatpush1.bf16.msra.mxu0 %v361
  %468 = vmatprep.subr.bf16.mxu0 0
  %469 = vmatpush1.bf16.msra.mxu0 %v362
  %470 = vmatprep.subr.bf16.mxu0 0
  %471 = vmatpush1.bf16.msra.mxu0 %v363
  %472 = vmatprep.subr.bf16.mxu0 0
  %473 = vmatpush1.bf16.msra.mxu0 %v364
  %474 = vmatprep.subr.bf16.mxu0 0
  %475 = vmatpush1.bf16.msra.mxu0 %v365
  %476 = vmatprep.subr.bf16.mxu0 0
  %477 = vmatpush1.bf16.msra.mxu0 %v366
  %478 = vmatprep.subr.bf16.mxu0 0
  %479 = vmatpush1.bf16.msra.mxu0 %v458
  %480 = vmatprep.subr.bf16.mxu0 0
  %481 = vmatpush1.bf16.msra.mxu0 0
  %482 = vmatprep.subr.bf16.mxu0 0
  %483 = vmatpush1.bf16.msra.mxu0 0
  %484 = vmatprep.subr.bf16.mxu0 0
  %485 = vmatpush1.bf16.msra.mxu0 0
  %486 = vmatprep.subr.bf16.mxu0 0
  %487 = vmatpush1.bf16.msra.mxu0 0
  %488 = vmatprep.subr.bf16.mxu0 0
  %489 = vmatpush1.bf16.msra.mxu0 0
  %490 = vmatprep.subr.bf16.mxu0 0
  %491 = vmatpush1.bf16.msra.mxu0 0
  %492 = vmatprep.mubr.bf16.mxu0 %v379
  %493 = vmatmul.mubr.bf16.gmra.mrb[0].mxu0 %v242
  %v494 = vpop.f32.mrb[0].mxu0
  %v495 = vadd.f32 0.0, %v494
  %v496 = vpop.f32.mrb[0].mxu0
  %v497 = vpop.f32.mrb[0].mxu0
  %v498 = vadd.f32 0.0, %v497
  %v499 = vpop.f32.mrb[0].mxu0
  %500 = vmatprep.mubr.bf16.mxu0 %v382
  %501 = vmatmul.mubr.bf16.gmra.mrb[0].mxu0 %v244
  %v502 = vpop.f32.mrb[0].mxu0
  %v503 = vadd.f32 0.0, %v502
  %v504 = vpop.f32.mrb[0].mxu0
  %v505 = vpop.f32.mrb[0].mxu0
  %v506 = vadd.f32 0.0, %v505
  %v507 = vpop.f32.mrb[0].mxu0
  %508 = vmatprep.mubr.bf16.mxu0 %v385
  %509 = vmatmul.mubr.bf16.gmra.mrb[0].mxu0 %v246
  %v510 = vpop.f32.mrb[0].mxu0
  %v511 = vadd.f32 0.0, %v510
  %v512 = vpop.f32.mrb[0].mxu0
  %v513 = vpop.f32.mrb[0].mxu0
  %v514 = vadd.f32 0.0, %v513
  %v515 = vpop.f32.mrb[0].mxu0
  %516 = vmatprep.mubr.bf16.mxu0 %v388
  %517 = vmatmul.mubr.bf16.gmra.mrb[0].mxu0 %v248
  %v518 = vpop.f32.mrb[0].mxu0
  %v519 = vadd.f32 0.0, %v518
  %v520 = vpop.f32.mrb[0].mxu0
  %v521 = vpop.f32.mrb[0].mxu0
  %v522 = vadd.f32 0.0, %v521
  %v523 = vpop.f32.mrb[0].mxu0
  %524 = vmatprep.mubr.bf16.mxu0 %v391
  %525 = vmatmul.mubr.bf16.gmra.mrb[0].mxu0 %v250
  %v526 = vpop.f32.mrb[0].mxu0
  %v527 = vadd.f32 0.0, %v526
  %v528 = vpop.f32.mrb[0].mxu0
  %v529 = vpop.f32.mrb[0].mxu0
  %v530 = vadd.f32 0.0, %v529
  %v531 = vpop.f32.mrb[0].mxu0
  %532 = vmatprep.mubr.bf16.mxu0 %v394
  %533 = vmatmul.mubr.bf16.gmra.mrb[0].mxu0 %v252
  %v534 = vpop.f32.mrb[0].mxu0
  %v535 = vadd.f32 0.0, %v534
  %v536 = vpop.f32.mrb[0].mxu0
  %v537 = vpop.f32.mrb[0].mxu0
  %v538 = vadd.f32 0.0, %v537
  %v539 = vpop.f32.mrb[0].mxu0
  %540 = vmatprep.mubr.bf16.mxu0 %v397
  %541 = vmatmul.mubr.bf16.gmra.mrb[0].mxu0 %v254
  %v542 = vpop.f32.mrb[0].mxu0
  %v543 = vadd.f32 0.0, %v542
  %v544 = vpop.f32.mrb[0].mxu0
  %v545 = vpop.f32.mrb[0].mxu0
  %v546 = vadd.f32 0.0, %v545
  %v547 = vpop.f32.mrb[0].mxu0
  %548 = vmatprep.mubr.bf16.mxu0 %v400
  %549 = vmatmul.mubr.bf16.gmra.mrb[0].mxu0 %v256
  %v550 = vpop.f32.mrb[0].mxu0
  %v551 = vadd.f32 0.0, %v550
  %v552 = vpop.f32.mrb[0].mxu0
  %v553 = vpop.f32.mrb[0].mxu0
  %v554 = vadd.f32 0.0, %v553
  %v555 = vpop.f32.mrb[0].mxu0
  %556 = vmatprep.mubr.bf16.mxu0 %v403
  %557 = vmatmul.mubr.bf16.gmra.mrb[0].mxu0 %v258
  %v558 = vpop.f32.mrb[0].mxu0
  %v559 = vadd.f32 0.0, %v558
  %v560 = vpop.f32.mrb[0].mxu0
  %v561 = vpop.f32.mrb[0].mxu0
  %v562 = vadd.f32 0.0, %v561
  %v563 = vpop.f32.mrb[0].mxu0
  %564 = vmatprep.mubr.bf16.mxu0 %v406
  %565 = vmatmul.mubr.bf16.gmra.mrb[0].mxu0 %v260
  %v566 = vpop.f32.mrb[0].mxu0
  %v567 = vadd.f32 0.0, %v566
  %v568 = vpop.f32.mrb[0].mxu0
  %v569 = vpop.f32.mrb[0].mxu0
  %v570 = vadd.f32 0.0, %v569
  %v571 = vpop.f32.mrb[0].mxu0
  %572 = vmatprep.mubr.bf16.mxu0 %v409
  %573 = vmatmul.mubr.bf16.gmra.mrb[0].mxu0 %v262
  %v574 = vpop.f32.mrb[0].mxu0
  %v575 = vadd.f32 0.0, %v574
  %v576 = vpop.f32.mrb[0].mxu0
  %v577 = vpop.f32.mrb[0].mxu0
  %v578 = vadd.f32 0.0, %v577
  %v579 = vpop.f32.mrb[0].mxu0
  %580 = vmatprep.mubr.bf16.mxu0 %v412
  %581 = vmatmul.mubr.bf16.gmra.mrb[0].mxu0 %v264
  %v582 = vpop.f32.mrb[0].mxu0
  %v583 = vadd.f32 0.0, %v582
  %v584 = vpop.f32.mrb[0].mxu0
  %v585 = vpop.f32.mrb[0].mxu0
  %v586 = vadd.f32 0.0, %v585
  %v587 = vpop.f32.mrb[0].mxu0
  %588 = vmatprep.mubr.bf16.mxu0 %v415
  %589 = vmatmul.mubr.bf16.gmra.mrb[0].mxu0 %v266
  %v590 = vpop.f32.mrb[0].mxu0
  %v591 = vadd.f32 0.0, %v590
  %v592 = vpop.f32.mrb[0].mxu0
  %v593 = vpop.f32.mrb[0].mxu0
  %v594 = vadd.f32 0.0, %v593
  %v595 = vpop.f32.mrb[0].mxu0
  %596 = vmatprep.mubr.bf16.mxu0 %v418
  %597 = vmatmul.mubr.bf16.gmra.mrb[0].mxu0 %v268
  %v598 = vpop.f32.mrb[0].mxu0
  %v599 = vadd.f32 0.0, %v598
  %v600 = vpop.f32.mrb[0].mxu0
  %v601 = vpop.f32.mrb[0].mxu0
  %v602 = vadd.f32 0.0, %v601
  %v603 = vpop.f32.mrb[0].mxu0
  %604 = vmatprep.mubr.bf16.mxu0 %v421
  %605 = vmatmul.mubr.bf16.gmra.mrb[0].mxu0 %v270
  %v606 = vpop.f32.mrb[0].mxu0
  %v607 = vadd.f32 0.0, %v606
  %v608 = vpop.f32.mrb[0].mxu0
  %v609 = vpop.f32.mrb[0].mxu0
  %v610 = vadd.f32 0.0, %v609
  %v611 = vpop.f32.mrb[0].mxu0
  %612 = vmatprep.mubr.bf16.mxu0 %v424
  %613 = vmatmul.mubr.bf16.gmra.mrb[0].mxu0 %v272
  %v614 = vpop.f32.mrb[0].mxu0
  %v615 = vadd.f32 0.0, %v614
  %v616 = vpop.f32.mrb[0].mxu0
  %v617 = vpop.f32.mrb[0].mxu0
  %v618 = vadd.f32 0.0, %v617
  %v619 = vpop.f32.mrb[0].mxu0
  %620 = vmatprep.mubr.bf16.mxu0 %v427
  %621 = vmatmul.mubr.bf16.gmra.mrb[0].mxu0 %v274
  %v622 = vpop.f32.mrb[0].mxu0
  %v623 = vadd.f32 0.0, %v622
  %v624 = vpop.f32.mrb[0].mxu0
  %v625 = vpop.f32.mrb[0].mxu0
  %v626 = vadd.f32 0.0, %v625
  %v627 = vpop.f32.mrb[0].mxu0
  %628 = vmatprep.mubr.bf16.mxu0 %v430
  %629 = vmatmul.mubr.bf16.gmra.mrb[0].mxu0 %v276
  %v630 = vpop.f32.mrb[0].mxu0
  %v631 = vadd.f32 0.0, %v630
  %v632 = vpop.f32.mrb[0].mxu0
  %v633 = vpop.f32.mrb[0].mxu0
  %v634 = vadd.f32 0.0, %v633
  %v635 = vpop.f32.mrb[0].mxu0
  %636 = vmatprep.mubr.bf16.mxu0 %v433
  %637 = vmatmul.mubr.bf16.gmra.mrb[0].mxu0 %v278
  %v638 = vpop.f32.mrb[0].mxu0
  %v639 = vadd.f32 0.0, %v638
  %v640 = vpop.f32.mrb[0].mxu0
  %v641 = vpop.f32.mrb[0].mxu0
  %v642 = vadd.f32 0.0, %v641
  %v643 = vpop.f32.mrb[0].mxu0
  %644 = vmatprep.mubr.bf16.mxu0 %v436
  %645 = vmatmul.mubr.bf16.gmra.mrb[0].mxu0 %v280
  %v646 = vpop.f32.mrb[0].mxu0
  %v647 = vadd.f32 0.0, %v646
  %v648 = vpop.f32.mrb[0].mxu0
  %v649 = vpop.f32.mrb[0].mxu0
  %v650 = vadd.f32 0.0, %v649
  %v651 = vpop.f32.mrb[0].mxu0
  %652 = vmatprep.mubr.bf16.mxu0 %v439
  %653 = vmatmul.mubr.bf16.gmra.mrb[0].mxu0 %v282
  %v654 = vpop.f32.mrb[0].mxu0
  %v655 = vadd.f32 0.0, %v654
  %v656 = vpop.f32.mrb[0].mxu0
  %v657 = vpop.f32.mrb[0].mxu0
  %v658 = vadd.f32 0.0, %v657
  %v659 = vpop.f32.mrb[0].mxu0
  %660 = vmatprep.mubr.bf16.mxu0 %v442
  %661 = vmatmul.mubr.bf16.gmra.mrb[0].mxu0 %v284
  %v662 = vpop.f32.mrb[0].mxu0
  %v663 = vadd.f32 0.0, %v662
  %v664 = vpop.f32.mrb[0].mxu0
  %v665 = vpop.f32.mrb[0].mxu0
  %v666 = vadd.f32 0.0, %v665
  %v667 = vpop.f32.mrb[0].mxu0
  %668 = vmatprep.mubr.bf16.mxu0 %v445
  %669 = vmatmul.mubr.bf16.gmra.mrb[0].mxu0 %v286
  %v670 = vpop.f32.mrb[0].mxu0
  %v671 = vadd.f32 0.0, %v670
  %v672 = vpop.f32.mrb[0].mxu0
  %v673 = vpop.f32.mrb[0].mxu0
  %v674 = vadd.f32 0.0, %v673
  %v675 = vpop.f32.mrb[0].mxu0
  %676 = vmatprep.mubr.bf16.mxu0 %v448
  %677 = vmatmul.mubr.bf16.gmra.mrb[0].mxu0 %v288
  %v678 = vpop.f32.mrb[0].mxu0
  %v679 = vadd.f32 0.0, %v678
  %v680 = vpop.f32.mrb[0].mxu0
  %v681 = vpop.f32.mrb[0].mxu0
  %v682 = vadd.f32 0.0, %v681
  %v683 = vpop.f32.mrb[0].mxu0
  %684 = vmatprep.mubr.bf16.mxu0 %v451
  %685 = vmatmul.mubr.bf16.gmra.mrb[0].mxu0 %v290
  %v686 = vpop.f32.mrb[0].mxu0
  %v687 = vadd.f32 0.0, %v686
  %v688 = vpop.f32.mrb[0].mxu0
  %v689 = vpop.f32.mrb[0].mxu0
  %v690 = vadd.f32 0.0, %v689
  %v691 = vpop.f32.mrb[0].mxu0
  %692 = vmatprep.mubr.bf16.mxu0 %v454
  %693 = vmatmul.mubr.bf16.gmra.mrb[0].mxu0 %v292
  %v694 = vpop.f32.mrb[0].mxu0
  %v695 = vadd.f32 0.0, %v694
  %v696 = vpop.f32.mrb[0].mxu0
  %v697 = vpop.f32.mrb[0].mxu0
  %v698 = vadd.f32 0.0, %v697
  %v699 = vpop.f32.mrb[0].mxu0
  %700 = vdwg.mxu0
  %v701 = vmax.f32 %v495, %v546
  %v702 = vmax.f32 %v498, %v551
  %v703 = vmax.f32 %v503, %v554
  %v704 = vmax.f32 %v506, %v559
  %v705 = vmax.f32 %v511, %v562
  %v706 = vmax.f32 %v514, %v567
  %v707 = vmax.f32 %v519, %v570
  %v708 = vmax.f32 %v522, %v575
  %v709 = vmax.f32 %v527, %v578
  %v710 = vmax.f32 %v530, %v583
  %v711 = vmax.f32 %v535, %v586
  %v712 = vmax.f32 %v538, %v591
  %v713 = vmax.f32 %v543, %v594
  %v714 = vmax.f32 %v599, %v650
  %v715 = vmax.f32 %v602, %v655
  %v716 = vmax.f32 %v607, %v658
  %v717 = vmax.f32 %v610, %v663
  %v718 = vmax.f32 %v615, %v666
  %v719 = vmax.f32 %v618, %v671
  %v720 = vmax.f32 %v623, %v674
  %v721 = vmax.f32 %v626, %v679
  %v722 = vmax.f32 %v631, %v682
  %v723 = vmax.f32 %v634, %v687
  %v724 = vmax.f32 %v639, %v690
  %v725 = vmax.f32 %v642, %v695
  %v726 = vmax.f32 %v647, %v698
  %v727 = vmax.f32 %v701, %v714
  %v728 = vmax.f32 %v702, %v715
  %v729 = vmax.f32 %v703, %v716
  %v730 = vmax.f32 %v704, %v717
  %v731 = vmax.f32 %v705, %v718
  %v732 = vmax.f32 %v706, %v719
  %v733 = vmax.f32 %v707, %v720
  %v734 = vmax.f32 %v708, %v721
  %v735 = vmax.f32 %v709, %v722
  %v736 = vmax.f32 %v710, %v723
  %v737 = vmax.f32 %v711, %v724
  %v738 = vmax.f32 %v712, %v725
  %v739 = vmax.f32 %v713, %v726
  %v740 = vld [vmem:[%s2] sm:$0x1]
  %v742 = vlaneseq
  %v743 = vshrl.u32 %v742, 7
  %v744 = vsub.s32 0, %v743
  %v745 = vrot.slane %v740, %v744
  %v747 = vadd.f32 %v727, %v745
  %v748 = vadd.f32 %v728, %v745
  %v749 = vadd.f32 %v729, %v745
  %v750 = vadd.f32 %v730, %v745
  %v751 = vadd.f32 %v731, %v745
  %v752 = vadd.f32 %v732, %v745
  %v753 = vadd.f32 %v733, %v745
  %v754 = vadd.f32 %v734, %v745
  %v755 = vadd.f32 %v735, %v745
  %v756 = vadd.f32 %v736, %v745
  %v757 = vadd.f32 %v737, %v745
  %v758 = vadd.f32 %v738, %v745
  %v759 = vadd.f32 %v739, %v745
  %v760 = vmax.f32 %v747, 0.0
  %v761 = vmax.f32 %v748, 0.0
  %v762 = vmax.f32 %v749, 0.0
  %v763 = vmax.f32 %v750, 0.0
  %v764 = vmax.f32 %v751, 0.0
  %v765 = vmax.f32 %v752, 0.0
  %v766 = vmax.f32 %v753, 0.0
  %v767 = vmax.f32 %v754, 0.0
  %v768 = vmax.f32 %v755, 0.0
  %v769 = vmax.f32 %v756, 0.0
  %v770 = vmax.f32 %v757, 0.0
  %v771 = vmax.f32 %v758, 0.0
  %v772 = vmax.f32 %v759, 0.0
  %773 = vst [vmem:[%s3] sm:$0xff] %v760
  %774 = vst [vmem:[%s3 + $0x8] sm:$0xff] %v761
  %775 = vst [vmem:[%s3 + $0x10] sm:$0xff] %v762
  %776 = vst [vmem:[%s3 + $0x18] sm:$0xff] %v763
  %777 = vst [vmem:[%s3 + $0x20] sm:$0xff] %v764
  %778 = vst [vmem:[%s3 + $0x28] sm:$0xff] %v765
  %779 = vst [vmem:[%s3 + $0x30] sm:$0xff] %v766
  %780 = vst [vmem:[%s3 + $0x38] sm:$0xff] %v767
  %781 = vst [vmem:[%s3 + $0x40] sm:$0xff] %v768
  %782 = vst [vmem:[%s3 + $0x48] sm:$0xff] %v769
  %783 = vst [vmem:[%s3 + $0x50] sm:$0xff] %v770
  %784 = vst [vmem:[%s3 + $0x58] sm:$0xff] %v771
  %785 = vst [vmem:[%s3 + $0x60] sm:$0xff] %v772
  // Predicated region
  $region14: #{cnn2_forward.4} parent=0 // pred_check
    _
  $region15: #{cnn2_forward.4} parent=0 // pred_check_branch
    %787 = sbr.rel (0) target = $region17
  $region16: #{cnn2_forward.4} parent=0 // pred_region
    _
  $region17: #{cnn2_forward.4} parent=0 // pred_fallthru
    _
  // Predicated region
  $region18: #{cnn2_forward.4} parent=0 // pred_check
    _
  $region19: #{cnn2_forward.4} parent=0 // pred_check_branch
    %789 = sbr.rel (0) target = $region21
  $region20: #{cnn2_forward.4} parent=0 // pred_region
    _
  $region21: #{cnn2_forward.4} parent=0 // pred_fallthru
    _

// kernel: cnn2_forward.5
$region0: #{cnn2_forward.5}
  #allocation0 [shape = 'u32[]', space=smem, size = 0x4, offset = 0x4, fixed_abs, tag = 'smem constant byte address 0x4 - core index']
  #allocation1 [shape = 'u32[144,128]{1,0:T(1,128)}', space=vmem, size = 0x12000, scoped, tag = 'internal scratch']
  %s0 = inlined_call_operand.vmem [shape: bf16[96,800], index: 0, kind: input, shape index: {}]
  %s1 = inlined_call_operand.vmem [shape: bf16[800,128], index: 1, kind: input, shape index: {}]
  %s2 = inlined_call_operand.vmem [shape: f32[1,128], index: 2, kind: input, shape index: {}]
  %s3 = inlined_call_operand.vmem [shape: f32[9,128,128], index: 3, kind: input, shape index: {}]
  %s4 = inlined_call_operand.vmem [shape: f32[1,128], index: 4, kind: input, shape index: {}]
  %s5 = inlined_call_operand.hbm [shape: f32[2,128], index: 5, kind: output, shape index: {}]
  %s6 = sld [smem:[#allocation0]]
  $region30: #{cnn2_forward.5} parent=0
    _
  %s8 = ssub.s32 1, %s6
  %s9 = scalar_select 0, %s8, %s6
  $region1: #{cnn2_forward.5} parent=0
    #allocation2 [shape = 'u8[1024]{0}', space=vmem, size = 0x400, scoped, tag = 'output window, operand 0, single buffered']
    #allocation3 [shape = 's32[1]{0}', space=sflag, size = 0x4, scoped, tag = 'scoped memory for cnn2_forward.5']
    %10 = vsyncpa [#allocation3], 0
    // Predicated region
    $region2: #{cnn2_forward.5} parent=1 // pred_check
      _
    $region3: #{cnn2_forward.5} parent=1 // pred_check_branch
      %12 = sbr.rel (0) target = $region5
    $region4: #{cnn2_forward.5} parent=1 // pred_region
      _
    $region5: #{cnn2_forward.5} parent=1 // pred_fallthru
      _
    // Predicated region
    $region6: #{cnn2_forward.5} parent=1 // pred_check
      _
    $region7: #{cnn2_forward.5} parent=1 // pred_check_branch
      %14 = sbr.rel (0) target = $region9
    $region8: #{cnn2_forward.5} parent=1 // pred_region
      _
    $region9: #{cnn2_forward.5} parent=1 // pred_fallthru
      _
    // Predicated region
    $region10: #{cnn2_forward.5} parent=1 // pred_check
      _
    $region11: #{cnn2_forward.5} parent=1 // pred_check_branch
      %16 = sbr.rel (0) target = $region13
    $region12: #{cnn2_forward.5} parent=1 // pred_region
      _
    $region13: #{cnn2_forward.5} parent=1 // pred_fallthru
      _
    // Predicated region
    $region14: #{cnn2_forward.5} parent=1 // pred_check
      _
    $region15: #{cnn2_forward.5} parent=1 // pred_check_branch
      %18 = sbr.rel (0) target = $region17
    $region16: #{cnn2_forward.5} parent=1 // pred_region
      _
    $region17: #{cnn2_forward.5} parent=1 // pred_fallthru
      _
    // Predicated region
    $region18: #{cnn2_forward.5} parent=1 // pred_check
      _
    $region19: #{cnn2_forward.5} parent=1 // pred_check_branch
      %20 = sbr.rel (0) target = $region21
    $region20: #{cnn2_forward.5} parent=1 // pred_region
      _
    $region21: #{cnn2_forward.5} parent=1 // pred_fallthru
      _
    %v22 = vld [vmem:[%s0] sm:$0xff]
    %v23 = vld [vmem:[%s0 + $0x8] sm:$0xff]
    %v24 = vld [vmem:[%s0 + $0x10] sm:$0xff]
    %v25 = vld [vmem:[%s0 + $0x18] sm:$0xf]
    %v26 = vld [vmem:[%s0 + $0x1c] sm:$0xff]
    %v27 = vld [vmem:[%s0 + $0x24] sm:$0xff]
    %v28 = vld [vmem:[%s0 + $0x2c] sm:$0xff]
    %v29 = vld [vmem:[%s0 + $0x34] sm:$0xf]
    %v30 = vld [vmem:[%s0 + $0x38] sm:$0xff]
    %v31 = vld [vmem:[%s0 + $0x40] sm:$0xff]
    %v32 = vld [vmem:[%s0 + $0x48] sm:$0xff]
    %v33 = vld [vmem:[%s0 + $0x50] sm:$0xf]
    %v34 = vld [vmem:[%s0 + $0x54] sm:$0xff]
    %v35 = vld [vmem:[%s0 + $0x5c] sm:$0xff]
    %v36 = vld [vmem:[%s0 + $0x64] sm:$0xff]
    %v37 = vld [vmem:[%s0 + $0x6c] sm:$0xf]
    %v38 = vld [vmem:[%s0 + $0x70] sm:$0xff]
    %v39 = vld [vmem:[%s0 + $0x78] sm:$0xff]
    %v40 = vld [vmem:[%s0 + $0x80] sm:$0xff]
    %v41 = vld [vmem:[%s0 + $0x88] sm:$0xf]
    %v42 = vld [vmem:[%s0 + $0x8c] sm:$0xff]
    %v43 = vld [vmem:[%s0 + $0x94] sm:$0xff]
    %v44 = vld [vmem:[%s0 + $0x9c] sm:$0xff]
    %v45 = vld [vmem:[%s0 + $0xa4] sm:$0xf]
    %v46 = vld [vmem:[%s0 + $0xa8] sm:$0xff]
    %v47 = vld [vmem:[%s0 + $0xb0] sm:$0xff]
    %v48 = vld [vmem:[%s0 + $0xb8] sm:$0xff]
    %v49 = vld [vmem:[%s0 + $0xc0] sm:$0xf]
    %v50 = vld [vmem:[%s0 + $0xc4] sm:$0xff]
    %v51 = vld [vmem:[%s0 + $0xcc] sm:$0xff]
    %v52 = vld [vmem:[%s0 + $0xd4] sm:$0xff]
    %v53 = vld [vmem:[%s0 + $0xdc] sm:$0xf]
    %v54 = vld [vmem:[%s0 + $0xe0] sm:$0xff]
    %v55 = vld [vmem:[%s0 + $0xe8] sm:$0xff]
    %v56 = vld [vmem:[%s0 + $0xf0] sm:$0xff]
    %v57 = vld [vmem:[%s0 + $0xf8] sm:$0xf]
    %v58 = vld [vmem:[%s0 + $0xfc] sm:$0xff]
    %v59 = vld [vmem:[%s0 + $0x104] sm:$0xff]
    %v60 = vld [vmem:[%s0 + $0x10c] sm:$0xff]
    %v61 = vld [vmem:[%s0 + $0x114] sm:$0xf]
    %v62 = vld [vmem:[%s0 + $0x118] sm:$0xff]
    %v63 = vld [vmem:[%s0 + $0x120] sm:$0xff]
    %v64 = vld [vmem:[%s0 + $0x128] sm:$0xff]
    %v65 = vld [vmem:[%s0 + $0x130] sm:$0xf]
    %v66 = vld [vmem:[%s0 + $0x134] sm:$0xff]
    %v67 = vld [vmem:[%s0 + $0x13c] sm:$0xff]
    %v68 = vld [vmem:[%s0 + $0x144] sm:$0xff]
    %v69 = vld [vmem:[%s0 + $0x14c] sm:$0xf]
    %v70 = vld [vmem:[%s1] sm:$0xf]
    %v71 = vld [vmem:[%s1 + $0x4] sm:$0xf]
    %v72 = vld [vmem:[%s1 + $0x8] sm:$0xf]
    %v73 = vld [vmem:[%s1 + $0xc] sm:$0xf]
    %v74 = vld [vmem:[%s1 + $0x10] sm:$0xf]
    %v75 = vld [vmem:[%s1 + $0x14] sm:$0xf]
    %v76 = vld [vmem:[%s1 + $0x18] sm:$0xf]
    %v77 = vld [vmem:[%s1 + $0x1c] sm:$0xf]
    %v78 = vld [vmem:[%s1 + $0x20] sm:$0xf]
    %v79 = vld [vmem:[%s1 + $0x24] sm:$0xf]
    %v80 = vld [vmem:[%s1 + $0x28] sm:$0xf]
    %v81 = vld [vmem:[%s1 + $0x2c] sm:$0xf]
    %v82 = vld [vmem:[%s1 + $0x30] sm:$0xf]
    %v83 = vld [vmem:[%s1 + $0x34] sm:$0xf]
    %v84 = vld [vmem:[%s1 + $0x38] sm:$0xf]
    %v85 = vld [vmem:[%s1 + $0x3c] sm:$0xf]
    %v86 = vld [vmem:[%s1 + $0x40] sm:$0xf]
    %v87 = vld [vmem:[%s1 + $0x44] sm:$0xf]
    %v88 = vld [vmem:[%s1 + $0x48] sm:$0xf]
    %v89 = vld [vmem:[%s1 + $0x4c] sm:$0xf]
    %v90 = vld [vmem:[%s1 + $0x50] sm:$0xf]
    %v91 = vld [vmem:[%s1 + $0x54] sm:$0xf]
    %v92 = vld [vmem:[%s1 + $0x58] sm:$0xf]
    %v93 = vld [vmem:[%s1 + $0x5c] sm:$0xf]
    %v94 = vld [vmem:[%s1 + $0x60] sm:$0xf]
    %v95 = vld [vmem:[%s1 + $0x64] sm:$0xf]
    %v96 = vld [vmem:[%s1 + $0x68] sm:$0xf]
    %v97 = vld [vmem:[%s1 + $0x6c] sm:$0xf]
    %v98 = vld [vmem:[%s1 + $0x70] sm:$0xf]
    %v99 = vld [vmem:[%s1 + $0x74] sm:$0xf]
    %v100 = vld [vmem:[%s1 + $0x78] sm:$0xf]
    %v101 = vld [vmem:[%s1 + $0x7c] sm:$0xf]
    %v102 = vld [vmem:[%s1 + $0x80] sm:$0xf]
    %v103 = vld [vmem:[%s1 + $0x84] sm:$0xf]
    %v104 = vld [vmem:[%s1 + $0x88] sm:$0xf]
    %v105 = vld [vmem:[%s1 + $0x8c] sm:$0xf]
    %v106 = vld [vmem:[%s1 + $0x90] sm:$0xf]
    %v107 = vld [vmem:[%s1 + $0x94] sm:$0xf]
    %v108 = vld [vmem:[%s1 + $0x98] sm:$0xf]
    %v109 = vld [vmem:[%s1 + $0x9c] sm:$0xf]
    %v110 = vld [vmem:[%s1 + $0xa0] sm:$0xf]
    %v111 = vld [vmem:[%s1 + $0xa4] sm:$0xf]
    %v112 = vld [vmem:[%s1 + $0xa8] sm:$0xf]
    %v113 = vld [vmem:[%s1 + $0xac] sm:$0xf]
    %v114 = vld [vmem:[%s1 + $0xb0] sm:$0xf]
    %v115 = vld [vmem:[%s1 + $0xb4] sm:$0xf]
    %v116 = vld [vmem:[%s1 + $0xb8] sm:$0xf]
    %v117 = vld [vmem:[%s1 + $0xbc] sm:$0xf]
    %v118 = vld [vmem:[%s1 + $0xc0] sm:$0xf]
    %v119 = vld [vmem:[%s1 + $0xc4] sm:$0xf]
    %v120 = vld [vmem:[%s1 + $0xc8] sm:$0xf]
    %v121 = vld [vmem:[%s1 + $0xcc] sm:$0xf]
    %v122 = vld [vmem:[%s1 + $0xd0] sm:$0xf]
    %v123 = vld [vmem:[%s1 + $0xd4] sm:$0xf]
    %v124 = vld [vmem:[%s1 + $0xd8] sm:$0xf]
    %v125 = vld [vmem:[%s1 + $0xdc] sm:$0xf]
    %v126 = vld [vmem:[%s1 + $0xe0] sm:$0xf]
    %v127 = vld [vmem:[%s1 + $0xe4] sm:$0xf]
    %v128 = vld [vmem:[%s1 + $0xe8] sm:$0xf]
    %v129 = vld [vmem:[%s1 + $0xec] sm:$0xf]
    %v130 = vld [vmem:[%s1 + $0xf0] sm:$0xf]
    %v131 = vld [vmem:[%s1 + $0xf4] sm:$0xf]
    %v132 = vld [vmem:[%s1 + $0xf8] sm:$0xf]
    %v133 = vld [vmem:[%s1 + $0xfc] sm:$0xf]
    %v134 = vld [vmem:[%s1 + $0x100] sm:$0xf]
    %v135 = vld [vmem:[%s1 + $0x104] sm:$0xf]
    %v136 = vld [vmem:[%s1 + $0x108] sm:$0xf]
    %v137 = vld [vmem:[%s1 + $0x10c] sm:$0xf]
    %v138 = vld [vmem:[%s1 + $0x110] sm:$0xf]
    %v139 = vld [vmem:[%s1 + $0x114] sm:$0xf]
    %v140 = vld [vmem:[%s1 + $0x118] sm:$0xf]
    %v141 = vld [vmem:[%s1 + $0x11c] sm:$0xf]
    %v142 = vld [vmem:[%s1 + $0x120] sm:$0xf]
    %v143 = vld [vmem:[%s1 + $0x124] sm:$0xf]
    %v144 = vld [vmem:[%s1 + $0x128] sm:$0xf]
    %v145 = vld [vmem:[%s1 + $0x12c] sm:$0xf]
    %v146 = vld [vmem:[%s1 + $0x130] sm:$0xf]
    %v147 = vld [vmem:[%s1 + $0x134] sm:$0xf]
    %v148 = vld [vmem:[%s1 + $0x138] sm:$0xf]
    %v149 = vld [vmem:[%s1 + $0x13c] sm:$0xf]
    %v150 = vld [vmem:[%s1 + $0x140] sm:$0xf]
    %v151 = vld [vmem:[%s1 + $0x144] sm:$0xf]
    %v152 = vld [vmem:[%s1 + $0x148] sm:$0xf]
    %v153 = vld [vmem:[%s1 + $0x14c] sm:$0xf]
    %v154 = vld [vmem:[%s1 + $0x150] sm:$0xf]
    %v155 = vld [vmem:[%s1 + $0x154] sm:$0xf]
    %v156 = vld [vmem:[%s1 + $0x158] sm:$0xf]
    %v157 = vld [vmem:[%s1 + $0x15c] sm:$0xf]
    %v158 = vld [vmem:[%s1 + $0x160] sm:$0xf]
    %v159 = vld [vmem:[%s1 + $0x164] sm:$0xf]
    %v160 = vld [vmem:[%s1 + $0x168] sm:$0xf]
    %v161 = vld [vmem:[%s1 + $0x16c] sm:$0xf]
    %v162 = vld [vmem:[%s1 + $0x170] sm:$0xf]
    %v163 = vld [vmem:[%s1 + $0x174] sm:$0xf]
    %v164 = vld [vmem:[%s1 + $0x178] sm:$0xf]
    %v165 = vld [vmem:[%s1 + $0x17c] sm:$0xf]
    %v166 = vld [vmem:[%s1 + $0x180] sm:$0xf]
    %v167 = vld [vmem:[%s1 + $0x184] sm:$0xf]
    %v168 = vld [vmem:[%s1 + $0x188] sm:$0xf]
    %v169 = vld [vmem:[%s1 + $0x18c] sm:$0xf]
    %v218 = vunpack.c.l.b16 %v22
    %v219 = vunpack.c.h.b16 %v22
    %v220 = vunpack.c.l.b16 %v23
    %v221 = vunpack.c.h.b16 %v23
    %v222 = vunpack.c.l.b16 %v24
    %v223 = vunpack.c.h.b16 %v24
    %v224 = vunpack.c.l.b16 %v25
    %v225 = vunpack.c.l.b16 %v26
    %v226 = vunpack.c.h.b16 %v26
    %v227 = vunpack.c.l.b16 %v27
    %v228 = vunpack.c.h.b16 %v27
    %v229 = vunpack.c.l.b16 %v28
    %v230 = vunpack.c.h.b16 %v28
    %v231 = vunpack.c.l.b16 %v29
    %v232 = vunpack.c.l.b16 %v30
    %v233 = vunpack.c.h.b16 %v30
    %v234 = vunpack.c.l.b16 %v31
    %v235 = vunpack.c.h.b16 %v31
    %v236 = vunpack.c.l.b16 %v32
    %v237 = vunpack.c.h.b16 %v32
    %v238 = vunpack.c.l.b16 %v33
    %v239 = vunpack.c.l.b16 %v34
    %v240 = vunpack.c.h.b16 %v34
    %v241 = vunpack.c.l.b16 %v35
    %v242 = vunpack.c.h.b16 %v35
    %v243 = vunpack.c.l.b16 %v36
    %v244 = vunpack.c.h.b16 %v36
    %v245 = vunpack.c.l.b16 %v37
    %v246 = vunpack.c.l.b16 %v38
    %v247 = vunpack.c.h.b16 %v38
    %v248 = vunpack.c.l.b16 %v39
    %v249 = vunpack.c.h.b16 %v39
    %v250 = vunpack.c.l.b16 %v40
    %v251 = vunpack.c.h.b16 %v40
    %v252 = vunpack.c.l.b16 %v41
    %v253 = vunpack.c.l.b16 %v42
    %v254 = vunpack.c.h.b16 %v42
    %v255 = vunpack.c.l.b16 %v43
    %v256 = vunpack.c.h.b16 %v43
    %v257 = vunpack.c.l.b16 %v44
    %v258 = vunpack.c.h.b16 %v44
    %v259 = vunpack.c.l.b16 %v45
    %v260 = vunpack.c.l.b16 %v46
    %v261 = vunpack.c.h.b16 %v46
    %v262 = vunpack.c.l.b16 %v47
    %v263 = vunpack.c.h.b16 %v47
    %v264 = vunpack.c.l.b16 %v48
    %v265 = vunpack.c.h.b16 %v48
    %v266 = vunpack.c.l.b16 %v49
    %v267 = vunpack.c.l.b16 %v50
    %v268 = vunpack.c.h.b16 %v50
    %v269 = vunpack.c.l.b16 %v51
    %v270 = vunpack.c.h.b16 %v51
    %v271 = vunpack.c.l.b16 %v52
    %v272 = vunpack.c.h.b16 %v52
    %v273 = vunpack.c.l.b16 %v53
    %v274 = vunpack.c.l.b16 %v54
    %v275 = vunpack.c.h.b16 %v54
    %v276 = vunpack.c.l.b16 %v55
    %v277 = vunpack.c.h.b16 %v55
    %v278 = vunpack.c.l.b16 %v56
    %v279 = vunpack.c.h.b16 %v56
    %v280 = vunpack.c.l.b16 %v57
    %v281 = vunpack.c.l.b16 %v58
    %v282 = vunpack.c.h.b16 %v58
    %v283 = vunpack.c.l.b16 %v59
    %v284 = vunpack.c.h.b16 %v59
    %v285 = vunpack.c.l.b16 %v60
    %v286 = vunpack.c.h.b16 %v60
    %v287 = vunpack.c.l.b16 %v61
    %v288 = vunpack.c.l.b16 %v62
    %v289 = vunpack.c.h.b16 %v62
    %v290 = vunpack.c.l.b16 %v63
    %v291 = vunpack.c.h.b16 %v63
    %v292 = vunpack.c.l.b16 %v64
    %v293 = vunpack.c.h.b16 %v64
    %v294 = vunpack.c.l.b16 %v65
    %v295 = vunpack.c.l.b16 %v66
    %v296 = vunpack.c.h.b16 %v66
    %v297 = vunpack.c.l.b16 %v67
    %v298 = vunpack.c.h.b16 %v67
    %v299 = vunpack.c.l.b16 %v68
    %v300 = vunpack.c.h.b16 %v68
    %v301 = vunpack.c.l.b16 %v69
    %v302 = vpack.c.b16 %v225, %v218
    %v303 = vpack.c.b16 %v226, %v219
    %v304 = vpack.c.b16 %v227, %v220
    %v305 = vpack.c.b16 %v228, %v221
    %v306 = vpack.c.b16 %v229, %v222
    %v307 = vpack.c.b16 %v230, %v223
    %v308 = vpack.c.b16 %v231, %v224
    %v309 = vpack.c.b16 %v239, %v232
    %v310 = vpack.c.b16 %v240, %v233
    %v311 = vpack.c.b16 %v241, %v234
    %v312 = vpack.c.b16 %v242, %v235
    %v313 = vpack.c.b16 %v243, %v236
    %v314 = vpack.c.b16 %v244, %v237
    %v315 = vpack.c.b16 %v245, %v238
    %v316 = vpack.c.b16 %v253, %v246
    %v317 = vpack.c.b16 %v254, %v247
    %v318 = vpack.c.b16 %v255, %v248
    %v319 = vpack.c.b16 %v256, %v249
    %v320 = vpack.c.b16 %v257, %v250
    %v321 = vpack.c.b16 %v258, %v251
    %v322 = vpack.c.b16 %v259, %v252
    %v323 = vpack.c.b16 %v267, %v260
    %v324 = vpack.c.b16 %v268, %v261
    %v325 = vpack.c.b16 %v269, %v262
    %v326 = vpack.c.b16 %v270, %v263
    %v327 = vpack.c.b16 %v271, %v264
    %v328 = vpack.c.b16 %v272, %v265
    %v329 = vpack.c.b16 %v273, %v266
    %v330 = vpack.c.b16 %v281, %v274
    %v331 = vpack.c.b16 %v282, %v275
    %v332 = vpack.c.b16 %v283, %v276
    %v333 = vpack.c.b16 %v284, %v277
    %v334 = vpack.c.b16 %v285, %v278
    %v335 = vpack.c.b16 %v286, %v279
    %v336 = vpack.c.b16 %v287, %v280
    %v337 = vpack.c.b16 %v295, %v288
    %v338 = vpack.c.b16 %v296, %v289
    %v339 = vpack.c.b16 %v297, %v290
    %v340 = vpack.c.b16 %v298, %v291
    %v341 = vpack.c.b16 %v299, %v292
    %v342 = vpack.c.b16 %v300, %v293
    %v343 = vpack.c.b16 %v301, %v294
    %v480 = vunpack.c.l.b16 %v70
    %v481 = vunpack.c.l.b16 %v71
    %v482 = vunpack.c.l.b16 %v72
    %v483 = vunpack.c.l.b16 %v73
    %v484 = vunpack.c.l.b16 %v74
    %v485 = vunpack.c.l.b16 %v75
    %v486 = vunpack.c.l.b16 %v76
    %v487 = vunpack.c.l.b16 %v77
    %v488 = vunpack.c.l.b16 %v78
    %v489 = vunpack.c.l.b16 %v79
    %v490 = vunpack.c.l.b16 %v80
    %v491 = vunpack.c.l.b16 %v81
    %v492 = vunpack.c.l.b16 %v82
    %v493 = vunpack.c.l.b16 %v83
    %v494 = vunpack.c.l.b16 %v84
    %v495 = vunpack.c.l.b16 %v85
    %v496 = vunpack.c.l.b16 %v86
    %v497 = vunpack.c.l.b16 %v87
    %v498 = vunpack.c.l.b16 %v88
    %v499 = vunpack.c.l.b16 %v89
    %v500 = vunpack.c.l.b16 %v90
    %v501 = vunpack.c.l.b16 %v91
    %v502 = vunpack.c.l.b16 %v92
    %v503 = vunpack.c.l.b16 %v93
    %v504 = vunpack.c.l.b16 %v94
    %v505 = vunpack.c.l.b16 %v95
    %v506 = vunpack.c.l.b16 %v96
    %v507 = vunpack.c.l.b16 %v97
    %v508 = vunpack.c.l.b16 %v98
    %v509 = vunpack.c.l.b16 %v99
    %v510 = vunpack.c.l.b16 %v100
    %v511 = vunpack.c.l.b16 %v101
    %v512 = vunpack.c.l.b16 %v102
    %v513 = vunpack.c.l.b16 %v103
    %v514 = vunpack.c.l.b16 %v104
    %v515 = vunpack.c.l.b16 %v105
    %v516 = vunpack.c.l.b16 %v106
    %v517 = vunpack.c.l.b16 %v107
    %v518 = vunpack.c.l.b16 %v108
    %v519 = vunpack.c.l.b16 %v109
    %v520 = vunpack.c.l.b16 %v110
    %v521 = vunpack.c.l.b16 %v111
    %v522 = vunpack.c.l.b16 %v112
    %v523 = vunpack.c.l.b16 %v113
    %v524 = vunpack.c.l.b16 %v114
    %v525 = vunpack.c.l.b16 %v115
    %v526 = vunpack.c.l.b16 %v116
    %v527 = vunpack.c.l.b16 %v117
    %v528 = vunpack.c.l.b16 %v118
    %v529 = vunpack.c.l.b16 %v119
    %v530 = vunpack.c.l.b16 %v120
    %v531 = vunpack.c.l.b16 %v121
    %v532 = vunpack.c.l.b16 %v122
    %v533 = vunpack.c.l.b16 %v123
    %v534 = vunpack.c.l.b16 %v124
    %v535 = vunpack.c.l.b16 %v125
    %v536 = vunpack.c.l.b16 %v126
    %v537 = vunpack.c.l.b16 %v127
    %v538 = vunpack.c.l.b16 %v128
    %v539 = vunpack.c.l.b16 %v129
    %v540 = vunpack.c.l.b16 %v130
    %v541 = vunpack.c.l.b16 %v131
    %v542 = vunpack.c.l.b16 %v132
    %v543 = vunpack.c.l.b16 %v133
    %v544 = vunpack.c.l.b16 %v134
    %v545 = vunpack.c.l.b16 %v135
    %v546 = vunpack.c.l.b16 %v136
    %v547 = vunpack.c.l.b16 %v137
    %v548 = vunpack.c.l.b16 %v138
    %v549 = vunpack.c.l.b16 %v139
    %v550 = vunpack.c.l.b16 %v140
    %v551 = vunpack.c.l.b16 %v141
    %v552 = vunpack.c.l.b16 %v142
    %v553 = vunpack.c.l.b16 %v143
    %v554 = vunpack.c.l.b16 %v144
    %v555 = vunpack.c.l.b16 %v145
    %v556 = vunpack.c.l.b16 %v146
    %v557 = vunpack.c.l.b16 %v147
    %v558 = vunpack.c.l.b16 %v148
    %v559 = vunpack.c.l.b16 %v149
    %v560 = vunpack.c.l.b16 %v150
    %v561 = vunpack.c.l.b16 %v151
    %v562 = vunpack.c.l.b16 %v152
    %v563 = vunpack.c.l.b16 %v153
    %v564 = vunpack.c.l.b16 %v154
    %v565 = vunpack.c.l.b16 %v155
    %v566 = vunpack.c.l.b16 %v156
    %v567 = vunpack.c.l.b16 %v157
    %v568 = vunpack.c.l.b16 %v158
    %v569 = vunpack.c.l.b16 %v159
    %v570 = vunpack.c.l.b16 %v160
    %v571 = vunpack.c.l.b16 %v161
    %v572 = vunpack.c.l.b16 %v162
    %v573 = vunpack.c.l.b16 %v163
    %v574 = vunpack.c.l.b16 %v164
    %v575 = vunpack.c.l.b16 %v165
    %v576 = vunpack.c.l.b16 %v166
    %v577 = vunpack.c.l.b16 %v167
    %v578 = vunpack.c.l.b16 %v168
    %v579 = vunpack.c.l.b16 %v169
    %v580 = vpack.c.b16 %v481, %v480
    %v581 = vpack.c.b16 %v483, %v482
    %v582 = vpack.c.b16 %v485, %v484
    %v583 = vpack.c.b16 %v487, %v486
    %v584 = vpack.c.b16 %v489, %v488
    %v585 = vpack.c.b16 %v491, %v490
    %v586 = vpack.c.b16 %v493, %v492
    %v587 = vpack.c.b16 %v495, %v494
    %v588 = vpack.c.b16 %v497, %v496
    %v589 = vpack.c.b16 %v499, %v498
    %v590 = vpack.c.b16 %v501, %v500
    %v591 = vpack.c.b16 %v503, %v502
    %v592 = vpack.c.b16 %v505, %v504
    %v593 = vpack.c.b16 %v507, %v506
    %v594 = vpack.c.b16 %v509, %v508
    %v595 = vpack.c.b16 %v511, %v510
    %v596 = vpack.c.b16 %v513, %v512
    %v597 = vpack.c.b16 %v515, %v514
    %v598 = vpack.c.b16 %v517, %v516
    %v599 = vpack.c.b16 %v519, %v518
    %v600 = vpack.c.b16 %v521, %v520
    %v601 = vpack.c.b16 %v523, %v522
    %v602 = vpack.c.b16 %v525, %v524
    %v603 = vpack.c.b16 %v527, %v526
    %v604 = vpack.c.b16 %v529, %v528
    %v605 = vpack.c.b16 %v531, %v530
    %v606 = vpack.c.b16 %v533, %v532
    %v607 = vpack.c.b16 %v535, %v534
    %v608 = vpack.c.b16 %v537, %v536
    %v609 = vpack.c.b16 %v539, %v538
    %v610 = vpack.c.b16 %v541, %v540
    %v611 = vpack.c.b16 %v543, %v542
    %v612 = vpack.c.b16 %v545, %v544
    %v613 = vpack.c.b16 %v547, %v546
    %v614 = vpack.c.b16 %v549, %v548
    %v615 = vpack.c.b16 %v551, %v550
    %v616 = vpack.c.b16 %v553, %v552
    %v617 = vpack.c.b16 %v555, %v554
    %v618 = vpack.c.b16 %v557, %v556
    %v619 = vpack.c.b16 %v559, %v558
    %v620 = vpack.c.b16 %v561, %v560
    %v621 = vpack.c.b16 %v563, %v562
    %v622 = vpack.c.b16 %v565, %v564
    %v623 = vpack.c.b16 %v567, %v566
    %v624 = vpack.c.b16 %v569, %v568
    %v625 = vpack.c.b16 %v571, %v570
    %v626 = vpack.c.b16 %v573, %v572
    %v627 = vpack.c.b16 %v575, %v574
    %v628 = vpack.c.b16 %v577, %v576
    %v629 = vpack.c.b16 %v579, %v578
    %vm680 = vcmask 261120
    %v682 = vsel %vm680, %v308, 0
    %v685 = vsel %vm680, %v315, 0
    %v688 = vsel %vm680, %v322, 0
    %v691 = vsel %vm680, %v329, 0
    %v694 = vsel %vm680, %v336, 0
    %v697 = vsel %vm680, %v343, 0
    %699 = vmatprep.subr.bf16.mxu0 0
    %700 = vmatpush1.bf16.msra.mxu0 %v580
    %701 = vmatprep.subr.bf16.mxu0 0
    %702 = vmatpush1.bf16.msra.mxu0 %v581
    %703 = vmatprep.subr.bf16.mxu0 0
    %704 = vmatpush1.bf16.msra.mxu0 %v582
    %705 = vmatprep.subr.bf16.mxu0 0
    %706 = vmatpush1.bf16.msra.mxu0 %v583
    %707 = vmatprep.subr.bf16.mxu0 0
    %708 = vmatpush1.bf16.msra.mxu0 %v584
    %709 = vmatprep.subr.bf16.mxu0 0
    %710 = vmatpush1.bf16.msra.mxu0 %v585
    %711 = vmatprep.subr.bf16.mxu0 0
    %712 = vmatpush1.bf16.msra.mxu0 %v586
    %713 = vmatprep.subr.bf16.mxu0 0
    %714 = vmatpush1.bf16.msra.mxu0 %v587
    %715 = vmatprep.subr.bf16.mxu0 0
    %716 = vmatpush1.bf16.msra.mxu0 %v588
    %717 = vmatprep.subr.bf16.mxu0 0
    %718 = vmatpush1.bf16.msra.mxu0 %v589
    %719 = vmatprep.subr.bf16.mxu0 0
    %720 = vmatpush1.bf16.msra.mxu0 %v590
    %721 = vmatprep.subr.bf16.mxu0 0
    %722 = vmatpush1.bf16.msra.mxu0 %v591
    %723 = vmatprep.subr.bf16.mxu0 0
    %724 = vmatpush1.bf16.msra.mxu0 %v592
    %725 = vmatprep.subr.bf16.mxu0 0
    %726 = vmatpush1.bf16.msra.mxu0 %v593
    %727 = vmatprep.subr.bf16.mxu0 0
    %728 = vmatpush1.bf16.msra.mxu0 %v594
    %729 = vmatprep.subr.bf16.mxu0 0
    %730 = vmatpush1.bf16.msra.mxu0 %v595
    %731 = vmatprep.mubr.bf16.mxu0 %v303
    %732 = vmatmul.mubr.bf16.gmra.mrb[0].mxu0 %v302
    %v733 = vpop.f32.mrb[0].mxu0
    %v734 = vadd.f32 0.0, %v733
    %v735 = vpop.f32.mrb[0].mxu0
    %v736 = vpop.f32.mrb[0].mxu0
    %v737 = vadd.f32 0.0, %v736
    %v738 = vpop.f32.mrb[0].mxu0
    %739 = vmatprep.mubr.bf16.mxu0 %v310
    %740 = vmatmul.mubr.bf16.gmra.mrb[0].mxu0 %v309
    %v741 = vpop.f32.mrb[0].mxu0
    %v742 = vadd.f32 0.0, %v741
    %v743 = vpop.f32.mrb[0].mxu0
    %v744 = vpop.f32.mrb[0].mxu0
    %v745 = vadd.f32 0.0, %v744
    %v746 = vpop.f32.mrb[0].mxu0
    %747 = vmatprep.mubr.bf16.mxu0 %v317
    %748 = vmatmul.mubr.bf16.gmra.mrb[0].mxu0 %v316
    %v749 = vpop.f32.mrb[0].mxu0
    %v750 = vadd.f32 0.0, %v749
    %v751 = vpop.f32.mrb[0].mxu0
    %v752 = vpop.f32.mrb[0].mxu0
    %v753 = vadd.f32 0.0, %v752
    %v754 = vpop.f32.mrb[0].mxu0
    %755 = vmatprep.mubr.bf16.mxu0 %v324
    %756 = vmatmul.mubr.bf16.gmra.mrb[0].mxu0 %v323
    %v757 = vpop.f32.mrb[0].mxu0
    %v758 = vadd.f32 0.0, %v757
    %v759 = vpop.f32.mrb[0].mxu0
    %v760 = vpop.f32.mrb[0].mxu0
    %v761 = vadd.f32 0.0, %v760
    %v762 = vpop.f32.mrb[0].mxu0
    %763 = vmatprep.mubr.bf16.mxu0 %v331
    %764 = vmatmul.mubr.bf16.gmra.mrb[0].mxu0 %v330
    %v765 = vpop.f32.mrb[0].mxu0
    %v766 = vadd.f32 0.0, %v765
    %v767 = vpop.f32.mrb[0].mxu0
    %v768 = vpop.f32.mrb[0].mxu0
    %v769 = vadd.f32 0.0, %v768
    %v770 = vpop.f32.mrb[0].mxu0
    %771 = vmatprep.mubr.bf16.mxu0 %v338
    %772 = vmatmul.mubr.bf16.gmra.mrb[0].mxu0 %v337
    %v773 = vpop.f32.mrb[0].mxu0
    %v774 = vadd.f32 0.0, %v773
    %v775 = vpop.f32.mrb[0].mxu0
    %v776 = vpop.f32.mrb[0].mxu0
    %v777 = vadd.f32 0.0, %v776
    %v778 = vpop.f32.mrb[0].mxu0
    %779 = vdwg.mxu0
    %780 = vmatprep.subr.bf16.mxu0 0
    %781 = vmatpush1.bf16.msra.mxu0 %v596
    %782 = vmatprep.subr.bf16.mxu0 0
    %783 = vmatpush1.bf16.msra.mxu0 %v597
    %784 = vmatprep.subr.bf16.mxu0 0
    %785 = vmatpush1.bf16.msra.mxu0 %v598
    %786 = vmatprep.subr.bf16.mxu0 0
    %787 = vmatpush1.bf16.msra.mxu0 %v599
    %788 = vmatprep.subr.bf16.mxu0 0
    %789 = vmatpush1.bf16.msra.mxu0 %v600
    %790 = vmatprep.subr.bf16.mxu0 0
    %791 = vmatpush1.bf16.msra.mxu0 %v601
    %792 = vmatprep.subr.bf16.mxu0 0
    %793 = vmatpush1.bf16.msra.mxu0 %v602
    %794 = vmatprep.subr.bf16.mxu0 0
    %795 = vmatpush1.bf16.msra.mxu0 %v603
    %796 = vmatprep.subr.bf16.mxu0 0
    %797 = vmatpush1.bf16.msra.mxu0 %v604
    %798 = vmatprep.subr.bf16.mxu0 0
    %799 = vmatpush1.bf16.msra.mxu0 %v605
    %800 = vmatprep.subr.bf16.mxu0 0
    %801 = vmatpush1.bf16.msra.mxu0 %v606
    %802 = vmatprep.subr.bf16.mxu0 0
    %803 = vmatpush1.bf16.msra.mxu0 %v607
    %804 = vmatprep.subr.bf16.mxu0 0
    %805 = vmatpush1.bf16.msra.mxu0 %v608
    %806 = vmatprep.subr.bf16.mxu0 0
    %807 = vmatpush1.bf16.msra.mxu0 %v609
    %808 = vmatprep.subr.bf16.mxu0 0
    %809 = vmatpush1.bf16.msra.mxu0 %v610
    %810 = vmatprep.subr.bf16.mxu0 0
    %811 = vmatpush1.bf16.msra.mxu0 %v611
    %812 = vmatprep.mubr.bf16.mxu0 %v305
    %813 = vmatmul.mubr.bf16.gmra.mrb[0].mxu0 %v304
    %v814 = vpop.f32.mrb[0].mxu0
    %v815 = vadd.f32 %v734, %v814
    %v816 = vpop.f32.mrb[0].mxu0
    %v817 = vpop.f32.mrb[0].mxu0
    %v818 = vadd.f32 %v737, %v817
    %v819 = vpop.f32.mrb[0].mxu0
    %820 = vmatprep.mubr.bf16.mxu0 %v312
    %821 = vmatmul.mubr.bf16.gmra.mrb[0].mxu0 %v311
    %v822 = vpop.f32.mrb[0].mxu0
    %v823 = vadd.f32 %v742, %v822
    %v824 = vpop.f32.mrb[0].mxu0
    %v825 = vpop.f32.mrb[0].mxu0
    %v826 = vadd.f32 %v745, %v825
    %v827 = vpop.f32.mrb[0].mxu0
    %828 = vmatprep.mubr.bf16.mxu0 %v319
    %829 = vmatmul.mubr.bf16.gmra.mrb[0].mxu0 %v318
    %v830 = vpop.f32.mrb[0].mxu0
    %v831 = vadd.f32 %v750, %v830
    %v832 = vpop.f32.mrb[0].mxu0
    %v833 = vpop.f32.mrb[0].mxu0
    %v834 = vadd.f32 %v753, %v833
    %v835 = vpop.f32.mrb[0].mxu0
    %836 = vmatprep.mubr.bf16.mxu0 %v326
    %837 = vmatmul.mubr.bf16.gmra.mrb[0].mxu0 %v325
    %v838 = vpop.f32.mrb[0].mxu0
    %v839 = vadd.f32 %v758, %v838
    %v840 = vpop.f32.mrb[0].mxu0
    %v841 = vpop.f32.mrb[0].mxu0
    %v842 = vadd.f32 %v761, %v841
    %v843 = vpop.f32.mrb[0].mxu0
    %844 = vmatprep.mubr.bf16.mxu0 %v333
    %845 = vmatmul.mubr.bf16.gmra.mrb[0].mxu0 %v332
    %v846 = vpop.f32.mrb[0].mxu0
    %v847 = vadd.f32 %v766, %v846
    %v848 = vpop.f32.mrb[0].mxu0
    %v849 = vpop.f32.mrb[0].mxu0
    %v850 = vadd.f32 %v769, %v849
    %v851 = vpop.f32.mrb[0].mxu0
    %852 = vmatprep.mubr.bf16.mxu0 %v340
    %853 = vmatmul.mubr.bf16.gmra.mrb[0].mxu0 %v339
    %v854 = vpop.f32.mrb[0].mxu0
    %v855 = vadd.f32 %v774, %v854
    %v856 = vpop.f32.mrb[0].mxu0
    %v857 = vpop.f32.mrb[0].mxu0
    %v858 = vadd.f32 %v777, %v857
    %v859 = vpop.f32.mrb[0].mxu0
    %860 = vdwg.mxu0
    %861 = vmatprep.subr.bf16.mxu0 0
    %862 = vmatpush1.bf16.msra.mxu0 %v612
    %863 = vmatprep.subr.bf16.mxu0 0
    %864 = vmatpush1.bf16.msra.mxu0 %v613
    %865 = vmatprep.subr.bf16.mxu0 0
    %866 = vmatpush1.bf16.msra.mxu0 %v614
    %867 = vmatprep.subr.bf16.mxu0 0
    %868 = vmatpush1.bf16.msra.mxu0 %v615
    %869 = vmatprep.subr.bf16.mxu0 0
    %870 = vmatpush1.bf16.msra.mxu0 %v616
    %871 = vmatprep.subr.bf16.mxu0 0
    %872 = vmatpush1.bf16.msra.mxu0 %v617
    %873 = vmatprep.subr.bf16.mxu0 0
    %874 = vmatpush1.bf16.msra.mxu0 %v618
    %875 = vmatprep.subr.bf16.mxu0 0
    %876 = vmatpush1.bf16.msra.mxu0 %v619
    %877 = vmatprep.subr.bf16.mxu0 0
    %878 = vmatpush1.bf16.msra.mxu0 %v620
    %879 = vmatprep.subr.bf16.mxu0 0
    %880 = vmatpush1.bf16.msra.mxu0 %v621
    %881 = vmatprep.subr.bf16.mxu0 0
    %882 = vmatpush1.bf16.msra.mxu0 %v622
    %883 = vmatprep.subr.bf16.mxu0 0
    %884 = vmatpush1.bf16.msra.mxu0 %v623
    %885 = vmatprep.subr.bf16.mxu0 0
    %886 = vmatpush1.bf16.msra.mxu0 %v624
    %887 = vmatprep.subr.bf16.mxu0 0
    %888 = vmatpush1.bf16.msra.mxu0 %v625
    %889 = vmatprep.subr.bf16.mxu0 0
    %890 = vmatpush1.bf16.msra.mxu0 %v626
    %891 = vmatprep.subr.bf16.mxu0 0
    %892 = vmatpush1.bf16.msra.mxu0 %v627
    %893 = vmatprep.mubr.bf16.mxu0 %v307
    %894 = vmatmul.mubr.bf16.gmra.mrb[0].mxu0 %v306
    %v895 = vpop.f32.mrb[0].mxu0
    %v896 = vadd.f32 %v815, %v895
    %v897 = vpop.f32.mrb[0].mxu0
    %v898 = vpop.f32.mrb[0].mxu0
    %v899 = vadd.f32 %v818, %v898
    %v900 = vpop.f32.mrb[0].mxu0
    %901 = vmatprep.mubr.bf16.mxu0 %v314
    %902 = vmatmul.mubr.bf16.gmra.mrb[0].mxu0 %v313
    %v903 = vpop.f32.mrb[0].mxu0
    %v904 = vadd.f32 %v823, %v903
    %v905 = vpop.f32.mrb[0].mxu0
    %v906 = vpop.f32.mrb[0].mxu0
    %v907 = vadd.f32 %v826, %v906
    %v908 = vpop.f32.mrb[0].mxu0
    %909 = vmatprep.mubr.bf16.mxu0 %v321
    %910 = vmatmul.mubr.bf16.gmra.mrb[0].mxu0 %v320
    %v911 = vpop.f32.mrb[0].mxu0
    %v912 = vadd.f32 %v831, %v911
    %v913 = vpop.f32.mrb[0].mxu0
    %v914 = vpop.f32.mrb[0].mxu0
    %v915 = vadd.f32 %v834, %v914
    %v916 = vpop.f32.mrb[0].mxu0
    %917 = vmatprep.mubr.bf16.mxu0 %v328
    %918 = vmatmul.mubr.bf16.gmra.mrb[0].mxu0 %v327
    %v919 = vpop.f32.mrb[0].mxu0
    %v920 = vadd.f32 %v839, %v919
    %v921 = vpop.f32.mrb[0].mxu0
    %v922 = vpop.f32.mrb[0].mxu0
    %v923 = vadd.f32 %v842, %v922
    %v924 = vpop.f32.mrb[0].mxu0
    %925 = vmatprep.mubr.bf16.mxu0 %v335
    %926 = vmatmul.mubr.bf16.gmra.mrb[0].mxu0 %v334
    %v927 = vpop.f32.mrb[0].mxu0
    %v928 = vadd.f32 %v847, %v927
    %v929 = vpop.f32.mrb[0].mxu0
    %v930 = vpop.f32.mrb[0].mxu0
    %v931 = vadd.f32 %v850, %v930
    %v932 = vpop.f32.mrb[0].mxu0
    %933 = vmatprep.mubr.bf16.mxu0 %v342
    %934 = vmatmul.mubr.bf16.gmra.mrb[0].mxu0 %v341
    %v935 = vpop.f32.mrb[0].mxu0
    %v936 = vadd.f32 %v855, %v935
    %v937 = vpop.f32.mrb[0].mxu0
    %v938 = vpop.f32.mrb[0].mxu0
    %v939 = vadd.f32 %v858, %v938
    %v940 = vpop.f32.mrb[0].mxu0
    %941 = vdwg.mxu0
    %942 = vmatprep.subr.bf16.mxu0 0
    %943 = vmatpush1.bf16.msra.mxu0 %v628
    %944 = vmatprep.subr.bf16.mxu0 0
    %945 = vmatpush1.bf16.msra.mxu0 %v629
    %946 = vmatprep.subr.bf16.mxu0 0
    %947 = vmatpush1.bf16.msra.mxu0 0
    %948 = vmatprep.subr.bf16.mxu0 0
    %949 = vmatpush1.bf16.msra.mxu0 0
    %950 = vmatprep.subr.bf16.mxu0 0
    %951 = vmatpush1.bf16.msra.mxu0 0
    %952 = vmatprep.subr.bf16.mxu0 0
    %953 = vmatpush1.bf16.msra.mxu0 0
    %954 = vmatprep.subr.bf16.mxu0 0
    %955 = vmatpush1.bf16.msra.mxu0 0
    %956 = vmatprep.subr.bf16.mxu0 0
    %957 = vmatpush1.bf16.msra.mxu0 0
    %958 = vmatprep.subr.bf16.mxu0 0
    %959 = vmatpush1.bf16.msra.mxu0 0
    %960 = vmatprep.subr.bf16.mxu0 0
    %961 = vmatpush1.bf16.msra.mxu0 0
    %962 = vmatprep.subr.bf16.mxu0 0
    %963 = vmatpush1.bf16.msra.mxu0 0
    %964 = vmatprep.subr.bf16.mxu0 0
    %965 = vmatpush1.bf16.msra.mxu0 0
    %966 = vmatprep.subr.bf16.mxu0 0
    %967 = vmatpush1.bf16.msra.mxu0 0
    %968 = vmatprep.subr.bf16.mxu0 0
    %969 = vmatpush1.bf16.msra.mxu0 0
    %970 = vmatprep.subr.bf16.mxu0 0
    %971 = vmatpush1.bf16.msra.mxu0 0
    %972 = vmatprep.subr.bf16.mxu0 0
    %973 = vmatpush1.bf16.msra.mxu0 0
    %974 = vmatprep.mubr.bf16.mxu0 0
    %975 = vmatmul.mubr.bf16.gmra.mrb[0].mxu0 %v682
    %v976 = vpop.f32.mrb[0].mxu0
    %v977 = vadd.f32 %v896, %v976
    %v978 = vpop.f32.mrb[0].mxu0
    %v979 = vpop.f32.mrb[0].mxu0
    %v980 = vadd.f32 %v899, %v979
    %v981 = vpop.f32.mrb[0].mxu0
    %982 = vmatprep.mubr.bf16.mxu0 0
    %983 = vmatmul.mubr.bf16.gmra.mrb[0].mxu0 %v685
    %v984 = vpop.f32.mrb[0].mxu0
    %v985 = vadd.f32 %v904, %v984
    %v986 = vpop.f32.mrb[0].mxu0
    %v987 = vpop.f32.mrb[0].mxu0
    %v988 = vadd.f32 %v907, %v987
    %v989 = vpop.f32.mrb[0].mxu0
    %990 = vmatprep.mubr.bf16.mxu0 0
    %991 = vmatmul.mubr.bf16.gmra.mrb[0].mxu0 %v688
    %v992 = vpop.f32.mrb[0].mxu0
    %v993 = vadd.f32 %v912, %v992
    %v994 = vpop.f32.mrb[0].mxu0
    %v995 = vpop.f32.mrb[0].mxu0
    %v996 = vadd.f32 %v915, %v995
    %v997 = vpop.f32.mrb[0].mxu0
    %998 = vmatprep.mubr.bf16.mxu0 0
    %999 = vmatmul.mubr.bf16.gmra.mrb[0].mxu0 %v691
    %v1000 = vpop.f32.mrb[0].mxu0
    %v1001 = vadd.f32 %v920, %v1000
    %v1002 = vpop.f32.mrb[0].mxu0
    %v1003 = vpop.f32.mrb[0].mxu0
    %v1004 = vadd.f32 %v923, %v1003
    %v1005 = vpop.f32.mrb[0].mxu0
    %1006 = vmatprep.mubr.bf16.mxu0 0
    %1007 = vmatmul.mubr.bf16.gmra.mrb[0].mxu0 %v694
    %v1008 = vpop.f32.mrb[0].mxu0
    %v1009 = vadd.f32 %v928, %v1008
    %v1010 = vpop.f32.mrb[0].mxu0
    %v1011 = vpop.f32.mrb[0].mxu0
    %v1012 = vadd.f32 %v931, %v1011
    %v1013 = vpop.f32.mrb[0].mxu0
    %1014 = vmatprep.mubr.bf16.mxu0 0
    %1015 = vmatmul.mubr.bf16.gmra.mrb[0].mxu0 %v697
    %v1016 = vpop.f32.mrb[0].mxu0
    %v1017 = vadd.f32 %v936, %v1016
    %v1018 = vpop.f32.mrb[0].mxu0
    %v1019 = vpop.f32.mrb[0].mxu0
    %v1020 = vadd.f32 %v939, %v1019
    %v1021 = vpop.f32.mrb[0].mxu0
    %1022 = vdwg.mxu0
    %v1023 = vmax.f32 %v977, %v988
    %v1024 = vmax.f32 %v980, %v993
    %v1025 = vmax.f32 %v985, %v996
    %v1026 = vmax.f32 %v1001, %v1012
    %v1027 = vmax.f32 %v1004, %v1017
    %v1028 = vmax.f32 %v1009, %v1020
    %v1029 = vmax.f32 %v1023, %v1026
    %v1030 = vmax.f32 %v1024, %v1027
    %v1031 = vmax.f32 %v1025, %v1028
    %v1032 = vld [vmem:[%s2] sm:$0x1]
    %v1034 = vlaneseq
    %v1035 = vshrl.u32 %v1034, 7
    %v1036 = vsub.s32 0, %v1035
    %v1037 = vrot.slane %v1032, %v1036
    %v1039 = vadd.f32 %v1029, %v1037
    %v1040 = vadd.f32 %v1030, %v1037
    %v1041 = vadd.f32 %v1031, %v1037
    %v1042 = vmax.f32 %v1039, 0.0
    %v1043 = vmax.f32 %v1040, 0.0
    %v1044 = vmax.f32 %v1041, 0.0
    %v1045 = vld [vmem:[%s3] sm:$0xff]
    %v1046 = vld [vmem:[%s3 + $0x8] sm:$0xff]
    %v1047 = vld [vmem:[%s3 + $0x10] sm:$0xff]
    %v1048 = vld [vmem:[%s3 + $0x18] sm:$0xff]
    %v1049 = vld [vmem:[%s3 + $0x20] sm:$0xff]
    %v1050 = vld [vmem:[%s3 + $0x28] sm:$0xff]
    %v1051 = vld [vmem:[%s3 + $0x30] sm:$0xff]
    %v1052 = vld [vmem:[%s3 + $0x38] sm:$0xff]
    %v1053 = vld [vmem:[%s3 + $0x40] sm:$0xff]
    %v1054 = vld [vmem:[%s3 + $0x48] sm:$0xff]
    %v1055 = vld [vmem:[%s3 + $0x50] sm:$0xff]
    %v1056 = vld [vmem:[%s3 + $0x58] sm:$0xff]
    %v1057 = vld [vmem:[%s3 + $0x60] sm:$0xff]
    %v1058 = vld [vmem:[%s3 + $0x68] sm:$0xff]
    %v1059 = vld [vmem:[%s3 + $0x70] sm:$0xff]
    %v1060 = vld [vmem:[%s3 + $0x78] sm:$0xff]
    %s1061 = scalar_lea.vmem %s3, 128
    %v1062 = vld [vmem:[%s1061] sm:$0xff]
    %v1063 = vld [vmem:[%s1061 + $0x8] sm:$0xff]
    %v1064 = vld [vmem:[%s1061 + $0x10] sm:$0xff]
    %v1065 = vld [vmem:[%s1061 + $0x18] sm:$0xff]
    %v1066 = vld [vmem:[%s1061 + $0x20] sm:$0xff]
    %v1067 = vld [vmem:[%s1061 + $0x28] sm:$0xff]
    %v1068 = vld [vmem:[%s1061 + $0x30] sm:$0xff]
    %v1069 = vld [vmem:[%s1061 + $0x38] sm:$0xff]
    %v1070 = vld [vmem:[%s1061 + $0x40] sm:$0xff]
    %v1071 = vld [vmem:[%s1061 + $0x48] sm:$0xff]
    %v1072 = vld [vmem:[%s1061 + $0x50] sm:$0xff]
    %v1073 = vld [vmem:[%s1061 + $0x58] sm:$0xff]
    %v1074 = vld [vmem:[%s1061 + $0x60] sm:$0xff]
    %v1075 = vld [vmem:[%s1061 + $0x68] sm:$0xff]
    %v1076 = vld [vmem:[%s1061 + $0x70] sm:$0xff]
    %v1077 = vld [vmem:[%s1061 + $0x78] sm:$0xff]
    %v1079 = vrot.slane %v1042, 2
    %1081 = vmatprep.subr.mxu0 0.0
    %1082 = vmatpush1.msra.mxu0 %v1062
    %1083 = vmatprep.subr.mxu0 0.0
    %1084 = vmatpush1.msra.mxu0 %v1063
    %1085 = vmatprep.subr.mxu0 0.0
    %1086 = vmatpush1.msra.mxu0 %v1064
    %1087 = vmatprep.subr.mxu0 0.0
    %1088 = vmatpush1.msra.mxu0 %v1065
    %1089 = vmatprep.subr.mxu0 0.0
    %1090 = vmatpush1.msra.mxu0 %v1066
    %1091 = vmatprep.subr.mxu0 0.0
    %1092 = vmatpush1.msra.mxu0 %v1067
    %1093 = vmatprep.subr.mxu0 0.0
    %1094 = vmatpush1.msra.mxu0 %v1068
    %1095 = vmatprep.subr.mxu0 0.0
    %1096 = vmatpush1.msra.mxu0 %v1069
    %1097 = vmatprep.subr.mxu0 0.0
    %1098 = vmatpush1.msra.mxu0 %v1070
    %1099 = vmatprep.subr.mxu0 0.0
    %1100 = vmatpush1.msra.mxu0 %v1071
    %1101 = vmatprep.subr.mxu0 0.0
    %1102 = vmatpush1.msra.mxu0 %v1072
    %1103 = vmatprep.subr.mxu0 0.0
    %1104 = vmatpush1.msra.mxu0 %v1073
    %1105 = vmatprep.subr.mxu0 0.0
    %1106 = vmatpush1.msra.mxu0 %v1074
    %1107 = vmatprep.subr.mxu0 0.0
    %1108 = vmatpush1.msra.mxu0 %v1075
    %1109 = vmatprep.subr.mxu0 0.0
    %1110 = vmatpush1.msra.mxu0 %v1076
    %1111 = vmatprep.subr.mxu0 0.0
    %1112 = vmatpush1.msra.mxu0 %v1077
    %1113 = vmatprep.subr.mxu0 0.0
    %1114 = vmatpush1.msra.mxu0 0.0
    %1115 = vmatprep.subr.mxu0 0.0
    %1116 = vmatpush1.msra.mxu0 0.0
    %1117 = vmatprep.subr.mxu0 0.0
    %1118 = vmatpush1.msra.mxu0 0.0
    %1119 = vmatprep.subr.mxu0 0.0
    %1120 = vmatpush1.msra.mxu0 0.0
    %1121 = vmatprep.subr.mxu0 0.0
    %1122 = vmatpush1.msra.mxu0 0.0
    %1123 = vmatprep.subr.mxu0 0.0
    %1124 = vmatpush1.msra.mxu0 0.0
    %1125 = vmatprep.subr.mxu0 0.0
    %1126 = vmatpush1.msra.mxu0 0.0
    %1127 = vmatprep.subr.mxu0 0.0
    %1128 = vmatpush1.msra.mxu0 0.0
    %1129 = vmatprep.subr.mxu0 0.0
    %1130 = vmatpush1.msra.mxu0 0.0
    %1131 = vmatprep.subr.mxu0 0.0
    %1132 = vmatpush1.msra.mxu0 0.0
    %1133 = vmatprep.subr.mxu0 0.0
    %1134 = vmatpush1.msra.mxu0 0.0
    %1135 = vmatprep.subr.mxu0 0.0
    %1136 = vmatpush1.msra.mxu0 0.0
    %1137 = vmatprep.subr.mxu0 0.0
    %1138 = vmatpush1.msra.mxu0 0.0
    %1139 = vmatprep.subr.mxu0 0.0
    %1140 = vmatpush1.msra.mxu0 0.0
    %1141 = vmatprep.subr.mxu0 0.0
    %1142 = vmatpush1.msra.mxu0 0.0
    %1143 = vmatprep.subr.mxu0 0.0
    %1144 = vmatpush1.msra.mxu0 0.0
    %1145 = vmatprep.mubr.f32.mxu0 0.0
    %1146 = vmatmul.mubr.f32.gmra.mrb[0].mxu0 %v1079
    %v1147 = vpop.f32.mrb[0].mxu0
    %v1148 = vadd.f32 0.0, %v1147
    %v1149 = vpop.f32.mrb[0].mxu0
    %1150 = vdwg.mxu0
    %1151 = vmatprep.subr.mxu0 0.0
    %1152 = vmatpush1.msra.mxu0 %v1045
    %1153 = vmatprep.subr.mxu0 0.0
    %1154 = vmatpush1.msra.mxu0 %v1046
    %1155 = vmatprep.subr.mxu0 0.0
    %1156 = vmatpush1.msra.mxu0 %v1047
    %1157 = vmatprep.subr.mxu0 0.0
    %1158 = vmatpush1.msra.mxu0 %v1048
    %1159 = vmatprep.subr.mxu0 0.0
    %1160 = vmatpush1.msra.mxu0 %v1049
    %1161 = vmatprep.subr.mxu0 0.0
    %1162 = vmatpush1.msra.mxu0 %v1050
    %1163 = vmatprep.subr.mxu0 0.0
    %1164 = vmatpush1.msra.mxu0 %v1051
    %1165 = vmatprep.subr.mxu0 0.0
    %1166 = vmatpush1.msra.mxu0 %v1052
    %1167 = vmatprep.subr.mxu0 0.0
    %1168 = vmatpush1.msra.mxu0 %v1053
    %1169 = vmatprep.subr.mxu0 0.0
    %1170 = vmatpush1.msra.mxu0 %v1054
    %1171 = vmatprep.subr.mxu0 0.0
    %1172 = vmatpush1.msra.mxu0 %v1055
    %1173 = vmatprep.subr.mxu0 0.0
    %1174 = vmatpush1.msra.mxu0 %v1056
    %1175 = vmatprep.subr.mxu0 0.0
    %1176 = vmatpush1.msra.mxu0 %v1057
    %1177 = vmatprep.subr.mxu0 0.0
    %1178 = vmatpush1.msra.mxu0 %v1058
    %1179 = vmatprep.subr.mxu0 0.0
    %1180 = vmatpush1.msra.mxu0 %v1059
    %1181 = vmatprep.subr.mxu0 0.0
    %1182 = vmatpush1.msra.mxu0 %v1060
    %1183 = vmatprep.subr.mxu0 0.0
    %1184 = vmatpush1.msra.mxu0 0.0
    %1185 = vmatprep.subr.mxu0 0.0
    %1186 = vmatpush1.msra.mxu0 0.0
    %1187 = vmatprep.subr.mxu0 0.0
    %1188 = vmatpush1.msra.mxu0 0.0
    %1189 = vmatprep.subr.mxu0 0.0
    %1190 = vmatpush1.msra.mxu0 0.0
    %1191 = vmatprep.subr.mxu0 0.0
    %1192 = vmatpush1.msra.mxu0 0.0
    %1193 = vmatprep.subr.mxu0 0.0
    %1194 = vmatpush1.msra.mxu0 0.0
    %1195 = vmatprep.subr.mxu0 0.0
    %1196 = vmatpush1.msra.mxu0 0.0
    %1197 = vmatprep.subr.mxu0 0.0
    %1198 = vmatpush1.msra.mxu0 0.0
    %1199 = vmatprep.subr.mxu0 0.0
    %1200 = vmatpush1.msra.mxu0 0.0
    %1201 = vmatprep.subr.mxu0 0.0
    %1202 = vmatpush1.msra.mxu0 0.0
    %1203 = vmatprep.subr.mxu0 0.0
    %1204 = vmatpush1.msra.mxu0 0.0
    %1205 = vmatprep.subr.mxu0 0.0
    %1206 = vmatpush1.msra.mxu0 0.0
    %1207 = vmatprep.subr.mxu0 0.0
    %1208 = vmatpush1.msra.mxu0 0.0
    %1209 = vmatprep.subr.mxu0 0.0
    %1210 = vmatpush1.msra.mxu0 0.0
    %1211 = vmatprep.subr.mxu0 0.0
    %1212 = vmatpush1.msra.mxu0 0.0
    %1213 = vmatprep.subr.mxu0 0.0
    %1214 = vmatpush1.msra.mxu0 0.0
    %1215 = vmatprep.mubr.f32.mxu0 0.0
    %1216 = vmatmul.mubr.f32.gmra.mrb[0].mxu0 %v1042
    %v1217 = vpop.f32.mrb[0].mxu0
    %v1218 = vadd.f32 %v1148, %v1217
    %v1219 = vpop.f32.mrb[0].mxu0
    %1220 = vdwg.mxu0
    %s1221 = scalar_lea.vmem %s3, 256
    %v1222 = vld [vmem:[%s1221] sm:$0xff]
    %v1223 = vld [vmem:[%s1221 + $0x8] sm:$0xff]
    %v1224 = vld [vmem:[%s1221 + $0x10] sm:$0xff]
    %v1225 = vld [vmem:[%s1221 + $0x18] sm:$0xff]
    %v1226 = vld [vmem:[%s1221 + $0x20] sm:$0xff]
    %v1227 = vld [vmem:[%s1221 + $0x28] sm:$0xff]
    %v1228 = vld [vmem:[%s1221 + $0x30] sm:$0xff]
    %v1229 = vld [vmem:[%s1221 + $0x38] sm:$0xff]
    %v1230 = vld [vmem:[%s1221 + $0x40] sm:$0xff]
    %v1231 = vld [vmem:[%s1221 + $0x48] sm:$0xff]
    %v1232 = vld [vmem:[%s1221 + $0x50] sm:$0xff]
    %v1233 = vld [vmem:[%s1221 + $0x58] sm:$0xff]
    %v1234 = vld [vmem:[%s1221 + $0x60] sm:$0xff]
    %v1235 = vld [vmem:[%s1221 + $0x68] sm:$0xff]
    %v1236 = vld [vmem:[%s1221 + $0x70] sm:$0xff]
    %v1237 = vld [vmem:[%s1221 + $0x78] sm:$0xff]
    %v1238 = vrot.slane %v1042, 4
    %1240 = vmatprep.subr.mxu0 0.0
    %1241 = vmatpush1.msra.mxu0 %v1222
    %1242 = vmatprep.subr.mxu0 0.0
    %1243 = vmatpush1.msra.mxu0 %v1223
    %1244 = vmatprep.subr.mxu0 0.0
    %1245 = vmatpush1.msra.mxu0 %v1224
    %1246 = vmatprep.subr.mxu0 0.0
    %1247 = vmatpush1.msra.mxu0 %v1225
    %1248 = vmatprep.subr.mxu0 0.0
    %1249 = vmatpush1.msra.mxu0 %v1226
    %1250 = vmatprep.subr.mxu0 0.0
    %1251 = vmatpush1.msra.mxu0 %v1227
    %1252 = vmatprep.subr.mxu0 0.0
    %1253 = vmatpush1.msra.mxu0 %v1228
    %1254 = vmatprep.subr.mxu0 0.0
    %1255 = vmatpush1.msra.mxu0 %v1229
    %1256 = vmatprep.subr.mxu0 0.0
    %1257 = vmatpush1.msra.mxu0 %v1230
    %1258 = vmatprep.subr.mxu0 0.0
    %1259 = vmatpush1.msra.mxu0 %v1231
    %1260 = vmatprep.subr.mxu0 0.0
    %1261 = vmatpush1.msra.mxu0 %v1232
    %1262 = vmatprep.subr.mxu0 0.0
    %1263 = vmatpush1.msra.mxu0 %v1233
    %1264 = vmatprep.subr.mxu0 0.0
    %1265 = vmatpush1.msra.mxu0 %v1234
    %1266 = vmatprep.subr.mxu0 0.0
    %1267 = vmatpush1.msra.mxu0 %v1235
    %1268 = vmatprep.subr.mxu0 0.0
    %1269 = vmatpush1.msra.mxu0 %v1236
    %1270 = vmatprep.subr.mxu0 0.0
    %1271 = vmatpush1.msra.mxu0 %v1237
    %1272 = vmatprep.subr.mxu0 0.0
    %1273 = vmatpush1.msra.mxu0 0.0
    %1274 = vmatprep.subr.mxu0 0.0
    %1275 = vmatpush1.msra.mxu0 0.0
    %1276 = vmatprep.subr.mxu0 0.0
    %1277 = vmatpush1.msra.mxu0 0.0
    %1278 = vmatprep.subr.mxu0 0.0
    %1279 = vmatpush1.msra.mxu0 0.0
    %1280 = vmatprep.subr.mxu0 0.0
    %1281 = vmatpush1.msra.mxu0 0.0
    %1282 = vmatprep.subr.mxu0 0.0
    %1283 = vmatpush1.msra.mxu0 0.0
    %1284 = vmatprep.subr.mxu0 0.0
    %1285 = vmatpush1.msra.mxu0 0.0
    %1286 = vmatprep.subr.mxu0 0.0
    %1287 = vmatpush1.msra.mxu0 0.0
    %1288 = vmatprep.subr.mxu0 0.0
    %1289 = vmatpush1.msra.mxu0 0.0
    %1290 = vmatprep.subr.mxu0 0.0
    %1291 = vmatpush1.msra.mxu0 0.0
    %1292 = vmatprep.subr.mxu0 0.0
    %1293 = vmatpush1.msra.mxu0 0.0
    %1294 = vmatprep.subr.mxu0 0.0
    %1295 = vmatpush1.msra.mxu0 0.0
    %1296 = vmatprep.subr.mxu0 0.0
    %1297 = vmatpush1.msra.mxu0 0.0
    %1298 = vmatprep.subr.mxu0 0.0
    %1299 = vmatpush1.msra.mxu0 0.0
    %1300 = vmatprep.subr.mxu0 0.0
    %1301 = vmatpush1.msra.mxu0 0.0
    %1302 = vmatprep.subr.mxu0 0.0
    %1303 = vmatpush1.msra.mxu0 0.0
    %1304 = vmatprep.mubr.f32.mxu0 0.0
    %1305 = vmatmul.mubr.f32.gmra.mrb[0].mxu0 %v1238
    %v1306 = vpop.f32.mrb[0].mxu0
    %v1307 = vadd.f32 0.0, %v1306
    %v1308 = vpop.f32.mrb[0].mxu0
    %1309 = vdwg.mxu0
    %v1310 = vadd.f32 %v1218, %v1307
    %s1311 = scalar_lea.vmem %s3, 384
    %v1312 = vld [vmem:[%s1311] sm:$0xff]
    %v1313 = vld [vmem:[%s1311 + $0x8] sm:$0xff]
    %v1314 = vld [vmem:[%s1311 + $0x10] sm:$0xff]
    %v1315 = vld [vmem:[%s1311 + $0x18] sm:$0xff]
    %v1316 = vld [vmem:[%s1311 + $0x20] sm:$0xff]
    %v1317 = vld [vmem:[%s1311 + $0x28] sm:$0xff]
    %v1318 = vld [vmem:[%s1311 + $0x30] sm:$0xff]
    %v1319 = vld [vmem:[%s1311 + $0x38] sm:$0xff]
    %v1320 = vld [vmem:[%s1311 + $0x40] sm:$0xff]
    %v1321 = vld [vmem:[%s1311 + $0x48] sm:$0xff]
    %v1322 = vld [vmem:[%s1311 + $0x50] sm:$0xff]
    %v1323 = vld [vmem:[%s1311 + $0x58] sm:$0xff]
    %v1324 = vld [vmem:[%s1311 + $0x60] sm:$0xff]
    %v1325 = vld [vmem:[%s1311 + $0x68] sm:$0xff]
    %v1326 = vld [vmem:[%s1311 + $0x70] sm:$0xff]
    %v1327 = vld [vmem:[%s1311 + $0x78] sm:$0xff]
    %v1328 = vrot.slane %v1042, 6
    %1330 = vmatprep.subr.mxu0 0.0
    %1331 = vmatpush1.msra.mxu0 %v1312
    %1332 = vmatprep.subr.mxu0 0.0
    %1333 = vmatpush1.msra.mxu0 %v1313
    %1334 = vmatprep.subr.mxu0 0.0
    %1335 = vmatpush1.msra.mxu0 %v1314
    %1336 = vmatprep.subr.mxu0 0.0
    %1337 = vmatpush1.msra.mxu0 %v1315
    %1338 = vmatprep.subr.mxu0 0.0
    %1339 = vmatpush1.msra.mxu0 %v1316
    %1340 = vmatprep.subr.mxu0 0.0
    %1341 = vmatpush1.msra.mxu0 %v1317
    %1342 = vmatprep.subr.mxu0 0.0
    %1343 = vmatpush1.msra.mxu0 %v1318
    %1344 = vmatprep.subr.mxu0 0.0
    %1345 = vmatpush1.msra.mxu0 %v1319
    %1346 = vmatprep.subr.mxu0 0.0
    %1347 = vmatpush1.msra.mxu0 %v1320
    %1348 = vmatprep.subr.mxu0 0.0
    %1349 = vmatpush1.msra.mxu0 %v1321
    %1350 = vmatprep.subr.mxu0 0.0
    %1351 = vmatpush1.msra.mxu0 %v1322
    %1352 = vmatprep.subr.mxu0 0.0
    %1353 = vmatpush1.msra.mxu0 %v1323
    %1354 = vmatprep.subr.mxu0 0.0
    %1355 = vmatpush1.msra.mxu0 %v1324
    %1356 = vmatprep.subr.mxu0 0.0
    %1357 = vmatpush1.msra.mxu0 %v1325
    %1358 = vmatprep.subr.mxu0 0.0
    %1359 = vmatpush1.msra.mxu0 %v1326
    %1360 = vmatprep.subr.mxu0 0.0
    %1361 = vmatpush1.msra.mxu0 %v1327
    %1362 = vmatprep.subr.mxu0 0.0
    %1363 = vmatpush1.msra.mxu0 0.0
    %1364 = vmatprep.subr.mxu0 0.0
    %1365 = vmatpush1.msra.mxu0 0.0
    %1366 = vmatprep.subr.mxu0 0.0
    %1367 = vmatpush1.msra.mxu0 0.0
    %1368 = vmatprep.subr.mxu0 0.0
    %1369 = vmatpush1.msra.mxu0 0.0
    %1370 = vmatprep.subr.mxu0 0.0
    %1371 = vmatpush1.msra.mxu0 0.0
    %1372 = vmatprep.subr.mxu0 0.0
    %1373 = vmatpush1.msra.mxu0 0.0
    %1374 = vmatprep.subr.mxu0 0.0
    %1375 = vmatpush1.msra.mxu0 0.0
    %1376 = vmatprep.subr.mxu0 0.0
    %1377 = vmatpush1.msra.mxu0 0.0
    %1378 = vmatprep.subr.mxu0 0.0
    %1379 = vmatpush1.msra.mxu0 0.0
    %1380 = vmatprep.subr.mxu0 0.0
    %1381 = vmatpush1.msra.mxu0 0.0
    %1382 = vmatprep.subr.mxu0 0.0
    %1383 = vmatpush1.msra.mxu0 0.0
    %1384 = vmatprep.subr.mxu0 0.0
    %1385 = vmatpush1.msra.mxu0 0.0
    %1386 = vmatprep.subr.mxu0 0.0
    %1387 = vmatpush1.msra.mxu0 0.0
    %1388 = vmatprep.subr.mxu0 0.0
    %1389 = vmatpush1.msra.mxu0 0.0
    %1390 = vmatprep.subr.mxu0 0.0
    %1391 = vmatpush1.msra.mxu0 0.0
    %1392 = vmatprep.subr.mxu0 0.0
    %1393 = vmatpush1.msra.mxu0 0.0
    %1394 = vmatprep.mubr.f32.mxu0 0.0
    %1395 = vmatmul.mubr.f32.gmra.mrb[0].mxu0 %v1328
    %v1396 = vpop.f32.mrb[0].mxu0
    %v1397 = vadd.f32 0.0, %v1396
    %v1398 = vpop.f32.mrb[0].mxu0
    %1399 = vdwg.mxu0
    %v1400 = vadd.f32 %v1310, %v1397
    %s1401 = scalar_lea.vmem %s3, 512
    %v1402 = vld [vmem:[%s1401] sm:$0xff]
    %v1403 = vld [vmem:[%s1401 + $0x8] sm:$0xff]
    %v1404 = vld [vmem:[%s1401 + $0x10] sm:$0xff]
    %v1405 = vld [vmem:[%s1401 + $0x18] sm:$0xff]
    %v1406 = vld [vmem:[%s1401 + $0x20] sm:$0xff]
    %v1407 = vld [vmem:[%s1401 + $0x28] sm:$0xff]
    %v1408 = vld [vmem:[%s1401 + $0x30] sm:$0xff]
    %v1409 = vld [vmem:[%s1401 + $0x38] sm:$0xff]
    %v1410 = vld [vmem:[%s1401 + $0x40] sm:$0xff]
    %v1411 = vld [vmem:[%s1401 + $0x48] sm:$0xff]
    %v1412 = vld [vmem:[%s1401 + $0x50] sm:$0xff]
    %v1413 = vld [vmem:[%s1401 + $0x58] sm:$0xff]
    %v1414 = vld [vmem:[%s1401 + $0x60] sm:$0xff]
    %v1415 = vld [vmem:[%s1401 + $0x68] sm:$0xff]
    %v1416 = vld [vmem:[%s1401 + $0x70] sm:$0xff]
    %v1417 = vld [vmem:[%s1401 + $0x78] sm:$0xff]
    %1418 = vmatprep.subr.mxu0 0.0
    %1419 = vmatpush1.msra.mxu0 %v1402
    %1420 = vmatprep.subr.mxu0 0.0
    %1421 = vmatpush1.msra.mxu0 %v1403
    %1422 = vmatprep.subr.mxu0 0.0
    %1423 = vmatpush1.msra.mxu0 %v1404
    %1424 = vmatprep.subr.mxu0 0.0
    %1425 = vmatpush1.msra.mxu0 %v1405
    %1426 = vmatprep.subr.mxu0 0.0
    %1427 = vmatpush1.msra.mxu0 %v1406
    %1428 = vmatprep.subr.mxu0 0.0
    %1429 = vmatpush1.msra.mxu0 %v1407
    %1430 = vmatprep.subr.mxu0 0.0
    %1431 = vmatpush1.msra.mxu0 %v1408
    %1432 = vmatprep.subr.mxu0 0.0
    %1433 = vmatpush1.msra.mxu0 %v1409
    %1434 = vmatprep.subr.mxu0 0.0
    %1435 = vmatpush1.msra.mxu0 %v1410
    %1436 = vmatprep.subr.mxu0 0.0
    %1437 = vmatpush1.msra.mxu0 %v1411
    %1438 = vmatprep.subr.mxu0 0.0
    %1439 = vmatpush1.msra.mxu0 %v1412
    %1440 = vmatprep.subr.mxu0 0.0
    %1441 = vmatpush1.msra.mxu0 %v1413
    %1442 = vmatprep.subr.mxu0 0.0
    %1443 = vmatpush1.msra.mxu0 %v1414
    %1444 = vmatprep.subr.mxu0 0.0
    %1445 = vmatpush1.msra.mxu0 %v1415
    %1446 = vmatprep.subr.mxu0 0.0
    %1447 = vmatpush1.msra.mxu0 %v1416
    %1448 = vmatprep.subr.mxu0 0.0
    %1449 = vmatpush1.msra.mxu0 %v1417
    %1450 = vmatprep.subr.mxu0 0.0
    %1451 = vmatpush1.msra.mxu0 0.0
    %1452 = vmatprep.subr.mxu0 0.0
    %1453 = vmatpush1.msra.mxu0 0.0
    %1454 = vmatprep.subr.mxu0 0.0
    %1455 = vmatpush1.msra.mxu0 0.0
    %1456 = vmatprep.subr.mxu0 0.0
    %1457 = vmatpush1.msra.mxu0 0.0
    %1458 = vmatprep.subr.mxu0 0.0
    %1459 = vmatpush1.msra.mxu0 0.0
    %1460 = vmatprep.subr.mxu0 0.0
    %1461 = vmatpush1.msra.mxu0 0.0
    %1462 = vmatprep.subr.mxu0 0.0
    %1463 = vmatpush1.msra.mxu0 0.0
    %1464 = vmatprep.subr.mxu0 0.0
    %1465 = vmatpush1.msra.mxu0 0.0
    %1466 = vmatprep.subr.mxu0 0.0
    %1467 = vmatpush1.msra.mxu0 0.0
    %1468 = vmatprep.subr.mxu0 0.0
    %1469 = vmatpush1.msra.mxu0 0.0
    %1470 = vmatprep.subr.mxu0 0.0
    %1471 = vmatpush1.msra.mxu0 0.0
    %1472 = vmatprep.subr.mxu0 0.0
    %1473 = vmatpush1.msra.mxu0 0.0
    %1474 = vmatprep.subr.mxu0 0.0
    %1475 = vmatpush1.msra.mxu0 0.0
    %1476 = vmatprep.subr.mxu0 0.0
    %1477 = vmatpush1.msra.mxu0 0.0
    %1478 = vmatprep.subr.mxu0 0.0
    %1479 = vmatpush1.msra.mxu0 0.0
    %1480 = vmatprep.subr.mxu0 0.0
    %1481 = vmatpush1.msra.mxu0 0.0
    %1482 = vmatprep.mubr.f32.mxu0 0.0
    %1483 = vmatmul.mubr.f32.gmra.mrb[0].mxu0 %v1043
    %v1484 = vpop.f32.mrb[0].mxu0
    %v1485 = vadd.f32 0.0, %v1484
    %v1486 = vpop.f32.mrb[0].mxu0
    %1487 = vdwg.mxu0
    %v1488 = vadd.f32 %v1400, %v1485
    %s1489 = scalar_lea.vmem %s3, 640
    %v1490 = vld [vmem:[%s1489] sm:$0xff]
    %v1491 = vld [vmem:[%s1489 + $0x8] sm:$0xff]
    %v1492 = vld [vmem:[%s1489 + $0x10] sm:$0xff]
    %v1493 = vld [vmem:[%s1489 + $0x18] sm:$0xff]
    %v1494 = vld [vmem:[%s1489 + $0x20] sm:$0xff]
    %v1495 = vld [vmem:[%s1489 + $0x28] sm:$0xff]
    %v1496 = vld [vmem:[%s1489 + $0x30] sm:$0xff]
    %v1497 = vld [vmem:[%s1489 + $0x38] sm:$0xff]
    %v1498 = vld [vmem:[%s1489 + $0x40] sm:$0xff]
    %v1499 = vld [vmem:[%s1489 + $0x48] sm:$0xff]
    %v1500 = vld [vmem:[%s1489 + $0x50] sm:$0xff]
    %v1501 = vld [vmem:[%s1489 + $0x58] sm:$0xff]
    %v1502 = vld [vmem:[%s1489 + $0x60] sm:$0xff]
    %v1503 = vld [vmem:[%s1489 + $0x68] sm:$0xff]
    %v1504 = vld [vmem:[%s1489 + $0x70] sm:$0xff]
    %v1505 = vld [vmem:[%s1489 + $0x78] sm:$0xff]
    %v1507 = vrot.slane %v1043, 2
    %1509 = vmatprep.subr.mxu0 0.0
    %1510 = vmatpush1.msra.mxu0 %v1490
    %1511 = vmatprep.subr.mxu0 0.0
    %1512 = vmatpush1.msra.mxu0 %v1491
    %1513 = vmatprep.subr.mxu0 0.0
    %1514 = vmatpush1.msra.mxu0 %v1492
    %1515 = vmatprep.subr.mxu0 0.0
    %1516 = vmatpush1.msra.mxu0 %v1493
    %1517 = vmatprep.subr.mxu0 0.0
    %1518 = vmatpush1.msra.mxu0 %v1494
    %1519 = vmatprep.subr.mxu0 0.0
    %1520 = vmatpush1.msra.mxu0 %v1495
    %1521 = vmatprep.subr.mxu0 0.0
    %1522 = vmatpush1.msra.mxu0 %v1496
    %1523 = vmatprep.subr.mxu0 0.0
    %1524 = vmatpush1.msra.mxu0 %v1497
    %1525 = vmatprep.subr.mxu0 0.0
    %1526 = vmatpush1.msra.mxu0 %v1498
    %1527 = vmatprep.subr.mxu0 0.0
    %1528 = vmatpush1.msra.mxu0 %v1499
    %1529 = vmatprep.subr.mxu0 0.0
    %1530 = vmatpush1.msra.mxu0 %v1500
    %1531 = vmatprep.subr.mxu0 0.0
    %1532 = vmatpush1.msra.mxu0 %v1501
    %1533 = vmatprep.subr.mxu0 0.0
    %1534 = vmatpush1.msra.mxu0 %v1502
    %1535 = vmatprep.subr.mxu0 0.0
    %1536 = vmatpush1.msra.mxu0 %v1503
    %1537 = vmatprep.subr.mxu0 0.0
    %1538 = vmatpush1.msra.mxu0 %v1504
    %1539 = vmatprep.subr.mxu0 0.0
    %1540 = vmatpush1.msra.mxu0 %v1505
    %1541 = vmatprep.subr.mxu0 0.0
    %1542 = vmatpush1.msra.mxu0 0.0
    %1543 = vmatprep.subr.mxu0 0.0
    %1544 = vmatpush1.msra.mxu0 0.0
    %1545 = vmatprep.subr.mxu0 0.0
    %1546 = vmatpush1.msra.mxu0 0.0
    %1547 = vmatprep.subr.mxu0 0.0
    %1548 = vmatpush1.msra.mxu0 0.0
    %1549 = vmatprep.subr.mxu0 0.0
    %1550 = vmatpush1.msra.mxu0 0.0
    %1551 = vmatprep.subr.mxu0 0.0
    %1552 = vmatpush1.msra.mxu0 0.0
    %1553 = vmatprep.subr.mxu0 0.0
    %1554 = vmatpush1.msra.mxu0 0.0
    %1555 = vmatprep.subr.mxu0 0.0
    %1556 = vmatpush1.msra.mxu0 0.0
    %1557 = vmatprep.subr.mxu0 0.0
    %1558 = vmatpush1.msra.mxu0 0.0
    %1559 = vmatprep.subr.mxu0 0.0
    %1560 = vmatpush1.msra.mxu0 0.0
    %1561 = vmatprep.subr.mxu0 0.0
    %1562 = vmatpush1.msra.mxu0 0.0
    %1563 = vmatprep.subr.mxu0 0.0
    %1564 = vmatpush1.msra.mxu0 0.0
    %1565 = vmatprep.subr.mxu0 0.0
    %1566 = vmatpush1.msra.mxu0 0.0
    %1567 = vmatprep.subr.mxu0 0.0
    %1568 = vmatpush1.msra.mxu0 0.0
    %1569 = vmatprep.subr.mxu0 0.0
    %1570 = vmatpush1.msra.mxu0 0.0
    %1571 = vmatprep.subr.mxu0 0.0
    %1572 = vmatpush1.msra.mxu0 0.0
    %1573 = vmatprep.mubr.f32.mxu0 0.0
    %1574 = vmatmul.mubr.f32.gmra.mrb[0].mxu0 %v1507
    %v1575 = vpop.f32.mrb[0].mxu0
    %v1576 = vadd.f32 0.0, %v1575
    %v1577 = vpop.f32.mrb[0].mxu0
    %1578 = vdwg.mxu0
    %v1579 = vadd.f32 %v1488, %v1576
    %s1580 = scalar_lea.vmem %s3, 768
    %v1581 = vld [vmem:[%s1580] sm:$0xff]
    %v1582 = vld [vmem:[%s1580 + $0x8] sm:$0xff]
    %v1583 = vld [vmem:[%s1580 + $0x10] sm:$0xff]
    %v1584 = vld [vmem:[%s1580 + $0x18] sm:$0xff]
    %v1585 = vld [vmem:[%s1580 + $0x20] sm:$0xff]
    %v1586 = vld [vmem:[%s1580 + $0x28] sm:$0xff]
    %v1587 = vld [vmem:[%s1580 + $0x30] sm:$0xff]
    %v1588 = vld [vmem:[%s1580 + $0x38] sm:$0xff]
    %v1589 = vld [vmem:[%s1580 + $0x40] sm:$0xff]
    %v1590 = vld [vmem:[%s1580 + $0x48] sm:$0xff]
    %v1591 = vld [vmem:[%s1580 + $0x50] sm:$0xff]
    %v1592 = vld [vmem:[%s1580 + $0x58] sm:$0xff]
    %v1593 = vld [vmem:[%s1580 + $0x60] sm:$0xff]
    %v1594 = vld [vmem:[%s1580 + $0x68] sm:$0xff]
    %v1595 = vld [vmem:[%s1580 + $0x70] sm:$0xff]
    %v1596 = vld [vmem:[%s1580 + $0x78] sm:$0xff]
    %v1597 = vrot.slane %v1043, 4
    %1599 = vmatprep.subr.mxu0 0.0
    %1600 = vmatpush1.msra.mxu0 %v1581
    %1601 = vmatprep.subr.mxu0 0.0
    %1602 = vmatpush1.msra.mxu0 %v1582
    %1603 = vmatprep.subr.mxu0 0.0
    %1604 = vmatpush1.msra.mxu0 %v1583
    %1605 = vmatprep.subr.mxu0 0.0
    %1606 = vmatpush1.msra.mxu0 %v1584
    %1607 = vmatprep.subr.mxu0 0.0
    %1608 = vmatpush1.msra.mxu0 %v1585
    %1609 = vmatprep.subr.mxu0 0.0
    %1610 = vmatpush1.msra.mxu0 %v1586
    %1611 = vmatprep.subr.mxu0 0.0
    %1612 = vmatpush1.msra.mxu0 %v1587
    %1613 = vmatprep.subr.mxu0 0.0
    %1614 = vmatpush1.msra.mxu0 %v1588
    %1615 = vmatprep.subr.mxu0 0.0
    %1616 = vmatpush1.msra.mxu0 %v1589
    %1617 = vmatprep.subr.mxu0 0.0
    %1618 = vmatpush1.msra.mxu0 %v1590
    %1619 = vmatprep.subr.mxu0 0.0
    %1620 = vmatpush1.msra.mxu0 %v1591
    %1621 = vmatprep.subr.mxu0 0.0
    %1622 = vmatpush1.msra.mxu0 %v1592
    %1623 = vmatprep.subr.mxu0 0.0
    %1624 = vmatpush1.msra.mxu0 %v1593
    %1625 = vmatprep.subr.mxu0 0.0
    %1626 = vmatpush1.msra.mxu0 %v1594
    %1627 = vmatprep.subr.mxu0 0.0
    %1628 = vmatpush1.msra.mxu0 %v1595
    %1629 = vmatprep.subr.mxu0 0.0
    %1630 = vmatpush1.msra.mxu0 %v1596
    %1631 = vmatprep.subr.mxu0 0.0
    %1632 = vmatpush1.msra.mxu0 0.0
    %1633 = vmatprep.subr.mxu0 0.0
    %1634 = vmatpush1.msra.mxu0 0.0
    %1635 = vmatprep.subr.mxu0 0.0
    %1636 = vmatpush1.msra.mxu0 0.0
    %1637 = vmatprep.subr.mxu0 0.0
    %1638 = vmatpush1.msra.mxu0 0.0
    %1639 = vmatprep.subr.mxu0 0.0
    %1640 = vmatpush1.msra.mxu0 0.0
    %1641 = vmatprep.subr.mxu0 0.0
    %1642 = vmatpush1.msra.mxu0 0.0
    %1643 = vmatprep.subr.mxu0 0.0
    %1644 = vmatpush1.msra.mxu0 0.0
    %1645 = vmatprep.subr.mxu0 0.0
    %1646 = vmatpush1.msra.mxu0 0.0
    %1647 = vmatprep.subr.mxu0 0.0
    %1648 = vmatpush1.msra.mxu0 0.0
    %1649 = vmatprep.subr.mxu0 0.0
    %1650 = vmatpush1.msra.mxu0 0.0
    %1651 = vmatprep.subr.mxu0 0.0
    %1652 = vmatpush1.msra.mxu0 0.0
    %1653 = vmatprep.subr.mxu0 0.0
    %1654 = vmatpush1.msra.mxu0 0.0
    %1655 = vmatprep.subr.mxu0 0.0
    %1656 = vmatpush1.msra.mxu0 0.0
    %1657 = vmatprep.subr.mxu0 0.0
    %1658 = vmatpush1.msra.mxu0 0.0
    %1659 = vmatprep.subr.mxu0 0.0
    %1660 = vmatpush1.msra.mxu0 0.0
    %1661 = vmatprep.subr.mxu0 0.0
    %1662 = vmatpush1.msra.mxu0 0.0
    %1663 = vmatprep.mubr.f32.mxu0 0.0
    %1664 = vmatmul.mubr.f32.gmra.mrb[0].mxu0 %v1597
    %v1665 = vpop.f32.mrb[0].mxu0
    %v1666 = vadd.f32 0.0, %v1665
    %v1667 = vpop.f32.mrb[0].mxu0
    %1668 = vdwg.mxu0
    %v1669 = vadd.f32 %v1579, %v1666
    %s1670 = scalar_lea.vmem %s3, 896
    %v1671 = vld [vmem:[%s1670] sm:$0xff]
    %v1672 = vld [vmem:[%s1670 + $0x8] sm:$0xff]
    %v1673 = vld [vmem:[%s1670 + $0x10] sm:$0xff]
    %v1674 = vld [vmem:[%s1670 + $0x18] sm:$0xff]
    %v1675 = vld [vmem:[%s1670 + $0x20] sm:$0xff]
    %v1676 = vld [vmem:[%s1670 + $0x28] sm:$0xff]
    %v1677 = vld [vmem:[%s1670 + $0x30] sm:$0xff]
    %v1678 = vld [vmem:[%s1670 + $0x38] sm:$0xff]
    %v1679 = vld [vmem:[%s1670 + $0x40] sm:$0xff]
    %v1680 = vld [vmem:[%s1670 + $0x48] sm:$0xff]
    %v1681 = vld [vmem:[%s1670 + $0x50] sm:$0xff]
    %v1682 = vld [vmem:[%s1670 + $0x58] sm:$0xff]
    %v1683 = vld [vmem:[%s1670 + $0x60] sm:$0xff]
    %v1684 = vld [vmem:[%s1670 + $0x68] sm:$0xff]
    %v1685 = vld [vmem:[%s1670 + $0x70] sm:$0xff]
    %v1686 = vld [vmem:[%s1670 + $0x78] sm:$0xff]
    %v1687 = vrot.slane %v1043, 6
    %1689 = vmatprep.subr.mxu0 0.0
    %1690 = vmatpush1.msra.mxu0 %v1671
    %1691 = vmatprep.subr.mxu0 0.0
    %1692 = vmatpush1.msra.mxu0 %v1672
    %1693 = vmatprep.subr.mxu0 0.0
    %1694 = vmatpush1.msra.mxu0 %v1673
    %1695 = vmatprep.subr.mxu0 0.0
    %1696 = vmatpush1.msra.mxu0 %v1674
    %1697 = vmatprep.subr.mxu0 0.0
    %1698 = vmatpush1.msra.mxu0 %v1675
    %1699 = vmatprep.subr.mxu0 0.0
    %1700 = vmatpush1.msra.mxu0 %v1676
    %1701 = vmatprep.subr.mxu0 0.0
    %1702 = vmatpush1.msra.mxu0 %v1677
    %1703 = vmatprep.subr.mxu0 0.0
    %1704 = vmatpush1.msra.mxu0 %v1678
    %1705 = vmatprep.subr.mxu0 0.0
    %1706 = vmatpush1.msra.mxu0 %v1679
    %1707 = vmatprep.subr.mxu0 0.0
    %1708 = vmatpush1.msra.mxu0 %v1680
    %1709 = vmatprep.subr.mxu0 0.0
    %1710 = vmatpush1.msra.mxu0 %v1681
    %1711 = vmatprep.subr.mxu0 0.0
    %1712 = vmatpush1.msra.mxu0 %v1682
    %1713 = vmatprep.subr.mxu0 0.0
    %1714 = vmatpush1.msra.mxu0 %v1683
    %1715 = vmatprep.subr.mxu0 0.0
    %1716 = vmatpush1.msra.mxu0 %v1684
    %1717 = vmatprep.subr.mxu0 0.0
    %1718 = vmatpush1.msra.mxu0 %v1685
    %1719 = vmatprep.subr.mxu0 0.0
    %1720 = vmatpush1.msra.mxu0 %v1686
    %1721 = vmatprep.subr.mxu0 0.0
    %1722 = vmatpush1.msra.mxu0 0.0
    %1723 = vmatprep.subr.mxu0 0.0
    %1724 = vmatpush1.msra.mxu0 0.0
    %1725 = vmatprep.subr.mxu0 0.0
    %1726 = vmatpush1.msra.mxu0 0.0
    %1727 = vmatprep.subr.mxu0 0.0
    %1728 = vmatpush1.msra.mxu0 0.0
    %1729 = vmatprep.subr.mxu0 0.0
    %1730 = vmatpush1.msra.mxu0 0.0
    %1731 = vmatprep.subr.mxu0 0.0
    %1732 = vmatpush1.msra.mxu0 0.0
    %1733 = vmatprep.subr.mxu0 0.0
    %1734 = vmatpush1.msra.mxu0 0.0
    %1735 = vmatprep.subr.mxu0 0.0
    %1736 = vmatpush1.msra.mxu0 0.0
    %1737 = vmatprep.subr.mxu0 0.0
    %1738 = vmatpush1.msra.mxu0 0.0
    %1739 = vmatprep.subr.mxu0 0.0
    %1740 = vmatpush1.msra.mxu0 0.0
    %1741 = vmatprep.subr.mxu0 0.0
    %1742 = vmatpush1.msra.mxu0 0.0
    %1743 = vmatprep.subr.mxu0 0.0
    %1744 = vmatpush1.msra.mxu0 0.0
    %1745 = vmatprep.subr.mxu0 0.0
    %1746 = vmatpush1.msra.mxu0 0.0
    %1747 = vmatprep.subr.mxu0 0.0
    %1748 = vmatpush1.msra.mxu0 0.0
    %1749 = vmatprep.subr.mxu0 0.0
    %1750 = vmatpush1.msra.mxu0 0.0
    %1751 = vmatprep.subr.mxu0 0.0
    %1752 = vmatpush1.msra.mxu0 0.0
    %1753 = vmatprep.mubr.f32.mxu0 0.0
    %1754 = vmatmul.mubr.f32.gmra.mrb[0].mxu0 %v1687
    %v1755 = vpop.f32.mrb[0].mxu0
    %v1756 = vadd.f32 0.0, %v1755
    %v1757 = vpop.f32.mrb[0].mxu0
    %1758 = vdwg.mxu0
    %v1759 = vadd.f32 %v1669, %v1756
    %s1760 = scalar_lea.vmem %s3, 1024
    %v1761 = vld [vmem:[%s1760] sm:$0xff]
    %v1762 = vld [vmem:[%s1760 + $0x8] sm:$0xff]
    %v1763 = vld [vmem:[%s1760 + $0x10] sm:$0xff]
    %v1764 = vld [vmem:[%s1760 + $0x18] sm:$0xff]
    %v1765 = vld [vmem:[%s1760 + $0x20] sm:$0xff]
    %v1766 = vld [vmem:[%s1760 + $0x28] sm:$0xff]
    %v1767 = vld [vmem:[%s1760 + $0x30] sm:$0xff]
    %v1768 = vld [vmem:[%s1760 + $0x38] sm:$0xff]
    %v1769 = vld [vmem:[%s1760 + $0x40] sm:$0xff]
    %v1770 = vld [vmem:[%s1760 + $0x48] sm:$0xff]
    %v1771 = vld [vmem:[%s1760 + $0x50] sm:$0xff]
    %v1772 = vld [vmem:[%s1760 + $0x58] sm:$0xff]
    %v1773 = vld [vmem:[%s1760 + $0x60] sm:$0xff]
    %v1774 = vld [vmem:[%s1760 + $0x68] sm:$0xff]
    %v1775 = vld [vmem:[%s1760 + $0x70] sm:$0xff]
    %v1776 = vld [vmem:[%s1760 + $0x78] sm:$0xff]
    %1777 = vmatprep.subr.mxu0 0.0
    %1778 = vmatpush1.msra.mxu0 %v1761
    %1779 = vmatprep.subr.mxu0 0.0
    %1780 = vmatpush1.msra.mxu0 %v1762
    %1781 = vmatprep.subr.mxu0 0.0
    %1782 = vmatpush1.msra.mxu0 %v1763
    %1783 = vmatprep.subr.mxu0 0.0
    %1784 = vmatpush1.msra.mxu0 %v1764
    %1785 = vmatprep.subr.mxu0 0.0
    %1786 = vmatpush1.msra.mxu0 %v1765
    %1787 = vmatprep.subr.mxu0 0.0
    %1788 = vmatpush1.msra.mxu0 %v1766
    %1789 = vmatprep.subr.mxu0 0.0
    %1790 = vmatpush1.msra.mxu0 %v1767
    %1791 = vmatprep.subr.mxu0 0.0
    %1792 = vmatpush1.msra.mxu0 %v1768
    %1793 = vmatprep.subr.mxu0 0.0
    %1794 = vmatpush1.msra.mxu0 %v1769
    %1795 = vmatprep.subr.mxu0 0.0
    %1796 = vmatpush1.msra.mxu0 %v1770
    %1797 = vmatprep.subr.mxu0 0.0
    %1798 = vmatpush1.msra.mxu0 %v1771
    %1799 = vmatprep.subr.mxu0 0.0
    %1800 = vmatpush1.msra.mxu0 %v1772
    %1801 = vmatprep.subr.mxu0 0.0
    %1802 = vmatpush1.msra.mxu0 %v1773
    %1803 = vmatprep.subr.mxu0 0.0
    %1804 = vmatpush1.msra.mxu0 %v1774
    %1805 = vmatprep.subr.mxu0 0.0
    %1806 = vmatpush1.msra.mxu0 %v1775
    %1807 = vmatprep.subr.mxu0 0.0
    %1808 = vmatpush1.msra.mxu0 %v1776
    %1809 = vmatprep.subr.mxu0 0.0
    %1810 = vmatpush1.msra.mxu0 0.0
    %1811 = vmatprep.subr.mxu0 0.0
    %1812 = vmatpush1.msra.mxu0 0.0
    %1813 = vmatprep.subr.mxu0 0.0
    %1814 = vmatpush1.msra.mxu0 0.0
    %1815 = vmatprep.subr.mxu0 0.0
    %1816 = vmatpush1.msra.mxu0 0.0
    %1817 = vmatprep.subr.mxu0 0.0
    %1818 = vmatpush1.msra.mxu0 0.0
    %1819 = vmatprep.subr.mxu0 0.0
    %1820 = vmatpush1.msra.mxu0 0.0
    %1821 = vmatprep.subr.mxu0 0.0
    %1822 = vmatpush1.msra.mxu0 0.0
    %1823 = vmatprep.subr.mxu0 0.0
    %1824 = vmatpush1.msra.mxu0 0.0
    %1825 = vmatprep.subr.mxu0 0.0
    %1826 = vmatpush1.msra.mxu0 0.0
    %1827 = vmatprep.subr.mxu0 0.0
    %1828 = vmatpush1.msra.mxu0 0.0
    %1829 = vmatprep.subr.mxu0 0.0
    %1830 = vmatpush1.msra.mxu0 0.0
    %1831 = vmatprep.subr.mxu0 0.0
    %1832 = vmatpush1.msra.mxu0 0.0
    %1833 = vmatprep.subr.mxu0 0.0
    %1834 = vmatpush1.msra.mxu0 0.0
    %1835 = vmatprep.subr.mxu0 0.0
    %1836 = vmatpush1.msra.mxu0 0.0
    %1837 = vmatprep.subr.mxu0 0.0
    %1838 = vmatpush1.msra.mxu0 0.0
    %1839 = vmatprep.subr.mxu0 0.0
    %1840 = vmatpush1.msra.mxu0 0.0
    %1841 = vmatprep.mubr.f32.mxu0 0.0
    %1842 = vmatmul.mubr.f32.gmra.mrb[0].mxu0 %v1044
    %v1843 = vpop.f32.mrb[0].mxu0
    %v1844 = vadd.f32 0.0, %v1843
    %v1845 = vpop.f32.mrb[0].mxu0
    %1846 = vdwg.mxu0
    %v1847 = vadd.f32 %v1759, %v1844
    %v1848 = vld [vmem:[%s4] sm:$0x1]
    %v1850 = vlaneseq
    %v1851 = vshrl.u32 %v1850, 7
    %v1852 = vsub.s32 0, %v1851
    %v1853 = vrot.slane %v1848, %v1852
    %v1855 = vadd.f32 %v1847, %v1853
    %1856 = vst [vmem:[#allocation2] sm:$0x3] %v1855
    // Predicated region
    $region22: #{cnn2_forward.5} parent=1 // pred_check
      _
    $region23: #{cnn2_forward.5} parent=1 // pred_check_branch
      %1858 = sbr.rel (0) target = $region25
    $region24: #{cnn2_forward.5} parent=1 // pred_region
      %s1860 = ssub.s32 32, 32
      %1861 = vsyncadd [#allocation3], %s1860
      %s1863 = sshll.u32 [#allocation2], 4
      %s1864 = int_to_ptr.vmem [resolvable:$true] %s1863
      %1866 = dma.vmem_to_hbm [thread:$0]  %s1864, 32, %s5, [#allocation3]
    $region25: #{cnn2_forward.5} parent=1 // pred_fallthru
      _
    // Predicated region
    $region26: #{cnn2_forward.5} parent=1 // pred_check
      _
    $region27: #{cnn2_forward.5} parent=1 // pred_check_branch
      %1868 = sbr.rel (0) target = $region29
    $region28: #{cnn2_forward.5} parent=1 // pred_region
      %1869 = dma.done [#allocation3], 32
    $region29: #{cnn2_forward.5} parent=1 // pred_fallthru
      _
    %1870 = vsyncpa [#allocation3], 1

</llo_original>
